<compile_context>
chip_gen: v5e
topology: v5e:2x2
jax: 0.10.0
libtpu: 0.0.40
codegen_flags: <defaults>
</compile_context>

<pallas_src>
import functools

import jax
import jax.numpy as jnp
from jax.experimental import pallas as pl
from jax.experimental.pallas import tpu as pltpu

DROPOUT_P = 0.1


def _round_up(x: int, m: int) -> int:
    return ((x + m - 1) // m) * m


def _ffn_kernel(x_ref, w1_ref, b1_ref, w2_ref, b2_ref, *rest,
                apply_dropout: bool, keep_prob: float):
    """One row tile: y = dropout(relu(x @ W1 + b1) @ W2 + b2)."""
    if apply_dropout:
        u_ref, o_ref = rest
    else:
        (o_ref,) = rest

    # Linear 1 (MXU, bf16 inputs, f32 accumulate) + bias + ReLU in f32.
    h = jnp.dot(x_ref[...], w1_ref[...], preferred_element_type=jnp.float32)
    h = jnp.maximum(h + b1_ref[...], 0.0)

    # Linear 2 (cast hidden to bf16 for the MXU, accumulate in f32).
    y = jnp.dot(h.astype(w2_ref.dtype), w2_ref[...],
                preferred_element_type=jnp.float32)
    y = y + b2_ref[...]

    if apply_dropout:
        # Inverted dropout with externally supplied uniform randoms (f32).
        keep = u_ref[...] < keep_prob
        y = jnp.where(keep, y * (1.0 / keep_prob), 0.0)

    o_ref[...] = y.astype(o_ref.dtype)


@functools.partial(jax.jit, static_argnames=("training",))
def feed_forward(x, w1, b1, w2, b2, dropout_key, *, training=False):
    """x: (B, T, C) float32.  w1:(C,H) w2:(H,C) bf16/f32, b1:(1,H) b2:(1,C) f32."""
    B, T, C = x.shape
    H = w1.shape[1]
    M = B * T
    assert C % 128 == 0 and H % 128 == 0, "feature dims must be lane-aligned"

    # Large row tile (multiple of 256 for the v6e/v7x 256-wide MXU when M is
    # big enough); small inputs fall back to a multiple-of-8 tile, M padded.
    tm = 256 if M >= 256 else _round_up(M, 8)
    M_pad = _round_up(M, tm)

    x2d = x.reshape(M, C).astype(jnp.bfloat16)
    if M_pad != M:
        x2d = jnp.pad(x2d, ((0, M_pad - M), (0, 0)))

    w1b = w1.astype(jnp.bfloat16)
    w2b = w2.astype(jnp.bfloat16)
    b1f = b1.astype(jnp.float32)
    b2f = b2.astype(jnp.float32)

    apply_dropout = bool(training) and DROPOUT_P > 0.0
    keep_prob = 1.0 - DROPOUT_P

    in_specs = [
        pl.BlockSpec((tm, C), lambda i: (i, 0)),   # x row tile
        pl.BlockSpec((C, H), lambda i: (0, 0)),    # W1 (resident)
        pl.BlockSpec((1, H), lambda i: (0, 0)),    # b1 (resident)
        pl.BlockSpec((H, C), lambda i: (0, 0)),    # W2 (resident)
        pl.BlockSpec((1, C), lambda i: (0, 0)),    # b2 (resident)
    ]
    inputs = [x2d, w1b, b1f, w2b, b2f]

    if apply_dropout:
        u = jax.random.uniform(dropout_key, (M_pad, C), jnp.float32)
        in_specs.append(pl.BlockSpec((tm, C), lambda i: (i, 0)))
        inputs.append(u)

    # Advisory cost hint for XLA's scheduler: two matmuls = 4*M*C*H flops.
    bytes_accessed = (x2d.size * 2 + w1b.size * 2 + w2b.size * 2
                      + b1f.size * 4 + b2f.size * 4 + M_pad * C * 4
                      + (M_pad * C * 4 if apply_dropout else 0))
    cost = pl.CostEstimate(flops=4 * M_pad * C * H,
                           transcendentals=0,
                           bytes_accessed=int(bytes_accessed))

    kernel = functools.partial(_ffn_kernel,
                               apply_dropout=apply_dropout,
                               keep_prob=keep_prob)

    out2d = pl.pallas_call(
        kernel,
        out_shape=jax.ShapeDtypeStruct((M_pad, C), jnp.float32),
        grid=(M_pad // tm,),
        in_specs=in_specs,
        out_specs=pl.BlockSpec((tm, C), lambda i: (i, 0)),
        compiler_params=pltpu.CompilerParams(
            dimension_semantics=("parallel",),
            vmem_limit_bytes=64 * 1024 * 1024),
        cost_estimate=cost,
    )(*inputs)

    return out2d[:M].reshape(B, T, C)


def init_params(key, n_embd):
    """Mimic nn.Linear default init: U[-1/sqrt(fan_in), 1/sqrt(fan_in)]."""
    hidden = 4 * n_embd
    k1, k2, k3, k4 = jax.random.split(key, 4)
    bound1 = 1.0 / jnp.sqrt(n_embd)
    bound2 = 1.0 / jnp.sqrt(hidden)
    w1 = jax.random.uniform(k1, (n_embd, hidden), jnp.float32, -bound1, bound1)
    b1 = jax.random.uniform(k2, (1, hidden), jnp.float32, -bound1, bound1)
    w2 = jax.random.uniform(k3, (hidden, n_embd), jnp.float32, -bound2, bound2)
    b2 = jax.random.uniform(k4, (1, n_embd), jnp.float32, -bound2, bound2)
    return w1, b1, w2, b2


if __name__ == "__main__":
    # Small shapes consistent with the module: batch=2, seq=8, n_embd=512.
    B, T, n_embd = 2, 8, 512
    key = jax.random.PRNGKey(0)
    kx, kp, kd = jax.random.split(key, 3)
    x = jax.random.normal(kx, (B, T, n_embd), jnp.float32)
    w1, b1, w2, b2 = init_params(kp, n_embd)

    # ---- Eval mode (dropout = identity): check against a matched-precision
    #      pure-JAX reference (inputs rounded through bf16, f32 accumulate).
    y_eval = jax.block_until_ready(
        feed_forward(x, w1, b1, w2, b2, kd, training=False))

    xb = x.reshape(-1, n_embd).astype(jnp.bfloat16).astype(jnp.float32)
    w1f = w1.astype(jnp.bfloat16).astype(jnp.float32)
    w2f = w2.astype(jnp.bfloat16).astype(jnp.float32)
    h_ref = jnp.maximum(xb @ w1f + b1, 0.0)
    ref = (h_ref.astype(jnp.bfloat16).astype(jnp.float32) @ w2f + b2)
    ref = ref.reshape(B, T, n_embd)
    assert y_eval.shape == (B, T, n_embd)
    assert jnp.allclose(y_eval, ref, atol=5e-3, rtol=5e-3), "mismatch vs reference"

    # ---- Training mode (inverted dropout, p=0.1): stochastic path.
    y_train = jax.block_until_ready(
        feed_forward(x, w1, b1, w2, b2, kd, training=True))
    assert y_train.shape == (B, T, n_embd)
    assert bool(jnp.all(jnp.isfinite(y_train)))
    zero_frac = float(jnp.mean(y_train == 0.0))
    assert 0.03 < zero_frac < 0.2, f"dropout zero fraction off: {zero_frac}"

    print("KERNEL_OK")
</pallas_src>

<mosaic_0001>
module attributes {stable_mosaic.version = 11 : i64} {
  func.func @_ffn_kernel(%arg0: i32, %arg1: memref<16x512xbf16, #tpu.memory_space<vmem>>, %arg2: memref<512x2048xbf16, #tpu.memory_space<vmem>>, %arg3: memref<1x2048xf32, #tpu.memory_space<vmem>>, %arg4: memref<2048x512xbf16, #tpu.memory_space<vmem>>, %arg5: memref<1x512xf32, #tpu.memory_space<vmem>>, %arg6: memref<16x512xf32, #tpu.memory_space<vmem>>) attributes {dimension_semantics = [#tpu.dimension_semantics<parallel>], iteration_bounds = array<i64: 1>, scalar_prefetch = 0 : i64, scratch_operands = 0 : i64, tpu.core_type = #tpu.core_type<tc>, window_params = [{transform_indices = @transform_0, window_bounds = array<i64: 16, 512>}, {pipeline_mode = #tpu.pipeline_mode<synchronous>, transform_indices = @transform_1, window_bounds = array<i64: 512, 2048>}, {pipeline_mode = #tpu.pipeline_mode<synchronous>, transform_indices = @transform_2, window_bounds = array<i64: 1, 2048>}, {pipeline_mode = #tpu.pipeline_mode<synchronous>, transform_indices = @transform_3, window_bounds = array<i64: 2048, 512>}, {pipeline_mode = #tpu.pipeline_mode<synchronous>, transform_indices = @transform_4, window_bounds = array<i64: 1, 512>}, {transform_indices = @transform_5, window_bounds = array<i64: 16, 512>}]} {
    %c0 = arith.constant 0 : index
    %c0_0 = arith.constant 0 : index
    %0 = vector.load %arg1[%c0, %c0_0] : memref<16x512xbf16, #tpu.memory_space<vmem>>, vector<16x512xbf16>
    %c0_1 = arith.constant 0 : index
    %c0_2 = arith.constant 0 : index
    %1 = vector.load %arg2[%c0_1, %c0_2] : memref<512x2048xbf16, #tpu.memory_space<vmem>>, vector<512x2048xbf16>
    %cst = arith.constant dense<0.000000e+00> : vector<16x2048xf32>
    %2 = tpu.matmul %0, %1, %cst {dimension_numbers = #tpu.dot_dimension_numbers<[1], [0], [0], [1], [0, 0, 1, 1], [], []>} : vector<16x512xbf16>, vector<512x2048xbf16>, vector<16x2048xf32> -> vector<16x2048xf32>
    %c0_3 = arith.constant 0 : index
    %c0_4 = arith.constant 0 : index
    %3 = vector.load %arg3[%c0_3, %c0_4] : memref<1x2048xf32, #tpu.memory_space<vmem>>, vector<1x2048xf32>
    %4 = vector.broadcast %3 : vector<1x2048xf32> to vector<16x2048xf32>
    %5 = arith.addf %2, %4 : vector<16x2048xf32>
    %cst_5 = arith.constant 0.000000e+00 : f32
    %6 = vector.broadcast %cst_5 : f32 to vector<16x2048xf32>
    %7 = arith.maximumf %5, %6 : vector<16x2048xf32>
    %8 = arith.truncf %7 : vector<16x2048xf32> to vector<16x2048xbf16>
    %c0_6 = arith.constant 0 : index
    %c0_7 = arith.constant 0 : index
    %9 = vector.load %arg4[%c0_6, %c0_7] : memref<2048x512xbf16, #tpu.memory_space<vmem>>, vector<2048x512xbf16>
    %cst_8 = arith.constant dense<0.000000e+00> : vector<16x512xf32>
    %10 = tpu.matmul %8, %9, %cst_8 {dimension_numbers = #tpu.dot_dimension_numbers<[1], [0], [0], [1], [0, 0, 1, 1], [], []>} : vector<16x2048xbf16>, vector<2048x512xbf16>, vector<16x512xf32> -> vector<16x512xf32>
    %c0_9 = arith.constant 0 : index
    %c0_10 = arith.constant 0 : index
    %11 = vector.load %arg5[%c0_9, %c0_10] : memref<1x512xf32, #tpu.memory_space<vmem>>, vector<1x512xf32>
    %12 = vector.broadcast %11 : vector<1x512xf32> to vector<16x512xf32>
    %13 = arith.addf %10, %12 : vector<16x512xf32>
    %c0_11 = arith.constant 0 : index
    %c0_12 = arith.constant 0 : index
    %14 = vector.load %arg6[%c0_11, %c0_12] : memref<16x512xf32, #tpu.memory_space<vmem>>, vector<16x512xf32>
    tpu.vector_store %arg6[%c0_11, %c0_12], %13 {strides = array<i32>} : memref<16x512xf32, #tpu.memory_space<vmem>>, vector<16x512xf32>,
    return
  }
  func.func @transform_0(%arg0: i32) -> (i32, i32) {
    %c0_i32 = arith.constant 0 : i32
    %c0_i32_0 = arith.constant 0 : i32
    return %arg0, %c0_i32 : i32, i32
  }
  func.func @transform_1(%arg0: i32) -> (i32, i32) {
    %c0_i32 = arith.constant 0 : i32
    %c0_i32_0 = arith.constant 0 : i32
    %c0_i32_1 = arith.constant 0 : i32
    return %c0_i32, %c0_i32_0 : i32, i32
  }
  func.func @transform_2(%arg0: i32) -> (i32, i32) {
    %c0_i32 = arith.constant 0 : i32
    %c0_i32_0 = arith.constant 0 : i32
    %c0_i32_1 = arith.constant 0 : i32
    return %c0_i32, %c0_i32_0 : i32, i32
  }
  func.func @transform_3(%arg0: i32) -> (i32, i32) {
    %c0_i32 = arith.constant 0 : i32
    %c0_i32_0 = arith.constant 0 : i32
    %c0_i32_1 = arith.constant 0 : i32
    return %c0_i32, %c0_i32_0 : i32, i32
  }
  func.func @transform_4(%arg0: i32) -> (i32, i32) {
    %c0_i32 = arith.constant 0 : i32
    %c0_i32_0 = arith.constant 0 : i32
    %c0_i32_1 = arith.constant 0 : i32
    return %c0_i32, %c0_i32_0 : i32, i32
  }
  func.func @transform_5(%arg0: i32) -> (i32, i32) {
    %c0_i32 = arith.constant 0 : i32
    %c0_i32_0 = arith.constant 0 : i32
    return %arg0, %c0_i32 : i32, i32
  }
}

</mosaic_0001>

<llo_original>
// kernel: feed_forward.1
$region0: #{feed_forward.1}
  #allocation0 [shape = 'u32[]', space=smem, size = 0x4, offset = 0x4, fixed_abs, tag = 'smem constant byte address 0x4 - core index']
  #allocation1 [shape = 'u32[72,128]{1,0:T(1,128)}', space=vmem, size = 0x9000, scoped, tag = 'internal scratch']
  %s0 = inlined_call_operand.vmem [shape: bf16[16,512], index: 0, kind: input, shape index: {}]
  %s1 = inlined_call_operand.vmem [shape: bf16[512,2048], index: 1, kind: input, shape index: {}]
  %s2 = inlined_call_operand.vmem [shape: f32[1,2048], index: 2, kind: input, shape index: {}]
  %s3 = inlined_call_operand.vmem [shape: bf16[2048,512], index: 3, kind: input, shape index: {}]
  %s4 = inlined_call_operand.vmem [shape: f32[1,512], index: 4, kind: input, shape index: {}]
  %s5 = inlined_call_operand.hbm [shape: f32[16,512], index: 5, kind: output, shape index: {}]
  %s6 = sld [smem:[#allocation0]]
  $region30: #{feed_forward.1} parent=0
    _
  %s8 = ssub.s32 1, %s6
  %s9 = scalar_select 0, %s8, %s6
  $region1: #{feed_forward.1} parent=0
    #allocation2 [shape = 'u8[32768]{0}', space=vmem, size = 0x8000, scoped, tag = 'output window, operand 0, single buffered']
    #allocation3 [shape = 's32[1]{0}', space=sflag, size = 0x4, scoped, tag = 'scoped memory for feed_forward.1']
    %10 = vsyncpa [#allocation3], 0
    // Predicated region
    $region2: #{feed_forward.1} parent=1 // pred_check
      _
    $region3: #{feed_forward.1} parent=1 // pred_check_branch
      %12 = sbr.rel (0) target = $region5
    $region4: #{feed_forward.1} parent=1 // pred_region
      _
    $region5: #{feed_forward.1} parent=1 // pred_fallthru
      _
    // Predicated region
    $region6: #{feed_forward.1} parent=1 // pred_check
      _
    $region7: #{feed_forward.1} parent=1 // pred_check_branch
      %14 = sbr.rel (0) target = $region9
    $region8: #{feed_forward.1} parent=1 // pred_region
      _
    $region9: #{feed_forward.1} parent=1 // pred_fallthru
      _
    // Predicated region
    $region10: #{feed_forward.1} parent=1 // pred_check
      _
    $region11: #{feed_forward.1} parent=1 // pred_check_branch
      %16 = sbr.rel (0) target = $region13
    $region12: #{feed_forward.1} parent=1 // pred_region
      _
    $region13: #{feed_forward.1} parent=1 // pred_fallthru
      _
    // Predicated region
    $region14: #{feed_forward.1} parent=1 // pred_check
      _
    $region15: #{feed_forward.1} parent=1 // pred_check_branch
      %18 = sbr.rel (0) target = $region17
    $region16: #{feed_forward.1} parent=1 // pred_region
      _
    $region17: #{feed_forward.1} parent=1 // pred_fallthru
      _
    // Predicated region
    $region18: #{feed_forward.1} parent=1 // pred_check
      _
    $region19: #{feed_forward.1} parent=1 // pred_check_branch
      %20 = sbr.rel (0) target = $region21
    $region20: #{feed_forward.1} parent=1 // pred_region
      _
    $region21: #{feed_forward.1} parent=1 // pred_fallthru
      _
    %v21 = vld [vmem:[%s0] sm:$0xff]
    %v22 = vld [vmem:[%s0 + $0x8] sm:$0xff]
    %v23 = vld [vmem:[%s0 + $0x10] sm:$0xff]
    %v24 = vld [vmem:[%s0 + $0x18] sm:$0xff]
    %v25 = vld [vmem:[%s1] sm:$0xff]
    %v26 = vld [vmem:[%s1 + $0x8] sm:$0xff]
    %v27 = vld [vmem:[%s1 + $0x10] sm:$0xff]
    %v28 = vld [vmem:[%s1 + $0x18] sm:$0xff]
    %v29 = vld [vmem:[%s1 + $0x20] sm:$0xff]
    %v30 = vld [vmem:[%s1 + $0x28] sm:$0xff]
    %v31 = vld [vmem:[%s1 + $0x30] sm:$0xff]
    %v32 = vld [vmem:[%s1 + $0x38] sm:$0xff]
    %v33 = vld [vmem:[%s1 + $0x40] sm:$0xff]
    %v34 = vld [vmem:[%s1 + $0x48] sm:$0xff]
    %v35 = vld [vmem:[%s1 + $0x50] sm:$0xff]
    %v36 = vld [vmem:[%s1 + $0x58] sm:$0xff]
    %v37 = vld [vmem:[%s1 + $0x60] sm:$0xff]
    %v38 = vld [vmem:[%s1 + $0x68] sm:$0xff]
    %v39 = vld [vmem:[%s1 + $0x70] sm:$0xff]
    %v40 = vld [vmem:[%s1 + $0x78] sm:$0xff]
    %v41 = vld [vmem:[%s1 + $0x80] sm:$0xff]
    %v42 = vld [vmem:[%s1 + $0x88] sm:$0xff]
    %v43 = vld [vmem:[%s1 + $0x90] sm:$0xff]
    %v44 = vld [vmem:[%s1 + $0x98] sm:$0xff]
    %v45 = vld [vmem:[%s1 + $0xa0] sm:$0xff]
    %v46 = vld [vmem:[%s1 + $0xa8] sm:$0xff]
    %v47 = vld [vmem:[%s1 + $0xb0] sm:$0xff]
    %v48 = vld [vmem:[%s1 + $0xb8] sm:$0xff]
    %v49 = vld [vmem:[%s1 + $0xc0] sm:$0xff]
    %v50 = vld [vmem:[%s1 + $0xc8] sm:$0xff]
    %v51 = vld [vmem:[%s1 + $0xd0] sm:$0xff]
    %v52 = vld [vmem:[%s1 + $0xd8] sm:$0xff]
    %v53 = vld [vmem:[%s1 + $0xe0] sm:$0xff]
    %v54 = vld [vmem:[%s1 + $0xe8] sm:$0xff]
    %v55 = vld [vmem:[%s1 + $0xf0] sm:$0xff]
    %v56 = vld [vmem:[%s1 + $0xf8] sm:$0xff]
    %v57 = vld [vmem:[%s1 + $0x100] sm:$0xff]
    %v58 = vld [vmem:[%s1 + $0x108] sm:$0xff]
    %v59 = vld [vmem:[%s1 + $0x110] sm:$0xff]
    %v60 = vld [vmem:[%s1 + $0x118] sm:$0xff]
    %v61 = vld [vmem:[%s1 + $0x120] sm:$0xff]
    %v62 = vld [vmem:[%s1 + $0x128] sm:$0xff]
    %v63 = vld [vmem:[%s1 + $0x130] sm:$0xff]
    %v64 = vld [vmem:[%s1 + $0x138] sm:$0xff]
    %v65 = vld [vmem:[%s1 + $0x140] sm:$0xff]
    %v66 = vld [vmem:[%s1 + $0x148] sm:$0xff]
    %v67 = vld [vmem:[%s1 + $0x150] sm:$0xff]
    %v68 = vld [vmem:[%s1 + $0x158] sm:$0xff]
    %v69 = vld [vmem:[%s1 + $0x160] sm:$0xff]
    %v70 = vld [vmem:[%s1 + $0x168] sm:$0xff]
    %v71 = vld [vmem:[%s1 + $0x170] sm:$0xff]
    %v72 = vld [vmem:[%s1 + $0x178] sm:$0xff]
    %v73 = vld [vmem:[%s1 + $0x180] sm:$0xff]
    %v74 = vld [vmem:[%s1 + $0x188] sm:$0xff]
    %v75 = vld [vmem:[%s1 + $0x190] sm:$0xff]
    %v76 = vld [vmem:[%s1 + $0x198] sm:$0xff]
    %v77 = vld [vmem:[%s1 + $0x1a0] sm:$0xff]
    %v78 = vld [vmem:[%s1 + $0x1a8] sm:$0xff]
    %v79 = vld [vmem:[%s1 + $0x1b0] sm:$0xff]
    %v80 = vld [vmem:[%s1 + $0x1b8] sm:$0xff]
    %v81 = vld [vmem:[%s1 + $0x1c0] sm:$0xff]
    %v82 = vld [vmem:[%s1 + $0x1c8] sm:$0xff]
    %v83 = vld [vmem:[%s1 + $0x1d0] sm:$0xff]
    %v84 = vld [vmem:[%s1 + $0x1d8] sm:$0xff]
    %v85 = vld [vmem:[%s1 + $0x1e0] sm:$0xff]
    %v86 = vld [vmem:[%s1 + $0x1e8] sm:$0xff]
    %v87 = vld [vmem:[%s1 + $0x1f0] sm:$0xff]
    %v88 = vld [vmem:[%s1 + $0x1f8] sm:$0xff]
    %v89 = vld [vmem:[%s1 + $0x200] sm:$0xff]
    %v90 = vld [vmem:[%s1 + $0x208] sm:$0xff]
    %v91 = vld [vmem:[%s1 + $0x210] sm:$0xff]
    %v92 = vld [vmem:[%s1 + $0x218] sm:$0xff]
    %v93 = vld [vmem:[%s1 + $0x220] sm:$0xff]
    %v94 = vld [vmem:[%s1 + $0x228] sm:$0xff]
    %v95 = vld [vmem:[%s1 + $0x230] sm:$0xff]
    %v96 = vld [vmem:[%s1 + $0x238] sm:$0xff]
    %v97 = vld [vmem:[%s1 + $0x240] sm:$0xff]
    %v98 = vld [vmem:[%s1 + $0x248] sm:$0xff]
    %v99 = vld [vmem:[%s1 + $0x250] sm:$0xff]
    %v100 = vld [vmem:[%s1 + $0x258] sm:$0xff]
    %v101 = vld [vmem:[%s1 + $0x260] sm:$0xff]
    %v102 = vld [vmem:[%s1 + $0x268] sm:$0xff]
    %v103 = vld [vmem:[%s1 + $0x270] sm:$0xff]
    %v104 = vld [vmem:[%s1 + $0x278] sm:$0xff]
    %v105 = vld [vmem:[%s1 + $0x280] sm:$0xff]
    %v106 = vld [vmem:[%s1 + $0x288] sm:$0xff]
    %v107 = vld [vmem:[%s1 + $0x290] sm:$0xff]
    %v108 = vld [vmem:[%s1 + $0x298] sm:$0xff]
    %v109 = vld [vmem:[%s1 + $0x2a0] sm:$0xff]
    %v110 = vld [vmem:[%s1 + $0x2a8] sm:$0xff]
    %v111 = vld [vmem:[%s1 + $0x2b0] sm:$0xff]
    %v112 = vld [vmem:[%s1 + $0x2b8] sm:$0xff]
    %v113 = vld [vmem:[%s1 + $0x2c0] sm:$0xff]
    %v114 = vld [vmem:[%s1 + $0x2c8] sm:$0xff]
    %v115 = vld [vmem:[%s1 + $0x2d0] sm:$0xff]
    %v116 = vld [vmem:[%s1 + $0x2d8] sm:$0xff]
    %v117 = vld [vmem:[%s1 + $0x2e0] sm:$0xff]
    %v118 = vld [vmem:[%s1 + $0x2e8] sm:$0xff]
    %v119 = vld [vmem:[%s1 + $0x2f0] sm:$0xff]
    %v120 = vld [vmem:[%s1 + $0x2f8] sm:$0xff]
    %v121 = vld [vmem:[%s1 + $0x300] sm:$0xff]
    %v122 = vld [vmem:[%s1 + $0x308] sm:$0xff]
    %v123 = vld [vmem:[%s1 + $0x310] sm:$0xff]
    %v124 = vld [vmem:[%s1 + $0x318] sm:$0xff]
    %v125 = vld [vmem:[%s1 + $0x320] sm:$0xff]
    %v126 = vld [vmem:[%s1 + $0x328] sm:$0xff]
    %v127 = vld [vmem:[%s1 + $0x330] sm:$0xff]
    %v128 = vld [vmem:[%s1 + $0x338] sm:$0xff]
    %v129 = vld [vmem:[%s1 + $0x340] sm:$0xff]
    %v130 = vld [vmem:[%s1 + $0x348] sm:$0xff]
    %v131 = vld [vmem:[%s1 + $0x350] sm:$0xff]
    %v132 = vld [vmem:[%s1 + $0x358] sm:$0xff]
    %v133 = vld [vmem:[%s1 + $0x360] sm:$0xff]
    %v134 = vld [vmem:[%s1 + $0x368] sm:$0xff]
    %v135 = vld [vmem:[%s1 + $0x370] sm:$0xff]
    %v136 = vld [vmem:[%s1 + $0x378] sm:$0xff]
    %v137 = vld [vmem:[%s1 + $0x380] sm:$0xff]
    %v138 = vld [vmem:[%s1 + $0x388] sm:$0xff]
    %v139 = vld [vmem:[%s1 + $0x390] sm:$0xff]
    %v140 = vld [vmem:[%s1 + $0x398] sm:$0xff]
    %v141 = vld [vmem:[%s1 + $0x3a0] sm:$0xff]
    %v142 = vld [vmem:[%s1 + $0x3a8] sm:$0xff]
    %v143 = vld [vmem:[%s1 + $0x3b0] sm:$0xff]
    %v144 = vld [vmem:[%s1 + $0x3b8] sm:$0xff]
    %v145 = vld [vmem:[%s1 + $0x3c0] sm:$0xff]
    %v146 = vld [vmem:[%s1 + $0x3c8] sm:$0xff]
    %v147 = vld [vmem:[%s1 + $0x3d0] sm:$0xff]
    %v148 = vld [vmem:[%s1 + $0x3d8] sm:$0xff]
    %v149 = vld [vmem:[%s1 + $0x3e0] sm:$0xff]
    %v150 = vld [vmem:[%s1 + $0x3e8] sm:$0xff]
    %v151 = vld [vmem:[%s1 + $0x3f0] sm:$0xff]
    %v152 = vld [vmem:[%s1 + $0x3f8] sm:$0xff]
    %v153 = vld [vmem:[%s1 + $0x400] sm:$0xff]
    %v154 = vld [vmem:[%s1 + $0x408] sm:$0xff]
    %v155 = vld [vmem:[%s1 + $0x410] sm:$0xff]
    %v156 = vld [vmem:[%s1 + $0x418] sm:$0xff]
    %v157 = vld [vmem:[%s1 + $0x420] sm:$0xff]
    %v158 = vld [vmem:[%s1 + $0x428] sm:$0xff]
    %v159 = vld [vmem:[%s1 + $0x430] sm:$0xff]
    %v160 = vld [vmem:[%s1 + $0x438] sm:$0xff]
    %v161 = vld [vmem:[%s1 + $0x440] sm:$0xff]
    %v162 = vld [vmem:[%s1 + $0x448] sm:$0xff]
    %v163 = vld [vmem:[%s1 + $0x450] sm:$0xff]
    %v164 = vld [vmem:[%s1 + $0x458] sm:$0xff]
    %v165 = vld [vmem:[%s1 + $0x460] sm:$0xff]
    %v166 = vld [vmem:[%s1 + $0x468] sm:$0xff]
    %v167 = vld [vmem:[%s1 + $0x470] sm:$0xff]
    %v168 = vld [vmem:[%s1 + $0x478] sm:$0xff]
    %v169 = vld [vmem:[%s1 + $0x480] sm:$0xff]
    %v170 = vld [vmem:[%s1 + $0x488] sm:$0xff]
    %v171 = vld [vmem:[%s1 + $0x490] sm:$0xff]
    %v172 = vld [vmem:[%s1 + $0x498] sm:$0xff]
    %v173 = vld [vmem:[%s1 + $0x4a0] sm:$0xff]
    %v174 = vld [vmem:[%s1 + $0x4a8] sm:$0xff]
    %v175 = vld [vmem:[%s1 + $0x4b0] sm:$0xff]
    %v176 = vld [vmem:[%s1 + $0x4b8] sm:$0xff]
    %v177 = vld [vmem:[%s1 + $0x4c0] sm:$0xff]
    %v178 = vld [vmem:[%s1 + $0x4c8] sm:$0xff]
    %v179 = vld [vmem:[%s1 + $0x4d0] sm:$0xff]
    %v180 = vld [vmem:[%s1 + $0x4d8] sm:$0xff]
    %v181 = vld [vmem:[%s1 + $0x4e0] sm:$0xff]
    %v182 = vld [vmem:[%s1 + $0x4e8] sm:$0xff]
    %v183 = vld [vmem:[%s1 + $0x4f0] sm:$0xff]
    %v184 = vld [vmem:[%s1 + $0x4f8] sm:$0xff]
    %v185 = vld [vmem:[%s1 + $0x500] sm:$0xff]
    %v186 = vld [vmem:[%s1 + $0x508] sm:$0xff]
    %v187 = vld [vmem:[%s1 + $0x510] sm:$0xff]
    %v188 = vld [vmem:[%s1 + $0x518] sm:$0xff]
    %v189 = vld [vmem:[%s1 + $0x520] sm:$0xff]
    %v190 = vld [vmem:[%s1 + $0x528] sm:$0xff]
    %v191 = vld [vmem:[%s1 + $0x530] sm:$0xff]
    %v192 = vld [vmem:[%s1 + $0x538] sm:$0xff]
    %v193 = vld [vmem:[%s1 + $0x540] sm:$0xff]
    %v194 = vld [vmem:[%s1 + $0x548] sm:$0xff]
    %v195 = vld [vmem:[%s1 + $0x550] sm:$0xff]
    %v196 = vld [vmem:[%s1 + $0x558] sm:$0xff]
    %v197 = vld [vmem:[%s1 + $0x560] sm:$0xff]
    %v198 = vld [vmem:[%s1 + $0x568] sm:$0xff]
    %v199 = vld [vmem:[%s1 + $0x570] sm:$0xff]
    %v200 = vld [vmem:[%s1 + $0x578] sm:$0xff]
    %v201 = vld [vmem:[%s1 + $0x580] sm:$0xff]
    %v202 = vld [vmem:[%s1 + $0x588] sm:$0xff]
    %v203 = vld [vmem:[%s1 + $0x590] sm:$0xff]
    %v204 = vld [vmem:[%s1 + $0x598] sm:$0xff]
    %v205 = vld [vmem:[%s1 + $0x5a0] sm:$0xff]
    %v206 = vld [vmem:[%s1 + $0x5a8] sm:$0xff]
    %v207 = vld [vmem:[%s1 + $0x5b0] sm:$0xff]
    %v208 = vld [vmem:[%s1 + $0x5b8] sm:$0xff]
    %v209 = vld [vmem:[%s1 + $0x5c0] sm:$0xff]
    %v210 = vld [vmem:[%s1 + $0x5c8] sm:$0xff]
    %v211 = vld [vmem:[%s1 + $0x5d0] sm:$0xff]
    %v212 = vld [vmem:[%s1 + $0x5d8] sm:$0xff]
    %v213 = vld [vmem:[%s1 + $0x5e0] sm:$0xff]
    %v214 = vld [vmem:[%s1 + $0x5e8] sm:$0xff]
    %v215 = vld [vmem:[%s1 + $0x5f0] sm:$0xff]
    %v216 = vld [vmem:[%s1 + $0x5f8] sm:$0xff]
    %v217 = vld [vmem:[%s1 + $0x600] sm:$0xff]
    %v218 = vld [vmem:[%s1 + $0x608] sm:$0xff]
    %v219 = vld [vmem:[%s1 + $0x610] sm:$0xff]
    %v220 = vld [vmem:[%s1 + $0x618] sm:$0xff]
    %v221 = vld [vmem:[%s1 + $0x620] sm:$0xff]
    %v222 = vld [vmem:[%s1 + $0x628] sm:$0xff]
    %v223 = vld [vmem:[%s1 + $0x630] sm:$0xff]
    %v224 = vld [vmem:[%s1 + $0x638] sm:$0xff]
    %v225 = vld [vmem:[%s1 + $0x640] sm:$0xff]
    %v226 = vld [vmem:[%s1 + $0x648] sm:$0xff]
    %v227 = vld [vmem:[%s1 + $0x650] sm:$0xff]
    %v228 = vld [vmem:[%s1 + $0x658] sm:$0xff]
    %v229 = vld [vmem:[%s1 + $0x660] sm:$0xff]
    %v230 = vld [vmem:[%s1 + $0x668] sm:$0xff]
    %v231 = vld [vmem:[%s1 + $0x670] sm:$0xff]
    %v232 = vld [vmem:[%s1 + $0x678] sm:$0xff]
    %v233 = vld [vmem:[%s1 + $0x680] sm:$0xff]
    %v234 = vld [vmem:[%s1 + $0x688] sm:$0xff]
    %v235 = vld [vmem:[%s1 + $0x690] sm:$0xff]
    %v236 = vld [vmem:[%s1 + $0x698] sm:$0xff]
    %v237 = vld [vmem:[%s1 + $0x6a0] sm:$0xff]
    %v238 = vld [vmem:[%s1 + $0x6a8] sm:$0xff]
    %v239 = vld [vmem:[%s1 + $0x6b0] sm:$0xff]
    %v240 = vld [vmem:[%s1 + $0x6b8] sm:$0xff]
    %v241 = vld [vmem:[%s1 + $0x6c0] sm:$0xff]
    %v242 = vld [vmem:[%s1 + $0x6c8] sm:$0xff]
    %v243 = vld [vmem:[%s1 + $0x6d0] sm:$0xff]
    %v244 = vld [vmem:[%s1 + $0x6d8] sm:$0xff]
    %v245 = vld [vmem:[%s1 + $0x6e0] sm:$0xff]
    %v246 = vld [vmem:[%s1 + $0x6e8] sm:$0xff]
    %v247 = vld [vmem:[%s1 + $0x6f0] sm:$0xff]
    %v248 = vld [vmem:[%s1 + $0x6f8] sm:$0xff]
    %v249 = vld [vmem:[%s1 + $0x700] sm:$0xff]
    %v250 = vld [vmem:[%s1 + $0x708] sm:$0xff]
    %v251 = vld [vmem:[%s1 + $0x710] sm:$0xff]
    %v252 = vld [vmem:[%s1 + $0x718] sm:$0xff]
    %v253 = vld [vmem:[%s1 + $0x720] sm:$0xff]
    %v254 = vld [vmem:[%s1 + $0x728] sm:$0xff]
    %v255 = vld [vmem:[%s1 + $0x730] sm:$0xff]
    %v256 = vld [vmem:[%s1 + $0x738] sm:$0xff]
    %v257 = vld [vmem:[%s1 + $0x740] sm:$0xff]
    %v258 = vld [vmem:[%s1 + $0x748] sm:$0xff]
    %v259 = vld [vmem:[%s1 + $0x750] sm:$0xff]
    %v260 = vld [vmem:[%s1 + $0x758] sm:$0xff]
    %v261 = vld [vmem:[%s1 + $0x760] sm:$0xff]
    %v262 = vld [vmem:[%s1 + $0x768] sm:$0xff]
    %v263 = vld [vmem:[%s1 + $0x770] sm:$0xff]
    %v264 = vld [vmem:[%s1 + $0x778] sm:$0xff]
    %v265 = vld [vmem:[%s1 + $0x780] sm:$0xff]
    %v266 = vld [vmem:[%s1 + $0x788] sm:$0xff]
    %v267 = vld [vmem:[%s1 + $0x790] sm:$0xff]
    %v268 = vld [vmem:[%s1 + $0x798] sm:$0xff]
    %v269 = vld [vmem:[%s1 + $0x7a0] sm:$0xff]
    %v270 = vld [vmem:[%s1 + $0x7a8] sm:$0xff]
    %v271 = vld [vmem:[%s1 + $0x7b0] sm:$0xff]
    %v272 = vld [vmem:[%s1 + $0x7b8] sm:$0xff]
    %v273 = vld [vmem:[%s1 + $0x7c0] sm:$0xff]
    %v274 = vld [vmem:[%s1 + $0x7c8] sm:$0xff]
    %v275 = vld [vmem:[%s1 + $0x7d0] sm:$0xff]
    %v276 = vld [vmem:[%s1 + $0x7d8] sm:$0xff]
    %v277 = vld [vmem:[%s1 + $0x7e0] sm:$0xff]
    %v278 = vld [vmem:[%s1 + $0x7e8] sm:$0xff]
    %v279 = vld [vmem:[%s1 + $0x7f0] sm:$0xff]
    %v280 = vld [vmem:[%s1 + $0x7f8] sm:$0xff]
    %v281 = vld [vmem:[%s1 + $0x800] sm:$0xff]
    %v282 = vld [vmem:[%s1 + $0x808] sm:$0xff]
    %v283 = vld [vmem:[%s1 + $0x810] sm:$0xff]
    %v284 = vld [vmem:[%s1 + $0x818] sm:$0xff]
    %v285 = vld [vmem:[%s1 + $0x820] sm:$0xff]
    %v286 = vld [vmem:[%s1 + $0x828] sm:$0xff]
    %v287 = vld [vmem:[%s1 + $0x830] sm:$0xff]
    %v288 = vld [vmem:[%s1 + $0x838] sm:$0xff]
    %v289 = vld [vmem:[%s1 + $0x840] sm:$0xff]
    %v290 = vld [vmem:[%s1 + $0x848] sm:$0xff]
    %v291 = vld [vmem:[%s1 + $0x850] sm:$0xff]
    %v292 = vld [vmem:[%s1 + $0x858] sm:$0xff]
    %v293 = vld [vmem:[%s1 + $0x860] sm:$0xff]
    %v294 = vld [vmem:[%s1 + $0x868] sm:$0xff]
    %v295 = vld [vmem:[%s1 + $0x870] sm:$0xff]
    %v296 = vld [vmem:[%s1 + $0x878] sm:$0xff]
    %v297 = vld [vmem:[%s1 + $0x880] sm:$0xff]
    %v298 = vld [vmem:[%s1 + $0x888] sm:$0xff]
    %v299 = vld [vmem:[%s1 + $0x890] sm:$0xff]
    %v300 = vld [vmem:[%s1 + $0x898] sm:$0xff]
    %v301 = vld [vmem:[%s1 + $0x8a0] sm:$0xff]
    %v302 = vld [vmem:[%s1 + $0x8a8] sm:$0xff]
    %v303 = vld [vmem:[%s1 + $0x8b0] sm:$0xff]
    %v304 = vld [vmem:[%s1 + $0x8b8] sm:$0xff]
    %v305 = vld [vmem:[%s1 + $0x8c0] sm:$0xff]
    %v306 = vld [vmem:[%s1 + $0x8c8] sm:$0xff]
    %v307 = vld [vmem:[%s1 + $0x8d0] sm:$0xff]
    %v308 = vld [vmem:[%s1 + $0x8d8] sm:$0xff]
    %v309 = vld [vmem:[%s1 + $0x8e0] sm:$0xff]
    %v310 = vld [vmem:[%s1 + $0x8e8] sm:$0xff]
    %v311 = vld [vmem:[%s1 + $0x8f0] sm:$0xff]
    %v312 = vld [vmem:[%s1 + $0x8f8] sm:$0xff]
    %v313 = vld [vmem:[%s1 + $0x900] sm:$0xff]
    %v314 = vld [vmem:[%s1 + $0x908] sm:$0xff]
    %v315 = vld [vmem:[%s1 + $0x910] sm:$0xff]
    %v316 = vld [vmem:[%s1 + $0x918] sm:$0xff]
    %v317 = vld [vmem:[%s1 + $0x920] sm:$0xff]
    %v318 = vld [vmem:[%s1 + $0x928] sm:$0xff]
    %v319 = vld [vmem:[%s1 + $0x930] sm:$0xff]
    %v320 = vld [vmem:[%s1 + $0x938] sm:$0xff]
    %v321 = vld [vmem:[%s1 + $0x940] sm:$0xff]
    %v322 = vld [vmem:[%s1 + $0x948] sm:$0xff]
    %v323 = vld [vmem:[%s1 + $0x950] sm:$0xff]
    %v324 = vld [vmem:[%s1 + $0x958] sm:$0xff]
    %v325 = vld [vmem:[%s1 + $0x960] sm:$0xff]
    %v326 = vld [vmem:[%s1 + $0x968] sm:$0xff]
    %v327 = vld [vmem:[%s1 + $0x970] sm:$0xff]
    %v328 = vld [vmem:[%s1 + $0x978] sm:$0xff]
    %v329 = vld [vmem:[%s1 + $0x980] sm:$0xff]
    %v330 = vld [vmem:[%s1 + $0x988] sm:$0xff]
    %v331 = vld [vmem:[%s1 + $0x990] sm:$0xff]
    %v332 = vld [vmem:[%s1 + $0x998] sm:$0xff]
    %v333 = vld [vmem:[%s1 + $0x9a0] sm:$0xff]
    %v334 = vld [vmem:[%s1 + $0x9a8] sm:$0xff]
    %v335 = vld [vmem:[%s1 + $0x9b0] sm:$0xff]
    %v336 = vld [vmem:[%s1 + $0x9b8] sm:$0xff]
    %v337 = vld [vmem:[%s1 + $0x9c0] sm:$0xff]
    %v338 = vld [vmem:[%s1 + $0x9c8] sm:$0xff]
    %v339 = vld [vmem:[%s1 + $0x9d0] sm:$0xff]
    %v340 = vld [vmem:[%s1 + $0x9d8] sm:$0xff]
    %v341 = vld [vmem:[%s1 + $0x9e0] sm:$0xff]
    %v342 = vld [vmem:[%s1 + $0x9e8] sm:$0xff]
    %v343 = vld [vmem:[%s1 + $0x9f0] sm:$0xff]
    %v344 = vld [vmem:[%s1 + $0x9f8] sm:$0xff]
    %v345 = vld [vmem:[%s1 + $0xa00] sm:$0xff]
    %v346 = vld [vmem:[%s1 + $0xa08] sm:$0xff]
    %v347 = vld [vmem:[%s1 + $0xa10] sm:$0xff]
    %v348 = vld [vmem:[%s1 + $0xa18] sm:$0xff]
    %v349 = vld [vmem:[%s1 + $0xa20] sm:$0xff]
    %v350 = vld [vmem:[%s1 + $0xa28] sm:$0xff]
    %v351 = vld [vmem:[%s1 + $0xa30] sm:$0xff]
    %v352 = vld [vmem:[%s1 + $0xa38] sm:$0xff]
    %v353 = vld [vmem:[%s1 + $0xa40] sm:$0xff]
    %v354 = vld [vmem:[%s1 + $0xa48] sm:$0xff]
    %v355 = vld [vmem:[%s1 + $0xa50] sm:$0xff]
    %v356 = vld [vmem:[%s1 + $0xa58] sm:$0xff]
    %v357 = vld [vmem:[%s1 + $0xa60] sm:$0xff]
    %v358 = vld [vmem:[%s1 + $0xa68] sm:$0xff]
    %v359 = vld [vmem:[%s1 + $0xa70] sm:$0xff]
    %v360 = vld [vmem:[%s1 + $0xa78] sm:$0xff]
    %v361 = vld [vmem:[%s1 + $0xa80] sm:$0xff]
    %v362 = vld [vmem:[%s1 + $0xa88] sm:$0xff]
    %v363 = vld [vmem:[%s1 + $0xa90] sm:$0xff]
    %v364 = vld [vmem:[%s1 + $0xa98] sm:$0xff]
    %v365 = vld [vmem:[%s1 + $0xaa0] sm:$0xff]
    %v366 = vld [vmem:[%s1 + $0xaa8] sm:$0xff]
    %v367 = vld [vmem:[%s1 + $0xab0] sm:$0xff]
    %v368 = vld [vmem:[%s1 + $0xab8] sm:$0xff]
    %v369 = vld [vmem:[%s1 + $0xac0] sm:$0xff]
    %v370 = vld [vmem:[%s1 + $0xac8] sm:$0xff]
    %v371 = vld [vmem:[%s1 + $0xad0] sm:$0xff]
    %v372 = vld [vmem:[%s1 + $0xad8] sm:$0xff]
    %v373 = vld [vmem:[%s1 + $0xae0] sm:$0xff]
    %v374 = vld [vmem:[%s1 + $0xae8] sm:$0xff]
    %v375 = vld [vmem:[%s1 + $0xaf0] sm:$0xff]
    %v376 = vld [vmem:[%s1 + $0xaf8] sm:$0xff]
    %v377 = vld [vmem:[%s1 + $0xb00] sm:$0xff]
    %v378 = vld [vmem:[%s1 + $0xb08] sm:$0xff]
    %v379 = vld [vmem:[%s1 + $0xb10] sm:$0xff]
    %v380 = vld [vmem:[%s1 + $0xb18] sm:$0xff]
    %v381 = vld [vmem:[%s1 + $0xb20] sm:$0xff]
    %v382 = vld [vmem:[%s1 + $0xb28] sm:$0xff]
    %v383 = vld [vmem:[%s1 + $0xb30] sm:$0xff]
    %v384 = vld [vmem:[%s1 + $0xb38] sm:$0xff]
    %v385 = vld [vmem:[%s1 + $0xb40] sm:$0xff]
    %v386 = vld [vmem:[%s1 + $0xb48] sm:$0xff]
    %v387 = vld [vmem:[%s1 + $0xb50] sm:$0xff]
    %v388 = vld [vmem:[%s1 + $0xb58] sm:$0xff]
    %v389 = vld [vmem:[%s1 + $0xb60] sm:$0xff]
    %v390 = vld [vmem:[%s1 + $0xb68] sm:$0xff]
    %v391 = vld [vmem:[%s1 + $0xb70] sm:$0xff]
    %v392 = vld [vmem:[%s1 + $0xb78] sm:$0xff]
    %v393 = vld [vmem:[%s1 + $0xb80] sm:$0xff]
    %v394 = vld [vmem:[%s1 + $0xb88] sm:$0xff]
    %v395 = vld [vmem:[%s1 + $0xb90] sm:$0xff]
    %v396 = vld [vmem:[%s1 + $0xb98] sm:$0xff]
    %v397 = vld [vmem:[%s1 + $0xba0] sm:$0xff]
    %v398 = vld [vmem:[%s1 + $0xba8] sm:$0xff]
    %v399 = vld [vmem:[%s1 + $0xbb0] sm:$0xff]
    %v400 = vld [vmem:[%s1 + $0xbb8] sm:$0xff]
    %v401 = vld [vmem:[%s1 + $0xbc0] sm:$0xff]
    %v402 = vld [vmem:[%s1 + $0xbc8] sm:$0xff]
    %v403 = vld [vmem:[%s1 + $0xbd0] sm:$0xff]
    %v404 = vld [vmem:[%s1 + $0xbd8] sm:$0xff]
    %v405 = vld [vmem:[%s1 + $0xbe0] sm:$0xff]
    %v406 = vld [vmem:[%s1 + $0xbe8] sm:$0xff]
    %v407 = vld [vmem:[%s1 + $0xbf0] sm:$0xff]
    %v408 = vld [vmem:[%s1 + $0xbf8] sm:$0xff]
    %v409 = vld [vmem:[%s1 + $0xc00] sm:$0xff]
    %v410 = vld [vmem:[%s1 + $0xc08] sm:$0xff]
    %v411 = vld [vmem:[%s1 + $0xc10] sm:$0xff]
    %v412 = vld [vmem:[%s1 + $0xc18] sm:$0xff]
    %v413 = vld [vmem:[%s1 + $0xc20] sm:$0xff]
    %v414 = vld [vmem:[%s1 + $0xc28] sm:$0xff]
    %v415 = vld [vmem:[%s1 + $0xc30] sm:$0xff]
    %v416 = vld [vmem:[%s1 + $0xc38] sm:$0xff]
    %v417 = vld [vmem:[%s1 + $0xc40] sm:$0xff]
    %v418 = vld [vmem:[%s1 + $0xc48] sm:$0xff]
    %v419 = vld [vmem:[%s1 + $0xc50] sm:$0xff]
    %v420 = vld [vmem:[%s1 + $0xc58] sm:$0xff]
    %v421 = vld [vmem:[%s1 + $0xc60] sm:$0xff]
    %v422 = vld [vmem:[%s1 + $0xc68] sm:$0xff]
    %v423 = vld [vmem:[%s1 + $0xc70] sm:$0xff]
    %v424 = vld [vmem:[%s1 + $0xc78] sm:$0xff]
    %v425 = vld [vmem:[%s1 + $0xc80] sm:$0xff]
    %v426 = vld [vmem:[%s1 + $0xc88] sm:$0xff]
    %v427 = vld [vmem:[%s1 + $0xc90] sm:$0xff]
    %v428 = vld [vmem:[%s1 + $0xc98] sm:$0xff]
    %v429 = vld [vmem:[%s1 + $0xca0] sm:$0xff]
    %v430 = vld [vmem:[%s1 + $0xca8] sm:$0xff]
    %v431 = vld [vmem:[%s1 + $0xcb0] sm:$0xff]
    %v432 = vld [vmem:[%s1 + $0xcb8] sm:$0xff]
    %v433 = vld [vmem:[%s1 + $0xcc0] sm:$0xff]
    %v434 = vld [vmem:[%s1 + $0xcc8] sm:$0xff]
    %v435 = vld [vmem:[%s1 + $0xcd0] sm:$0xff]
    %v436 = vld [vmem:[%s1 + $0xcd8] sm:$0xff]
    %v437 = vld [vmem:[%s1 + $0xce0] sm:$0xff]
    %v438 = vld [vmem:[%s1 + $0xce8] sm:$0xff]
    %v439 = vld [vmem:[%s1 + $0xcf0] sm:$0xff]
    %v440 = vld [vmem:[%s1 + $0xcf8] sm:$0xff]
    %v441 = vld [vmem:[%s1 + $0xd00] sm:$0xff]
    %v442 = vld [vmem:[%s1 + $0xd08] sm:$0xff]
    %v443 = vld [vmem:[%s1 + $0xd10] sm:$0xff]
    %v444 = vld [vmem:[%s1 + $0xd18] sm:$0xff]
    %v445 = vld [vmem:[%s1 + $0xd20] sm:$0xff]
    %v446 = vld [vmem:[%s1 + $0xd28] sm:$0xff]
    %v447 = vld [vmem:[%s1 + $0xd30] sm:$0xff]
    %v448 = vld [vmem:[%s1 + $0xd38] sm:$0xff]
    %v449 = vld [vmem:[%s1 + $0xd40] sm:$0xff]
    %v450 = vld [vmem:[%s1 + $0xd48] sm:$0xff]
    %v451 = vld [vmem:[%s1 + $0xd50] sm:$0xff]
    %v452 = vld [vmem:[%s1 + $0xd58] sm:$0xff]
    %v453 = vld [vmem:[%s1 + $0xd60] sm:$0xff]
    %v454 = vld [vmem:[%s1 + $0xd68] sm:$0xff]
    %v455 = vld [vmem:[%s1 + $0xd70] sm:$0xff]
    %v456 = vld [vmem:[%s1 + $0xd78] sm:$0xff]
    %v457 = vld [vmem:[%s1 + $0xd80] sm:$0xff]
    %v458 = vld [vmem:[%s1 + $0xd88] sm:$0xff]
    %v459 = vld [vmem:[%s1 + $0xd90] sm:$0xff]
    %v460 = vld [vmem:[%s1 + $0xd98] sm:$0xff]
    %v461 = vld [vmem:[%s1 + $0xda0] sm:$0xff]
    %v462 = vld [vmem:[%s1 + $0xda8] sm:$0xff]
    %v463 = vld [vmem:[%s1 + $0xdb0] sm:$0xff]
    %v464 = vld [vmem:[%s1 + $0xdb8] sm:$0xff]
    %v465 = vld [vmem:[%s1 + $0xdc0] sm:$0xff]
    %v466 = vld [vmem:[%s1 + $0xdc8] sm:$0xff]
    %v467 = vld [vmem:[%s1 + $0xdd0] sm:$0xff]
    %v468 = vld [vmem:[%s1 + $0xdd8] sm:$0xff]
    %v469 = vld [vmem:[%s1 + $0xde0] sm:$0xff]
    %v470 = vld [vmem:[%s1 + $0xde8] sm:$0xff]
    %v471 = vld [vmem:[%s1 + $0xdf0] sm:$0xff]
    %v472 = vld [vmem:[%s1 + $0xdf8] sm:$0xff]
    %v473 = vld [vmem:[%s1 + $0xe00] sm:$0xff]
    %v474 = vld [vmem:[%s1 + $0xe08] sm:$0xff]
    %v475 = vld [vmem:[%s1 + $0xe10] sm:$0xff]
    %v476 = vld [vmem:[%s1 + $0xe18] sm:$0xff]
    %v477 = vld [vmem:[%s1 + $0xe20] sm:$0xff]
    %v478 = vld [vmem:[%s1 + $0xe28] sm:$0xff]
    %v479 = vld [vmem:[%s1 + $0xe30] sm:$0xff]
    %v480 = vld [vmem:[%s1 + $0xe38] sm:$0xff]
    %v481 = vld [vmem:[%s1 + $0xe40] sm:$0xff]
    %v482 = vld [vmem:[%s1 + $0xe48] sm:$0xff]
    %v483 = vld [vmem:[%s1 + $0xe50] sm:$0xff]
    %v484 = vld [vmem:[%s1 + $0xe58] sm:$0xff]
    %v485 = vld [vmem:[%s1 + $0xe60] sm:$0xff]
    %v486 = vld [vmem:[%s1 + $0xe68] sm:$0xff]
    %v487 = vld [vmem:[%s1 + $0xe70] sm:$0xff]
    %v488 = vld [vmem:[%s1 + $0xe78] sm:$0xff]
    %v489 = vld [vmem:[%s1 + $0xe80] sm:$0xff]
    %v490 = vld [vmem:[%s1 + $0xe88] sm:$0xff]
    %v491 = vld [vmem:[%s1 + $0xe90] sm:$0xff]
    %v492 = vld [vmem:[%s1 + $0xe98] sm:$0xff]
    %v493 = vld [vmem:[%s1 + $0xea0] sm:$0xff]
    %v494 = vld [vmem:[%s1 + $0xea8] sm:$0xff]
    %v495 = vld [vmem:[%s1 + $0xeb0] sm:$0xff]
    %v496 = vld [vmem:[%s1 + $0xeb8] sm:$0xff]
    %v497 = vld [vmem:[%s1 + $0xec0] sm:$0xff]
    %v498 = vld [vmem:[%s1 + $0xec8] sm:$0xff]
    %v499 = vld [vmem:[%s1 + $0xed0] sm:$0xff]
    %v500 = vld [vmem:[%s1 + $0xed8] sm:$0xff]
    %v501 = vld [vmem:[%s1 + $0xee0] sm:$0xff]
    %v502 = vld [vmem:[%s1 + $0xee8] sm:$0xff]
    %v503 = vld [vmem:[%s1 + $0xef0] sm:$0xff]
    %v504 = vld [vmem:[%s1 + $0xef8] sm:$0xff]
    %v505 = vld [vmem:[%s1 + $0xf00] sm:$0xff]
    %v506 = vld [vmem:[%s1 + $0xf08] sm:$0xff]
    %v507 = vld [vmem:[%s1 + $0xf10] sm:$0xff]
    %v508 = vld [vmem:[%s1 + $0xf18] sm:$0xff]
    %v509 = vld [vmem:[%s1 + $0xf20] sm:$0xff]
    %v510 = vld [vmem:[%s1 + $0xf28] sm:$0xff]
    %v511 = vld [vmem:[%s1 + $0xf30] sm:$0xff]
    %v512 = vld [vmem:[%s1 + $0xf38] sm:$0xff]
    %v513 = vld [vmem:[%s1 + $0xf40] sm:$0xff]
    %v514 = vld [vmem:[%s1 + $0xf48] sm:$0xff]
    %v515 = vld [vmem:[%s1 + $0xf50] sm:$0xff]
    %v516 = vld [vmem:[%s1 + $0xf58] sm:$0xff]
    %v517 = vld [vmem:[%s1 + $0xf60] sm:$0xff]
    %v518 = vld [vmem:[%s1 + $0xf68] sm:$0xff]
    %v519 = vld [vmem:[%s1 + $0xf70] sm:$0xff]
    %v520 = vld [vmem:[%s1 + $0xf78] sm:$0xff]
    %v521 = vld [vmem:[%s1 + $0xf80] sm:$0xff]
    %v522 = vld [vmem:[%s1 + $0xf88] sm:$0xff]
    %v523 = vld [vmem:[%s1 + $0xf90] sm:$0xff]
    %v524 = vld [vmem:[%s1 + $0xf98] sm:$0xff]
    %v525 = vld [vmem:[%s1 + $0xfa0] sm:$0xff]
    %v526 = vld [vmem:[%s1 + $0xfa8] sm:$0xff]
    %v527 = vld [vmem:[%s1 + $0xfb0] sm:$0xff]
    %v528 = vld [vmem:[%s1 + $0xfb8] sm:$0xff]
    %v529 = vld [vmem:[%s1 + $0xfc0] sm:$0xff]
    %v530 = vld [vmem:[%s1 + $0xfc8] sm:$0xff]
    %v531 = vld [vmem:[%s1 + $0xfd0] sm:$0xff]
    %v532 = vld [vmem:[%s1 + $0xfd8] sm:$0xff]
    %v533 = vld [vmem:[%s1 + $0xfe0] sm:$0xff]
    %v534 = vld [vmem:[%s1 + $0xfe8] sm:$0xff]
    %v535 = vld [vmem:[%s1 + $0xff0] sm:$0xff]
    %v536 = vld [vmem:[%s1 + $0xff8] sm:$0xff]
    %v537 = vld [vmem:[%s2] sm:$0xff]
    %v538 = vld [vmem:[%s2 + $0x8] sm:$0xff]
    %v541 = vperm.slane %v537, 0
    %v542 = vperm.slane %v537, 1
    %v543 = vperm.slane %v537, 2
    %v544 = vperm.slane %v537, 3
    %v545 = vperm.slane %v537, 4
    %v546 = vperm.slane %v537, 5
    %v547 = vperm.slane %v537, 6
    %v548 = vperm.slane %v537, 7
    %v549 = vperm.slane %v538, 0
    %v550 = vperm.slane %v538, 1
    %v551 = vperm.slane %v538, 2
    %v552 = vperm.slane %v538, 3
    %v553 = vperm.slane %v538, 4
    %v554 = vperm.slane %v538, 5
    %v555 = vperm.slane %v538, 6
    %v556 = vperm.slane %v538, 7
    %v577 = vunpack.c.l.b16 %v21
    %v578 = vunpack.c.h.b16 %v21
    %v579 = vunpack.c.l.b16 %v22
    %v580 = vunpack.c.h.b16 %v22
    %v581 = vunpack.c.l.b16 %v23
    %v582 = vunpack.c.h.b16 %v23
    %v583 = vunpack.c.l.b16 %v24
    %v584 = vunpack.c.h.b16 %v24
    %v585 = vpack.c.b16 %v581, %v577
    %v586 = vpack.c.b16 %v582, %v578
    %v587 = vpack.c.b16 %v583, %v579
    %v588 = vpack.c.b16 %v584, %v580
    %v1105 = vunpack.c.l.b16 %v25
    %v1106 = vunpack.c.h.b16 %v25
    %v1107 = vunpack.c.l.b16 %v26
    %v1108 = vunpack.c.h.b16 %v26
    %v1109 = vunpack.c.l.b16 %v27
    %v1110 = vunpack.c.h.b16 %v27
    %v1111 = vunpack.c.l.b16 %v28
    %v1112 = vunpack.c.h.b16 %v28
    %v1113 = vunpack.c.l.b16 %v29
    %v1114 = vunpack.c.h.b16 %v29
    %v1115 = vunpack.c.l.b16 %v30
    %v1116 = vunpack.c.h.b16 %v30
    %v1117 = vunpack.c.l.b16 %v31
    %v1118 = vunpack.c.h.b16 %v31
    %v1119 = vunpack.c.l.b16 %v32
    %v1120 = vunpack.c.h.b16 %v32
    %v1121 = vunpack.c.l.b16 %v33
    %v1122 = vunpack.c.h.b16 %v33
    %v1123 = vunpack.c.l.b16 %v34
    %v1124 = vunpack.c.h.b16 %v34
    %v1125 = vunpack.c.l.b16 %v35
    %v1126 = vunpack.c.h.b16 %v35
    %v1127 = vunpack.c.l.b16 %v36
    %v1128 = vunpack.c.h.b16 %v36
    %v1129 = vunpack.c.l.b16 %v37
    %v1130 = vunpack.c.h.b16 %v37
    %v1131 = vunpack.c.l.b16 %v38
    %v1132 = vunpack.c.h.b16 %v38
    %v1133 = vunpack.c.l.b16 %v39
    %v1134 = vunpack.c.h.b16 %v39
    %v1135 = vunpack.c.l.b16 %v40
    %v1136 = vunpack.c.h.b16 %v40
    %v1137 = vunpack.c.l.b16 %v41
    %v1138 = vunpack.c.h.b16 %v41
    %v1139 = vunpack.c.l.b16 %v42
    %v1140 = vunpack.c.h.b16 %v42
    %v1141 = vunpack.c.l.b16 %v43
    %v1142 = vunpack.c.h.b16 %v43
    %v1143 = vunpack.c.l.b16 %v44
    %v1144 = vunpack.c.h.b16 %v44
    %v1145 = vunpack.c.l.b16 %v45
    %v1146 = vunpack.c.h.b16 %v45
    %v1147 = vunpack.c.l.b16 %v46
    %v1148 = vunpack.c.h.b16 %v46
    %v1149 = vunpack.c.l.b16 %v47
    %v1150 = vunpack.c.h.b16 %v47
    %v1151 = vunpack.c.l.b16 %v48
    %v1152 = vunpack.c.h.b16 %v48
    %v1153 = vunpack.c.l.b16 %v49
    %v1154 = vunpack.c.h.b16 %v49
    %v1155 = vunpack.c.l.b16 %v50
    %v1156 = vunpack.c.h.b16 %v50
    %v1157 = vunpack.c.l.b16 %v51
    %v1158 = vunpack.c.h.b16 %v51
    %v1159 = vunpack.c.l.b16 %v52
    %v1160 = vunpack.c.h.b16 %v52
    %v1161 = vunpack.c.l.b16 %v53
    %v1162 = vunpack.c.h.b16 %v53
    %v1163 = vunpack.c.l.b16 %v54
    %v1164 = vunpack.c.h.b16 %v54
    %v1165 = vunpack.c.l.b16 %v55
    %v1166 = vunpack.c.h.b16 %v55
    %v1167 = vunpack.c.l.b16 %v56
    %v1168 = vunpack.c.h.b16 %v56
    %v1169 = vunpack.c.l.b16 %v57
    %v1170 = vunpack.c.h.b16 %v57
    %v1171 = vunpack.c.l.b16 %v58
    %v1172 = vunpack.c.h.b16 %v58
    %v1173 = vunpack.c.l.b16 %v59
    %v1174 = vunpack.c.h.b16 %v59
    %v1175 = vunpack.c.l.b16 %v60
    %v1176 = vunpack.c.h.b16 %v60
    %v1177 = vunpack.c.l.b16 %v61
    %v1178 = vunpack.c.h.b16 %v61
    %v1179 = vunpack.c.l.b16 %v62
    %v1180 = vunpack.c.h.b16 %v62
    %v1181 = vunpack.c.l.b16 %v63
    %v1182 = vunpack.c.h.b16 %v63
    %v1183 = vunpack.c.l.b16 %v64
    %v1184 = vunpack.c.h.b16 %v64
    %v1185 = vunpack.c.l.b16 %v65
    %v1186 = vunpack.c.h.b16 %v65
    %v1187 = vunpack.c.l.b16 %v66
    %v1188 = vunpack.c.h.b16 %v66
    %v1189 = vunpack.c.l.b16 %v67
    %v1190 = vunpack.c.h.b16 %v67
    %v1191 = vunpack.c.l.b16 %v68
    %v1192 = vunpack.c.h.b16 %v68
    %v1193 = vunpack.c.l.b16 %v69
    %v1194 = vunpack.c.h.b16 %v69
    %v1195 = vunpack.c.l.b16 %v70
    %v1196 = vunpack.c.h.b16 %v70
    %v1197 = vunpack.c.l.b16 %v71
    %v1198 = vunpack.c.h.b16 %v71
    %v1199 = vunpack.c.l.b16 %v72
    %v1200 = vunpack.c.h.b16 %v72
    %v1201 = vunpack.c.l.b16 %v73
    %v1202 = vunpack.c.h.b16 %v73
    %v1203 = vunpack.c.l.b16 %v74
    %v1204 = vunpack.c.h.b16 %v74
    %v1205 = vunpack.c.l.b16 %v75
    %v1206 = vunpack.c.h.b16 %v75
    %v1207 = vunpack.c.l.b16 %v76
    %v1208 = vunpack.c.h.b16 %v76
    %v1209 = vunpack.c.l.b16 %v77
    %v1210 = vunpack.c.h.b16 %v77
    %v1211 = vunpack.c.l.b16 %v78
    %v1212 = vunpack.c.h.b16 %v78
    %v1213 = vunpack.c.l.b16 %v79
    %v1214 = vunpack.c.h.b16 %v79
    %v1215 = vunpack.c.l.b16 %v80
    %v1216 = vunpack.c.h.b16 %v80
    %v1217 = vunpack.c.l.b16 %v81
    %v1218 = vunpack.c.h.b16 %v81
    %v1219 = vunpack.c.l.b16 %v82
    %v1220 = vunpack.c.h.b16 %v82
    %v1221 = vunpack.c.l.b16 %v83
    %v1222 = vunpack.c.h.b16 %v83
    %v1223 = vunpack.c.l.b16 %v84
    %v1224 = vunpack.c.h.b16 %v84
    %v1225 = vunpack.c.l.b16 %v85
    %v1226 = vunpack.c.h.b16 %v85
    %v1227 = vunpack.c.l.b16 %v86
    %v1228 = vunpack.c.h.b16 %v86
    %v1229 = vunpack.c.l.b16 %v87
    %v1230 = vunpack.c.h.b16 %v87
    %v1231 = vunpack.c.l.b16 %v88
    %v1232 = vunpack.c.h.b16 %v88
    %v1233 = vunpack.c.l.b16 %v89
    %v1234 = vunpack.c.h.b16 %v89
    %v1235 = vunpack.c.l.b16 %v90
    %v1236 = vunpack.c.h.b16 %v90
    %v1237 = vunpack.c.l.b16 %v91
    %v1238 = vunpack.c.h.b16 %v91
    %v1239 = vunpack.c.l.b16 %v92
    %v1240 = vunpack.c.h.b16 %v92
    %v1241 = vunpack.c.l.b16 %v93
    %v1242 = vunpack.c.h.b16 %v93
    %v1243 = vunpack.c.l.b16 %v94
    %v1244 = vunpack.c.h.b16 %v94
    %v1245 = vunpack.c.l.b16 %v95
    %v1246 = vunpack.c.h.b16 %v95
    %v1247 = vunpack.c.l.b16 %v96
    %v1248 = vunpack.c.h.b16 %v96
    %v1249 = vunpack.c.l.b16 %v97
    %v1250 = vunpack.c.h.b16 %v97
    %v1251 = vunpack.c.l.b16 %v98
    %v1252 = vunpack.c.h.b16 %v98
    %v1253 = vunpack.c.l.b16 %v99
    %v1254 = vunpack.c.h.b16 %v99
    %v1255 = vunpack.c.l.b16 %v100
    %v1256 = vunpack.c.h.b16 %v100
    %v1257 = vunpack.c.l.b16 %v101
    %v1258 = vunpack.c.h.b16 %v101
    %v1259 = vunpack.c.l.b16 %v102
    %v1260 = vunpack.c.h.b16 %v102
    %v1261 = vunpack.c.l.b16 %v103
    %v1262 = vunpack.c.h.b16 %v103
    %v1263 = vunpack.c.l.b16 %v104
    %v1264 = vunpack.c.h.b16 %v104
    %v1265 = vunpack.c.l.b16 %v105
    %v1266 = vunpack.c.h.b16 %v105
    %v1267 = vunpack.c.l.b16 %v106
    %v1268 = vunpack.c.h.b16 %v106
    %v1269 = vunpack.c.l.b16 %v107
    %v1270 = vunpack.c.h.b16 %v107
    %v1271 = vunpack.c.l.b16 %v108
    %v1272 = vunpack.c.h.b16 %v108
    %v1273 = vunpack.c.l.b16 %v109
    %v1274 = vunpack.c.h.b16 %v109
    %v1275 = vunpack.c.l.b16 %v110
    %v1276 = vunpack.c.h.b16 %v110
    %v1277 = vunpack.c.l.b16 %v111
    %v1278 = vunpack.c.h.b16 %v111
    %v1279 = vunpack.c.l.b16 %v112
    %v1280 = vunpack.c.h.b16 %v112
    %v1281 = vunpack.c.l.b16 %v113
    %v1282 = vunpack.c.h.b16 %v113
    %v1283 = vunpack.c.l.b16 %v114
    %v1284 = vunpack.c.h.b16 %v114
    %v1285 = vunpack.c.l.b16 %v115
    %v1286 = vunpack.c.h.b16 %v115
    %v1287 = vunpack.c.l.b16 %v116
    %v1288 = vunpack.c.h.b16 %v116
    %v1289 = vunpack.c.l.b16 %v117
    %v1290 = vunpack.c.h.b16 %v117
    %v1291 = vunpack.c.l.b16 %v118
    %v1292 = vunpack.c.h.b16 %v118
    %v1293 = vunpack.c.l.b16 %v119
    %v1294 = vunpack.c.h.b16 %v119
    %v1295 = vunpack.c.l.b16 %v120
    %v1296 = vunpack.c.h.b16 %v120
    %v1297 = vunpack.c.l.b16 %v121
    %v1298 = vunpack.c.h.b16 %v121
    %v1299 = vunpack.c.l.b16 %v122
    %v1300 = vunpack.c.h.b16 %v122
    %v1301 = vunpack.c.l.b16 %v123
    %v1302 = vunpack.c.h.b16 %v123
    %v1303 = vunpack.c.l.b16 %v124
    %v1304 = vunpack.c.h.b16 %v124
    %v1305 = vunpack.c.l.b16 %v125
    %v1306 = vunpack.c.h.b16 %v125
    %v1307 = vunpack.c.l.b16 %v126
    %v1308 = vunpack.c.h.b16 %v126
    %v1309 = vunpack.c.l.b16 %v127
    %v1310 = vunpack.c.h.b16 %v127
    %v1311 = vunpack.c.l.b16 %v128
    %v1312 = vunpack.c.h.b16 %v128
    %v1313 = vunpack.c.l.b16 %v129
    %v1314 = vunpack.c.h.b16 %v129
    %v1315 = vunpack.c.l.b16 %v130
    %v1316 = vunpack.c.h.b16 %v130
    %v1317 = vunpack.c.l.b16 %v131
    %v1318 = vunpack.c.h.b16 %v131
    %v1319 = vunpack.c.l.b16 %v132
    %v1320 = vunpack.c.h.b16 %v132
    %v1321 = vunpack.c.l.b16 %v133
    %v1322 = vunpack.c.h.b16 %v133
    %v1323 = vunpack.c.l.b16 %v134
    %v1324 = vunpack.c.h.b16 %v134
    %v1325 = vunpack.c.l.b16 %v135
    %v1326 = vunpack.c.h.b16 %v135
    %v1327 = vunpack.c.l.b16 %v136
    %v1328 = vunpack.c.h.b16 %v136
    %v1329 = vunpack.c.l.b16 %v137
    %v1330 = vunpack.c.h.b16 %v137
    %v1331 = vunpack.c.l.b16 %v138
    %v1332 = vunpack.c.h.b16 %v138
    %v1333 = vunpack.c.l.b16 %v139
    %v1334 = vunpack.c.h.b16 %v139
    %v1335 = vunpack.c.l.b16 %v140
    %v1336 = vunpack.c.h.b16 %v140
    %v1337 = vunpack.c.l.b16 %v141
    %v1338 = vunpack.c.h.b16 %v141
    %v1339 = vunpack.c.l.b16 %v142
    %v1340 = vunpack.c.h.b16 %v142
    %v1341 = vunpack.c.l.b16 %v143
    %v1342 = vunpack.c.h.b16 %v143
    %v1343 = vunpack.c.l.b16 %v144
    %v1344 = vunpack.c.h.b16 %v144
    %v1345 = vunpack.c.l.b16 %v145
    %v1346 = vunpack.c.h.b16 %v145
    %v1347 = vunpack.c.l.b16 %v146
    %v1348 = vunpack.c.h.b16 %v146
    %v1349 = vunpack.c.l.b16 %v147
    %v1350 = vunpack.c.h.b16 %v147
    %v1351 = vunpack.c.l.b16 %v148
    %v1352 = vunpack.c.h.b16 %v148
    %v1353 = vunpack.c.l.b16 %v149
    %v1354 = vunpack.c.h.b16 %v149
    %v1355 = vunpack.c.l.b16 %v150
    %v1356 = vunpack.c.h.b16 %v150
    %v1357 = vunpack.c.l.b16 %v151
    %v1358 = vunpack.c.h.b16 %v151
    %v1359 = vunpack.c.l.b16 %v152
    %v1360 = vunpack.c.h.b16 %v152
    %v1361 = vunpack.c.l.b16 %v153
    %v1362 = vunpack.c.h.b16 %v153
    %v1363 = vunpack.c.l.b16 %v154
    %v1364 = vunpack.c.h.b16 %v154
    %v1365 = vunpack.c.l.b16 %v155
    %v1366 = vunpack.c.h.b16 %v155
    %v1367 = vunpack.c.l.b16 %v156
    %v1368 = vunpack.c.h.b16 %v156
    %v1369 = vunpack.c.l.b16 %v157
    %v1370 = vunpack.c.h.b16 %v157
    %v1371 = vunpack.c.l.b16 %v158
    %v1372 = vunpack.c.h.b16 %v158
    %v1373 = vunpack.c.l.b16 %v159
    %v1374 = vunpack.c.h.b16 %v159
    %v1375 = vunpack.c.l.b16 %v160
    %v1376 = vunpack.c.h.b16 %v160
    %v1377 = vunpack.c.l.b16 %v161
    %v1378 = vunpack.c.h.b16 %v161
    %v1379 = vunpack.c.l.b16 %v162
    %v1380 = vunpack.c.h.b16 %v162
    %v1381 = vunpack.c.l.b16 %v163
    %v1382 = vunpack.c.h.b16 %v163
    %v1383 = vunpack.c.l.b16 %v164
    %v1384 = vunpack.c.h.b16 %v164
    %v1385 = vunpack.c.l.b16 %v165
    %v1386 = vunpack.c.h.b16 %v165
    %v1387 = vunpack.c.l.b16 %v166
    %v1388 = vunpack.c.h.b16 %v166
    %v1389 = vunpack.c.l.b16 %v167
    %v1390 = vunpack.c.h.b16 %v167
    %v1391 = vunpack.c.l.b16 %v168
    %v1392 = vunpack.c.h.b16 %v168
    %v1393 = vunpack.c.l.b16 %v169
    %v1394 = vunpack.c.h.b16 %v169
    %v1395 = vunpack.c.l.b16 %v170
    %v1396 = vunpack.c.h.b16 %v170
    %v1397 = vunpack.c.l.b16 %v171
    %v1398 = vunpack.c.h.b16 %v171
    %v1399 = vunpack.c.l.b16 %v172
    %v1400 = vunpack.c.h.b16 %v172
    %v1401 = vunpack.c.l.b16 %v173
    %v1402 = vunpack.c.h.b16 %v173
    %v1403 = vunpack.c.l.b16 %v174
    %v1404 = vunpack.c.h.b16 %v174
    %v1405 = vunpack.c.l.b16 %v175
    %v1406 = vunpack.c.h.b16 %v175
    %v1407 = vunpack.c.l.b16 %v176
    %v1408 = vunpack.c.h.b16 %v176
    %v1409 = vunpack.c.l.b16 %v177
    %v1410 = vunpack.c.h.b16 %v177
    %v1411 = vunpack.c.l.b16 %v178
    %v1412 = vunpack.c.h.b16 %v178
    %v1413 = vunpack.c.l.b16 %v179
    %v1414 = vunpack.c.h.b16 %v179
    %v1415 = vunpack.c.l.b16 %v180
    %v1416 = vunpack.c.h.b16 %v180
    %v1417 = vunpack.c.l.b16 %v181
    %v1418 = vunpack.c.h.b16 %v181
    %v1419 = vunpack.c.l.b16 %v182
    %v1420 = vunpack.c.h.b16 %v182
    %v1421 = vunpack.c.l.b16 %v183
    %v1422 = vunpack.c.h.b16 %v183
    %v1423 = vunpack.c.l.b16 %v184
    %v1424 = vunpack.c.h.b16 %v184
    %v1425 = vunpack.c.l.b16 %v185
    %v1426 = vunpack.c.h.b16 %v185
    %v1427 = vunpack.c.l.b16 %v186
    %v1428 = vunpack.c.h.b16 %v186
    %v1429 = vunpack.c.l.b16 %v187
    %v1430 = vunpack.c.h.b16 %v187
    %v1431 = vunpack.c.l.b16 %v188
    %v1432 = vunpack.c.h.b16 %v188
    %v1433 = vunpack.c.l.b16 %v189
    %v1434 = vunpack.c.h.b16 %v189
    %v1435 = vunpack.c.l.b16 %v190
    %v1436 = vunpack.c.h.b16 %v190
    %v1437 = vunpack.c.l.b16 %v191
    %v1438 = vunpack.c.h.b16 %v191
    %v1439 = vunpack.c.l.b16 %v192
    %v1440 = vunpack.c.h.b16 %v192
    %v1441 = vunpack.c.l.b16 %v193
    %v1442 = vunpack.c.h.b16 %v193
    %v1443 = vunpack.c.l.b16 %v194
    %v1444 = vunpack.c.h.b16 %v194
    %v1445 = vunpack.c.l.b16 %v195
    %v1446 = vunpack.c.h.b16 %v195
    %v1447 = vunpack.c.l.b16 %v196
    %v1448 = vunpack.c.h.b16 %v196
    %v1449 = vunpack.c.l.b16 %v197
    %v1450 = vunpack.c.h.b16 %v197
    %v1451 = vunpack.c.l.b16 %v198
    %v1452 = vunpack.c.h.b16 %v198
    %v1453 = vunpack.c.l.b16 %v199
    %v1454 = vunpack.c.h.b16 %v199
    %v1455 = vunpack.c.l.b16 %v200
    %v1456 = vunpack.c.h.b16 %v200
    %v1457 = vunpack.c.l.b16 %v201
    %v1458 = vunpack.c.h.b16 %v201
    %v1459 = vunpack.c.l.b16 %v202
    %v1460 = vunpack.c.h.b16 %v202
    %v1461 = vunpack.c.l.b16 %v203
    %v1462 = vunpack.c.h.b16 %v203
    %v1463 = vunpack.c.l.b16 %v204
    %v1464 = vunpack.c.h.b16 %v204
    %v1465 = vunpack.c.l.b16 %v205
    %v1466 = vunpack.c.h.b16 %v205
    %v1467 = vunpack.c.l.b16 %v206
    %v1468 = vunpack.c.h.b16 %v206
    %v1469 = vunpack.c.l.b16 %v207
    %v1470 = vunpack.c.h.b16 %v207
    %v1471 = vunpack.c.l.b16 %v208
    %v1472 = vunpack.c.h.b16 %v208
    %v1473 = vunpack.c.l.b16 %v209
    %v1474 = vunpack.c.h.b16 %v209
    %v1475 = vunpack.c.l.b16 %v210
    %v1476 = vunpack.c.h.b16 %v210
    %v1477 = vunpack.c.l.b16 %v211
    %v1478 = vunpack.c.h.b16 %v211
    %v1479 = vunpack.c.l.b16 %v212
    %v1480 = vunpack.c.h.b16 %v212
    %v1481 = vunpack.c.l.b16 %v213
    %v1482 = vunpack.c.h.b16 %v213
    %v1483 = vunpack.c.l.b16 %v214
    %v1484 = vunpack.c.h.b16 %v214
    %v1485 = vunpack.c.l.b16 %v215
    %v1486 = vunpack.c.h.b16 %v215
    %v1487 = vunpack.c.l.b16 %v216
    %v1488 = vunpack.c.h.b16 %v216
    %v1489 = vunpack.c.l.b16 %v217
    %v1490 = vunpack.c.h.b16 %v217
    %v1491 = vunpack.c.l.b16 %v218
    %v1492 = vunpack.c.h.b16 %v218
    %v1493 = vunpack.c.l.b16 %v219
    %v1494 = vunpack.c.h.b16 %v219
    %v1495 = vunpack.c.l.b16 %v220
    %v1496 = vunpack.c.h.b16 %v220
    %v1497 = vunpack.c.l.b16 %v221
    %v1498 = vunpack.c.h.b16 %v221
    %v1499 = vunpack.c.l.b16 %v222
    %v1500 = vunpack.c.h.b16 %v222
    %v1501 = vunpack.c.l.b16 %v223
    %v1502 = vunpack.c.h.b16 %v223
    %v1503 = vunpack.c.l.b16 %v224
    %v1504 = vunpack.c.h.b16 %v224
    %v1505 = vunpack.c.l.b16 %v225
    %v1506 = vunpack.c.h.b16 %v225
    %v1507 = vunpack.c.l.b16 %v226
    %v1508 = vunpack.c.h.b16 %v226
    %v1509 = vunpack.c.l.b16 %v227
    %v1510 = vunpack.c.h.b16 %v227
    %v1511 = vunpack.c.l.b16 %v228
    %v1512 = vunpack.c.h.b16 %v228
    %v1513 = vunpack.c.l.b16 %v229
    %v1514 = vunpack.c.h.b16 %v229
    %v1515 = vunpack.c.l.b16 %v230
    %v1516 = vunpack.c.h.b16 %v230
    %v1517 = vunpack.c.l.b16 %v231
    %v1518 = vunpack.c.h.b16 %v231
    %v1519 = vunpack.c.l.b16 %v232
    %v1520 = vunpack.c.h.b16 %v232
    %v1521 = vunpack.c.l.b16 %v233
    %v1522 = vunpack.c.h.b16 %v233
    %v1523 = vunpack.c.l.b16 %v234
    %v1524 = vunpack.c.h.b16 %v234
    %v1525 = vunpack.c.l.b16 %v235
    %v1526 = vunpack.c.h.b16 %v235
    %v1527 = vunpack.c.l.b16 %v236
    %v1528 = vunpack.c.h.b16 %v236
    %v1529 = vunpack.c.l.b16 %v237
    %v1530 = vunpack.c.h.b16 %v237
    %v1531 = vunpack.c.l.b16 %v238
    %v1532 = vunpack.c.h.b16 %v238
    %v1533 = vunpack.c.l.b16 %v239
    %v1534 = vunpack.c.h.b16 %v239
    %v1535 = vunpack.c.l.b16 %v240
    %v1536 = vunpack.c.h.b16 %v240
    %v1537 = vunpack.c.l.b16 %v241
    %v1538 = vunpack.c.h.b16 %v241
    %v1539 = vunpack.c.l.b16 %v242
    %v1540 = vunpack.c.h.b16 %v242
    %v1541 = vunpack.c.l.b16 %v243
    %v1542 = vunpack.c.h.b16 %v243
    %v1543 = vunpack.c.l.b16 %v244
    %v1544 = vunpack.c.h.b16 %v244
    %v1545 = vunpack.c.l.b16 %v245
    %v1546 = vunpack.c.h.b16 %v245
    %v1547 = vunpack.c.l.b16 %v246
    %v1548 = vunpack.c.h.b16 %v246
    %v1549 = vunpack.c.l.b16 %v247
    %v1550 = vunpack.c.h.b16 %v247
    %v1551 = vunpack.c.l.b16 %v248
    %v1552 = vunpack.c.h.b16 %v248
    %v1553 = vunpack.c.l.b16 %v249
    %v1554 = vunpack.c.h.b16 %v249
    %v1555 = vunpack.c.l.b16 %v250
    %v1556 = vunpack.c.h.b16 %v250
    %v1557 = vunpack.c.l.b16 %v251
    %v1558 = vunpack.c.h.b16 %v251
    %v1559 = vunpack.c.l.b16 %v252
    %v1560 = vunpack.c.h.b16 %v252
    %v1561 = vunpack.c.l.b16 %v253
    %v1562 = vunpack.c.h.b16 %v253
    %v1563 = vunpack.c.l.b16 %v254
    %v1564 = vunpack.c.h.b16 %v254
    %v1565 = vunpack.c.l.b16 %v255
    %v1566 = vunpack.c.h.b16 %v255
    %v1567 = vunpack.c.l.b16 %v256
    %v1568 = vunpack.c.h.b16 %v256
    %v1569 = vunpack.c.l.b16 %v257
    %v1570 = vunpack.c.h.b16 %v257
    %v1571 = vunpack.c.l.b16 %v258
    %v1572 = vunpack.c.h.b16 %v258
    %v1573 = vunpack.c.l.b16 %v259
    %v1574 = vunpack.c.h.b16 %v259
    %v1575 = vunpack.c.l.b16 %v260
    %v1576 = vunpack.c.h.b16 %v260
    %v1577 = vunpack.c.l.b16 %v261
    %v1578 = vunpack.c.h.b16 %v261
    %v1579 = vunpack.c.l.b16 %v262
    %v1580 = vunpack.c.h.b16 %v262
    %v1581 = vunpack.c.l.b16 %v263
    %v1582 = vunpack.c.h.b16 %v263
    %v1583 = vunpack.c.l.b16 %v264
    %v1584 = vunpack.c.h.b16 %v264
    %v1585 = vunpack.c.l.b16 %v265
    %v1586 = vunpack.c.h.b16 %v265
    %v1587 = vunpack.c.l.b16 %v266
    %v1588 = vunpack.c.h.b16 %v266
    %v1589 = vunpack.c.l.b16 %v267
    %v1590 = vunpack.c.h.b16 %v267
    %v1591 = vunpack.c.l.b16 %v268
    %v1592 = vunpack.c.h.b16 %v268
    %v1593 = vunpack.c.l.b16 %v269
    %v1594 = vunpack.c.h.b16 %v269
    %v1595 = vunpack.c.l.b16 %v270
    %v1596 = vunpack.c.h.b16 %v270
    %v1597 = vunpack.c.l.b16 %v271
    %v1598 = vunpack.c.h.b16 %v271
    %v1599 = vunpack.c.l.b16 %v272
    %v1600 = vunpack.c.h.b16 %v272
    %v1601 = vunpack.c.l.b16 %v273
    %v1602 = vunpack.c.h.b16 %v273
    %v1603 = vunpack.c.l.b16 %v274
    %v1604 = vunpack.c.h.b16 %v274
    %v1605 = vunpack.c.l.b16 %v275
    %v1606 = vunpack.c.h.b16 %v275
    %v1607 = vunpack.c.l.b16 %v276
    %v1608 = vunpack.c.h.b16 %v276
    %v1609 = vunpack.c.l.b16 %v277
    %v1610 = vunpack.c.h.b16 %v277
    %v1611 = vunpack.c.l.b16 %v278
    %v1612 = vunpack.c.h.b16 %v278
    %v1613 = vunpack.c.l.b16 %v279
    %v1614 = vunpack.c.h.b16 %v279
    %v1615 = vunpack.c.l.b16 %v280
    %v1616 = vunpack.c.h.b16 %v280
    %v1617 = vunpack.c.l.b16 %v281
    %v1618 = vunpack.c.h.b16 %v281
    %v1619 = vunpack.c.l.b16 %v282
    %v1620 = vunpack.c.h.b16 %v282
    %v1621 = vunpack.c.l.b16 %v283
    %v1622 = vunpack.c.h.b16 %v283
    %v1623 = vunpack.c.l.b16 %v284
    %v1624 = vunpack.c.h.b16 %v284
    %v1625 = vunpack.c.l.b16 %v285
    %v1626 = vunpack.c.h.b16 %v285
    %v1627 = vunpack.c.l.b16 %v286
    %v1628 = vunpack.c.h.b16 %v286
    %v1629 = vunpack.c.l.b16 %v287
    %v1630 = vunpack.c.h.b16 %v287
    %v1631 = vunpack.c.l.b16 %v288
    %v1632 = vunpack.c.h.b16 %v288
    %v1633 = vunpack.c.l.b16 %v289
    %v1634 = vunpack.c.h.b16 %v289
    %v1635 = vunpack.c.l.b16 %v290
    %v1636 = vunpack.c.h.b16 %v290
    %v1637 = vunpack.c.l.b16 %v291
    %v1638 = vunpack.c.h.b16 %v291
    %v1639 = vunpack.c.l.b16 %v292
    %v1640 = vunpack.c.h.b16 %v292
    %v1641 = vunpack.c.l.b16 %v293
    %v1642 = vunpack.c.h.b16 %v293
    %v1643 = vunpack.c.l.b16 %v294
    %v1644 = vunpack.c.h.b16 %v294
    %v1645 = vunpack.c.l.b16 %v295
    %v1646 = vunpack.c.h.b16 %v295
    %v1647 = vunpack.c.l.b16 %v296
    %v1648 = vunpack.c.h.b16 %v296
    %v1649 = vunpack.c.l.b16 %v297
    %v1650 = vunpack.c.h.b16 %v297
    %v1651 = vunpack.c.l.b16 %v298
    %v1652 = vunpack.c.h.b16 %v298
    %v1653 = vunpack.c.l.b16 %v299
    %v1654 = vunpack.c.h.b16 %v299
    %v1655 = vunpack.c.l.b16 %v300
    %v1656 = vunpack.c.h.b16 %v300
    %v1657 = vunpack.c.l.b16 %v301
    %v1658 = vunpack.c.h.b16 %v301
    %v1659 = vunpack.c.l.b16 %v302
    %v1660 = vunpack.c.h.b16 %v302
    %v1661 = vunpack.c.l.b16 %v303
    %v1662 = vunpack.c.h.b16 %v303
    %v1663 = vunpack.c.l.b16 %v304
    %v1664 = vunpack.c.h.b16 %v304
    %v1665 = vunpack.c.l.b16 %v305
    %v1666 = vunpack.c.h.b16 %v305
    %v1667 = vunpack.c.l.b16 %v306
    %v1668 = vunpack.c.h.b16 %v306
    %v1669 = vunpack.c.l.b16 %v307
    %v1670 = vunpack.c.h.b16 %v307
    %v1671 = vunpack.c.l.b16 %v308
    %v1672 = vunpack.c.h.b16 %v308
    %v1673 = vunpack.c.l.b16 %v309
    %v1674 = vunpack.c.h.b16 %v309
    %v1675 = vunpack.c.l.b16 %v310
    %v1676 = vunpack.c.h.b16 %v310
    %v1677 = vunpack.c.l.b16 %v311
    %v1678 = vunpack.c.h.b16 %v311
    %v1679 = vunpack.c.l.b16 %v312
    %v1680 = vunpack.c.h.b16 %v312
    %v1681 = vunpack.c.l.b16 %v313
    %v1682 = vunpack.c.h.b16 %v313
    %v1683 = vunpack.c.l.b16 %v314
    %v1684 = vunpack.c.h.b16 %v314
    %v1685 = vunpack.c.l.b16 %v315
    %v1686 = vunpack.c.h.b16 %v315
    %v1687 = vunpack.c.l.b16 %v316
    %v1688 = vunpack.c.h.b16 %v316
    %v1689 = vunpack.c.l.b16 %v317
    %v1690 = vunpack.c.h.b16 %v317
    %v1691 = vunpack.c.l.b16 %v318
    %v1692 = vunpack.c.h.b16 %v318
    %v1693 = vunpack.c.l.b16 %v319
    %v1694 = vunpack.c.h.b16 %v319
    %v1695 = vunpack.c.l.b16 %v320
    %v1696 = vunpack.c.h.b16 %v320
    %v1697 = vunpack.c.l.b16 %v321
    %v1698 = vunpack.c.h.b16 %v321
    %v1699 = vunpack.c.l.b16 %v322
    %v1700 = vunpack.c.h.b16 %v322
    %v1701 = vunpack.c.l.b16 %v323
    %v1702 = vunpack.c.h.b16 %v323
    %v1703 = vunpack.c.l.b16 %v324
    %v1704 = vunpack.c.h.b16 %v324
    %v1705 = vunpack.c.l.b16 %v325
    %v1706 = vunpack.c.h.b16 %v325
    %v1707 = vunpack.c.l.b16 %v326
    %v1708 = vunpack.c.h.b16 %v326
    %v1709 = vunpack.c.l.b16 %v327
    %v1710 = vunpack.c.h.b16 %v327
    %v1711 = vunpack.c.l.b16 %v328
    %v1712 = vunpack.c.h.b16 %v328
    %v1713 = vunpack.c.l.b16 %v329
    %v1714 = vunpack.c.h.b16 %v329
    %v1715 = vunpack.c.l.b16 %v330
    %v1716 = vunpack.c.h.b16 %v330
    %v1717 = vunpack.c.l.b16 %v331
    %v1718 = vunpack.c.h.b16 %v331
    %v1719 = vunpack.c.l.b16 %v332
    %v1720 = vunpack.c.h.b16 %v332
    %v1721 = vunpack.c.l.b16 %v333
    %v1722 = vunpack.c.h.b16 %v333
    %v1723 = vunpack.c.l.b16 %v334
    %v1724 = vunpack.c.h.b16 %v334
    %v1725 = vunpack.c.l.b16 %v335
    %v1726 = vunpack.c.h.b16 %v335
    %v1727 = vunpack.c.l.b16 %v336
    %v1728 = vunpack.c.h.b16 %v336
    %v1729 = vunpack.c.l.b16 %v337
    %v1730 = vunpack.c.h.b16 %v337
    %v1731 = vunpack.c.l.b16 %v338
    %v1732 = vunpack.c.h.b16 %v338
    %v1733 = vunpack.c.l.b16 %v339
    %v1734 = vunpack.c.h.b16 %v339
    %v1735 = vunpack.c.l.b16 %v340
    %v1736 = vunpack.c.h.b16 %v340
    %v1737 = vunpack.c.l.b16 %v341
    %v1738 = vunpack.c.h.b16 %v341
    %v1739 = vunpack.c.l.b16 %v342
    %v1740 = vunpack.c.h.b16 %v342
    %v1741 = vunpack.c.l.b16 %v343
    %v1742 = vunpack.c.h.b16 %v343
    %v1743 = vunpack.c.l.b16 %v344
    %v1744 = vunpack.c.h.b16 %v344
    %v1745 = vunpack.c.l.b16 %v345
    %v1746 = vunpack.c.h.b16 %v345
    %v1747 = vunpack.c.l.b16 %v346
    %v1748 = vunpack.c.h.b16 %v346
    %v1749 = vunpack.c.l.b16 %v347
    %v1750 = vunpack.c.h.b16 %v347
    %v1751 = vunpack.c.l.b16 %v348
    %v1752 = vunpack.c.h.b16 %v348
    %v1753 = vunpack.c.l.b16 %v349
    %v1754 = vunpack.c.h.b16 %v349
    %v1755 = vunpack.c.l.b16 %v350
    %v1756 = vunpack.c.h.b16 %v350
    %v1757 = vunpack.c.l.b16 %v351
    %v1758 = vunpack.c.h.b16 %v351
    %v1759 = vunpack.c.l.b16 %v352
    %v1760 = vunpack.c.h.b16 %v352
    %v1761 = vunpack.c.l.b16 %v353
    %v1762 = vunpack.c.h.b16 %v353
    %v1763 = vunpack.c.l.b16 %v354
    %v1764 = vunpack.c.h.b16 %v354
    %v1765 = vunpack.c.l.b16 %v355
    %v1766 = vunpack.c.h.b16 %v355
    %v1767 = vunpack.c.l.b16 %v356
    %v1768 = vunpack.c.h.b16 %v356
    %v1769 = vunpack.c.l.b16 %v357
    %v1770 = vunpack.c.h.b16 %v357
    %v1771 = vunpack.c.l.b16 %v358
    %v1772 = vunpack.c.h.b16 %v358
    %v1773 = vunpack.c.l.b16 %v359
    %v1774 = vunpack.c.h.b16 %v359
    %v1775 = vunpack.c.l.b16 %v360
    %v1776 = vunpack.c.h.b16 %v360
    %v1777 = vunpack.c.l.b16 %v361
    %v1778 = vunpack.c.h.b16 %v361
    %v1779 = vunpack.c.l.b16 %v362
    %v1780 = vunpack.c.h.b16 %v362
    %v1781 = vunpack.c.l.b16 %v363
    %v1782 = vunpack.c.h.b16 %v363
    %v1783 = vunpack.c.l.b16 %v364
    %v1784 = vunpack.c.h.b16 %v364
    %v1785 = vunpack.c.l.b16 %v365
    %v1786 = vunpack.c.h.b16 %v365
    %v1787 = vunpack.c.l.b16 %v366
    %v1788 = vunpack.c.h.b16 %v366
    %v1789 = vunpack.c.l.b16 %v367
    %v1790 = vunpack.c.h.b16 %v367
    %v1791 = vunpack.c.l.b16 %v368
    %v1792 = vunpack.c.h.b16 %v368
    %v1793 = vunpack.c.l.b16 %v369
    %v1794 = vunpack.c.h.b16 %v369
    %v1795 = vunpack.c.l.b16 %v370
    %v1796 = vunpack.c.h.b16 %v370
    %v1797 = vunpack.c.l.b16 %v371
    %v1798 = vunpack.c.h.b16 %v371
    %v1799 = vunpack.c.l.b16 %v372
    %v1800 = vunpack.c.h.b16 %v372
    %v1801 = vunpack.c.l.b16 %v373
    %v1802 = vunpack.c.h.b16 %v373
    %v1803 = vunpack.c.l.b16 %v374
    %v1804 = vunpack.c.h.b16 %v374
    %v1805 = vunpack.c.l.b16 %v375
    %v1806 = vunpack.c.h.b16 %v375
    %v1807 = vunpack.c.l.b16 %v376
    %v1808 = vunpack.c.h.b16 %v376
    %v1809 = vunpack.c.l.b16 %v377
    %v1810 = vunpack.c.h.b16 %v377
    %v1811 = vunpack.c.l.b16 %v378
    %v1812 = vunpack.c.h.b16 %v378
    %v1813 = vunpack.c.l.b16 %v379
    %v1814 = vunpack.c.h.b16 %v379
    %v1815 = vunpack.c.l.b16 %v380
    %v1816 = vunpack.c.h.b16 %v380
    %v1817 = vunpack.c.l.b16 %v381
    %v1818 = vunpack.c.h.b16 %v381
    %v1819 = vunpack.c.l.b16 %v382
    %v1820 = vunpack.c.h.b16 %v382
    %v1821 = vunpack.c.l.b16 %v383
    %v1822 = vunpack.c.h.b16 %v383
    %v1823 = vunpack.c.l.b16 %v384
    %v1824 = vunpack.c.h.b16 %v384
    %v1825 = vunpack.c.l.b16 %v385
    %v1826 = vunpack.c.h.b16 %v385
    %v1827 = vunpack.c.l.b16 %v386
    %v1828 = vunpack.c.h.b16 %v386
    %v1829 = vunpack.c.l.b16 %v387
    %v1830 = vunpack.c.h.b16 %v387
    %v1831 = vunpack.c.l.b16 %v388
    %v1832 = vunpack.c.h.b16 %v388
    %v1833 = vunpack.c.l.b16 %v389
    %v1834 = vunpack.c.h.b16 %v389
    %v1835 = vunpack.c.l.b16 %v390
    %v1836 = vunpack.c.h.b16 %v390
    %v1837 = vunpack.c.l.b16 %v391
    %v1838 = vunpack.c.h.b16 %v391
    %v1839 = vunpack.c.l.b16 %v392
    %v1840 = vunpack.c.h.b16 %v392
    %v1841 = vunpack.c.l.b16 %v393
    %v1842 = vunpack.c.h.b16 %v393
    %v1843 = vunpack.c.l.b16 %v394
    %v1844 = vunpack.c.h.b16 %v394
    %v1845 = vunpack.c.l.b16 %v395
    %v1846 = vunpack.c.h.b16 %v395
    %v1847 = vunpack.c.l.b16 %v396
    %v1848 = vunpack.c.h.b16 %v396
    %v1849 = vunpack.c.l.b16 %v397
    %v1850 = vunpack.c.h.b16 %v397
    %v1851 = vunpack.c.l.b16 %v398
    %v1852 = vunpack.c.h.b16 %v398
    %v1853 = vunpack.c.l.b16 %v399
    %v1854 = vunpack.c.h.b16 %v399
    %v1855 = vunpack.c.l.b16 %v400
    %v1856 = vunpack.c.h.b16 %v400
    %v1857 = vunpack.c.l.b16 %v401
    %v1858 = vunpack.c.h.b16 %v401
    %v1859 = vunpack.c.l.b16 %v402
    %v1860 = vunpack.c.h.b16 %v402
    %v1861 = vunpack.c.l.b16 %v403
    %v1862 = vunpack.c.h.b16 %v403
    %v1863 = vunpack.c.l.b16 %v404
    %v1864 = vunpack.c.h.b16 %v404
    %v1865 = vunpack.c.l.b16 %v405
    %v1866 = vunpack.c.h.b16 %v405
    %v1867 = vunpack.c.l.b16 %v406
    %v1868 = vunpack.c.h.b16 %v406
    %v1869 = vunpack.c.l.b16 %v407
    %v1870 = vunpack.c.h.b16 %v407
    %v1871 = vunpack.c.l.b16 %v408
    %v1872 = vunpack.c.h.b16 %v408
    %v1873 = vunpack.c.l.b16 %v409
    %v1874 = vunpack.c.h.b16 %v409
    %v1875 = vunpack.c.l.b16 %v410
    %v1876 = vunpack.c.h.b16 %v410
    %v1877 = vunpack.c.l.b16 %v411
    %v1878 = vunpack.c.h.b16 %v411
    %v1879 = vunpack.c.l.b16 %v412
    %v1880 = vunpack.c.h.b16 %v412
    %v1881 = vunpack.c.l.b16 %v413
    %v1882 = vunpack.c.h.b16 %v413
    %v1883 = vunpack.c.l.b16 %v414
    %v1884 = vunpack.c.h.b16 %v414
    %v1885 = vunpack.c.l.b16 %v415
    %v1886 = vunpack.c.h.b16 %v415
    %v1887 = vunpack.c.l.b16 %v416
    %v1888 = vunpack.c.h.b16 %v416
    %v1889 = vunpack.c.l.b16 %v417
    %v1890 = vunpack.c.h.b16 %v417
    %v1891 = vunpack.c.l.b16 %v418
    %v1892 = vunpack.c.h.b16 %v418
    %v1893 = vunpack.c.l.b16 %v419
    %v1894 = vunpack.c.h.b16 %v419
    %v1895 = vunpack.c.l.b16 %v420
    %v1896 = vunpack.c.h.b16 %v420
    %v1897 = vunpack.c.l.b16 %v421
    %v1898 = vunpack.c.h.b16 %v421
    %v1899 = vunpack.c.l.b16 %v422
    %v1900 = vunpack.c.h.b16 %v422
    %v1901 = vunpack.c.l.b16 %v423
    %v1902 = vunpack.c.h.b16 %v423
    %v1903 = vunpack.c.l.b16 %v424
    %v1904 = vunpack.c.h.b16 %v424
    %v1905 = vunpack.c.l.b16 %v425
    %v1906 = vunpack.c.h.b16 %v425
    %v1907 = vunpack.c.l.b16 %v426
    %v1908 = vunpack.c.h.b16 %v426
    %v1909 = vunpack.c.l.b16 %v427
    %v1910 = vunpack.c.h.b16 %v427
    %v1911 = vunpack.c.l.b16 %v428
    %v1912 = vunpack.c.h.b16 %v428
    %v1913 = vunpack.c.l.b16 %v429
    %v1914 = vunpack.c.h.b16 %v429
    %v1915 = vunpack.c.l.b16 %v430
    %v1916 = vunpack.c.h.b16 %v430
    %v1917 = vunpack.c.l.b16 %v431
    %v1918 = vunpack.c.h.b16 %v431
    %v1919 = vunpack.c.l.b16 %v432
    %v1920 = vunpack.c.h.b16 %v432
    %v1921 = vunpack.c.l.b16 %v433
    %v1922 = vunpack.c.h.b16 %v433
    %v1923 = vunpack.c.l.b16 %v434
    %v1924 = vunpack.c.h.b16 %v434
    %v1925 = vunpack.c.l.b16 %v435
    %v1926 = vunpack.c.h.b16 %v435
    %v1927 = vunpack.c.l.b16 %v436
    %v1928 = vunpack.c.h.b16 %v436
    %v1929 = vunpack.c.l.b16 %v437
    %v1930 = vunpack.c.h.b16 %v437
    %v1931 = vunpack.c.l.b16 %v438
    %v1932 = vunpack.c.h.b16 %v438
    %v1933 = vunpack.c.l.b16 %v439
    %v1934 = vunpack.c.h.b16 %v439
    %v1935 = vunpack.c.l.b16 %v440
    %v1936 = vunpack.c.h.b16 %v440
    %v1937 = vunpack.c.l.b16 %v441
    %v1938 = vunpack.c.h.b16 %v441
    %v1939 = vunpack.c.l.b16 %v442
    %v1940 = vunpack.c.h.b16 %v442
    %v1941 = vunpack.c.l.b16 %v443
    %v1942 = vunpack.c.h.b16 %v443
    %v1943 = vunpack.c.l.b16 %v444
    %v1944 = vunpack.c.h.b16 %v444
    %v1945 = vunpack.c.l.b16 %v445
    %v1946 = vunpack.c.h.b16 %v445
    %v1947 = vunpack.c.l.b16 %v446
    %v1948 = vunpack.c.h.b16 %v446
    %v1949 = vunpack.c.l.b16 %v447
    %v1950 = vunpack.c.h.b16 %v447
    %v1951 = vunpack.c.l.b16 %v448
    %v1952 = vunpack.c.h.b16 %v448
    %v1953 = vunpack.c.l.b16 %v449
    %v1954 = vunpack.c.h.b16 %v449
    %v1955 = vunpack.c.l.b16 %v450
    %v1956 = vunpack.c.h.b16 %v450
    %v1957 = vunpack.c.l.b16 %v451
    %v1958 = vunpack.c.h.b16 %v451
    %v1959 = vunpack.c.l.b16 %v452
    %v1960 = vunpack.c.h.b16 %v452
    %v1961 = vunpack.c.l.b16 %v453
    %v1962 = vunpack.c.h.b16 %v453
    %v1963 = vunpack.c.l.b16 %v454
    %v1964 = vunpack.c.h.b16 %v454
    %v1965 = vunpack.c.l.b16 %v455
    %v1966 = vunpack.c.h.b16 %v455
    %v1967 = vunpack.c.l.b16 %v456
    %v1968 = vunpack.c.h.b16 %v456
    %v1969 = vunpack.c.l.b16 %v457
    %v1970 = vunpack.c.h.b16 %v457
    %v1971 = vunpack.c.l.b16 %v458
    %v1972 = vunpack.c.h.b16 %v458
    %v1973 = vunpack.c.l.b16 %v459
    %v1974 = vunpack.c.h.b16 %v459
    %v1975 = vunpack.c.l.b16 %v460
    %v1976 = vunpack.c.h.b16 %v460
    %v1977 = vunpack.c.l.b16 %v461
    %v1978 = vunpack.c.h.b16 %v461
    %v1979 = vunpack.c.l.b16 %v462
    %v1980 = vunpack.c.h.b16 %v462
    %v1981 = vunpack.c.l.b16 %v463
    %v1982 = vunpack.c.h.b16 %v463
    %v1983 = vunpack.c.l.b16 %v464
    %v1984 = vunpack.c.h.b16 %v464
    %v1985 = vunpack.c.l.b16 %v465
    %v1986 = vunpack.c.h.b16 %v465
    %v1987 = vunpack.c.l.b16 %v466
    %v1988 = vunpack.c.h.b16 %v466
    %v1989 = vunpack.c.l.b16 %v467
    %v1990 = vunpack.c.h.b16 %v467
    %v1991 = vunpack.c.l.b16 %v468
    %v1992 = vunpack.c.h.b16 %v468
    %v1993 = vunpack.c.l.b16 %v469
    %v1994 = vunpack.c.h.b16 %v469
    %v1995 = vunpack.c.l.b16 %v470
    %v1996 = vunpack.c.h.b16 %v470
    %v1997 = vunpack.c.l.b16 %v471
    %v1998 = vunpack.c.h.b16 %v471
    %v1999 = vunpack.c.l.b16 %v472
    %v2000 = vunpack.c.h.b16 %v472
    %v2001 = vunpack.c.l.b16 %v473
    %v2002 = vunpack.c.h.b16 %v473
    %v2003 = vunpack.c.l.b16 %v474
    %v2004 = vunpack.c.h.b16 %v474
    %v2005 = vunpack.c.l.b16 %v475
    %v2006 = vunpack.c.h.b16 %v475
    %v2007 = vunpack.c.l.b16 %v476
    %v2008 = vunpack.c.h.b16 %v476
    %v2009 = vunpack.c.l.b16 %v477
    %v2010 = vunpack.c.h.b16 %v477
    %v2011 = vunpack.c.l.b16 %v478
    %v2012 = vunpack.c.h.b16 %v478
    %v2013 = vunpack.c.l.b16 %v479
    %v2014 = vunpack.c.h.b16 %v479
    %v2015 = vunpack.c.l.b16 %v480
    %v2016 = vunpack.c.h.b16 %v480
    %v2017 = vunpack.c.l.b16 %v481
    %v2018 = vunpack.c.h.b16 %v481
    %v2019 = vunpack.c.l.b16 %v482
    %v2020 = vunpack.c.h.b16 %v482
    %v2021 = vunpack.c.l.b16 %v483
    %v2022 = vunpack.c.h.b16 %v483
    %v2023 = vunpack.c.l.b16 %v484
    %v2024 = vunpack.c.h.b16 %v484
    %v2025 = vunpack.c.l.b16 %v485
    %v2026 = vunpack.c.h.b16 %v485
    %v2027 = vunpack.c.l.b16 %v486
    %v2028 = vunpack.c.h.b16 %v486
    %v2029 = vunpack.c.l.b16 %v487
    %v2030 = vunpack.c.h.b16 %v487
    %v2031 = vunpack.c.l.b16 %v488
    %v2032 = vunpack.c.h.b16 %v488
    %v2033 = vunpack.c.l.b16 %v489
    %v2034 = vunpack.c.h.b16 %v489
    %v2035 = vunpack.c.l.b16 %v490
    %v2036 = vunpack.c.h.b16 %v490
    %v2037 = vunpack.c.l.b16 %v491
    %v2038 = vunpack.c.h.b16 %v491
    %v2039 = vunpack.c.l.b16 %v492
    %v2040 = vunpack.c.h.b16 %v492
    %v2041 = vunpack.c.l.b16 %v493
    %v2042 = vunpack.c.h.b16 %v493
    %v2043 = vunpack.c.l.b16 %v494
    %v2044 = vunpack.c.h.b16 %v494
    %v2045 = vunpack.c.l.b16 %v495
    %v2046 = vunpack.c.h.b16 %v495
    %v2047 = vunpack.c.l.b16 %v496
    %v2048 = vunpack.c.h.b16 %v496
    %v2049 = vunpack.c.l.b16 %v497
    %v2050 = vunpack.c.h.b16 %v497
    %v2051 = vunpack.c.l.b16 %v498
    %v2052 = vunpack.c.h.b16 %v498
    %v2053 = vunpack.c.l.b16 %v499
    %v2054 = vunpack.c.h.b16 %v499
    %v2055 = vunpack.c.l.b16 %v500
    %v2056 = vunpack.c.h.b16 %v500
    %v2057 = vunpack.c.l.b16 %v501
    %v2058 = vunpack.c.h.b16 %v501
    %v2059 = vunpack.c.l.b16 %v502
    %v2060 = vunpack.c.h.b16 %v502
    %v2061 = vunpack.c.l.b16 %v503
    %v2062 = vunpack.c.h.b16 %v503
    %v2063 = vunpack.c.l.b16 %v504
    %v2064 = vunpack.c.h.b16 %v504
    %v2065 = vunpack.c.l.b16 %v505
    %v2066 = vunpack.c.h.b16 %v505
    %v2067 = vunpack.c.l.b16 %v506
    %v2068 = vunpack.c.h.b16 %v506
    %v2069 = vunpack.c.l.b16 %v507
    %v2070 = vunpack.c.h.b16 %v507
    %v2071 = vunpack.c.l.b16 %v508
    %v2072 = vunpack.c.h.b16 %v508
    %v2073 = vunpack.c.l.b16 %v509
    %v2074 = vunpack.c.h.b16 %v509
    %v2075 = vunpack.c.l.b16 %v510
    %v2076 = vunpack.c.h.b16 %v510
    %v2077 = vunpack.c.l.b16 %v511
    %v2078 = vunpack.c.h.b16 %v511
    %v2079 = vunpack.c.l.b16 %v512
    %v2080 = vunpack.c.h.b16 %v512
    %v2081 = vunpack.c.l.b16 %v513
    %v2082 = vunpack.c.h.b16 %v513
    %v2083 = vunpack.c.l.b16 %v514
    %v2084 = vunpack.c.h.b16 %v514
    %v2085 = vunpack.c.l.b16 %v515
    %v2086 = vunpack.c.h.b16 %v515
    %v2087 = vunpack.c.l.b16 %v516
    %v2088 = vunpack.c.h.b16 %v516
    %v2089 = vunpack.c.l.b16 %v517
    %v2090 = vunpack.c.h.b16 %v517
    %v2091 = vunpack.c.l.b16 %v518
    %v2092 = vunpack.c.h.b16 %v518
    %v2093 = vunpack.c.l.b16 %v519
    %v2094 = vunpack.c.h.b16 %v519
    %v2095 = vunpack.c.l.b16 %v520
    %v2096 = vunpack.c.h.b16 %v520
    %v2097 = vunpack.c.l.b16 %v521
    %v2098 = vunpack.c.h.b16 %v521
    %v2099 = vunpack.c.l.b16 %v522
    %v2100 = vunpack.c.h.b16 %v522
    %v2101 = vunpack.c.l.b16 %v523
    %v2102 = vunpack.c.h.b16 %v523
    %v2103 = vunpack.c.l.b16 %v524
    %v2104 = vunpack.c.h.b16 %v524
    %v2105 = vunpack.c.l.b16 %v525
    %v2106 = vunpack.c.h.b16 %v525
    %v2107 = vunpack.c.l.b16 %v526
    %v2108 = vunpack.c.h.b16 %v526
    %v2109 = vunpack.c.l.b16 %v527
    %v2110 = vunpack.c.h.b16 %v527
    %v2111 = vunpack.c.l.b16 %v528
    %v2112 = vunpack.c.h.b16 %v528
    %v2113 = vunpack.c.l.b16 %v529
    %v2114 = vunpack.c.h.b16 %v529
    %v2115 = vunpack.c.l.b16 %v530
    %v2116 = vunpack.c.h.b16 %v530
    %v2117 = vunpack.c.l.b16 %v531
    %v2118 = vunpack.c.h.b16 %v531
    %v2119 = vunpack.c.l.b16 %v532
    %v2120 = vunpack.c.h.b16 %v532
    %v2121 = vunpack.c.l.b16 %v533
    %v2122 = vunpack.c.h.b16 %v533
    %v2123 = vunpack.c.l.b16 %v534
    %v2124 = vunpack.c.h.b16 %v534
    %v2125 = vunpack.c.l.b16 %v535
    %v2126 = vunpack.c.h.b16 %v535
    %v2127 = vunpack.c.l.b16 %v536
    %v2128 = vunpack.c.h.b16 %v536
    %v2129 = vpack.c.b16 %v1121, %v1105
    %v2130 = vpack.c.b16 %v1122, %v1106
    %v2131 = vpack.c.b16 %v1123, %v1107
    %v2132 = vpack.c.b16 %v1124, %v1108
    %v2133 = vpack.c.b16 %v1125, %v1109
    %v2134 = vpack.c.b16 %v1126, %v1110
    %v2135 = vpack.c.b16 %v1127, %v1111
    %v2136 = vpack.c.b16 %v1128, %v1112
    %v2137 = vpack.c.b16 %v1129, %v1113
    %v2138 = vpack.c.b16 %v1130, %v1114
    %v2139 = vpack.c.b16 %v1131, %v1115
    %v2140 = vpack.c.b16 %v1132, %v1116
    %v2141 = vpack.c.b16 %v1133, %v1117
    %v2142 = vpack.c.b16 %v1134, %v1118
    %v2143 = vpack.c.b16 %v1135, %v1119
    %v2144 = vpack.c.b16 %v1136, %v1120
    %v2145 = vpack.c.b16 %v1153, %v1137
    %v2146 = vpack.c.b16 %v1154, %v1138
    %v2147 = vpack.c.b16 %v1155, %v1139
    %v2148 = vpack.c.b16 %v1156, %v1140
    %v2149 = vpack.c.b16 %v1157, %v1141
    %v2150 = vpack.c.b16 %v1158, %v1142
    %v2151 = vpack.c.b16 %v1159, %v1143
    %v2152 = vpack.c.b16 %v1160, %v1144
    %v2153 = vpack.c.b16 %v1161, %v1145
    %v2154 = vpack.c.b16 %v1162, %v1146
    %v2155 = vpack.c.b16 %v1163, %v1147
    %v2156 = vpack.c.b16 %v1164, %v1148
    %v2157 = vpack.c.b16 %v1165, %v1149
    %v2158 = vpack.c.b16 %v1166, %v1150
    %v2159 = vpack.c.b16 %v1167, %v1151
    %v2160 = vpack.c.b16 %v1168, %v1152
    %v2161 = vpack.c.b16 %v1185, %v1169
    %v2162 = vpack.c.b16 %v1186, %v1170
    %v2163 = vpack.c.b16 %v1187, %v1171
    %v2164 = vpack.c.b16 %v1188, %v1172
    %v2165 = vpack.c.b16 %v1189, %v1173
    %v2166 = vpack.c.b16 %v1190, %v1174
    %v2167 = vpack.c.b16 %v1191, %v1175
    %v2168 = vpack.c.b16 %v1192, %v1176
    %v2169 = vpack.c.b16 %v1193, %v1177
    %v2170 = vpack.c.b16 %v1194, %v1178
    %v2171 = vpack.c.b16 %v1195, %v1179
    %v2172 = vpack.c.b16 %v1196, %v1180
    %v2173 = vpack.c.b16 %v1197, %v1181
    %v2174 = vpack.c.b16 %v1198, %v1182
    %v2175 = vpack.c.b16 %v1199, %v1183
    %v2176 = vpack.c.b16 %v1200, %v1184
    %v2177 = vpack.c.b16 %v1217, %v1201
    %v2178 = vpack.c.b16 %v1218, %v1202
    %v2179 = vpack.c.b16 %v1219, %v1203
    %v2180 = vpack.c.b16 %v1220, %v1204
    %v2181 = vpack.c.b16 %v1221, %v1205
    %v2182 = vpack.c.b16 %v1222, %v1206
    %v2183 = vpack.c.b16 %v1223, %v1207
    %v2184 = vpack.c.b16 %v1224, %v1208
    %v2185 = vpack.c.b16 %v1225, %v1209
    %v2186 = vpack.c.b16 %v1226, %v1210
    %v2187 = vpack.c.b16 %v1227, %v1211
    %v2188 = vpack.c.b16 %v1228, %v1212
    %v2189 = vpack.c.b16 %v1229, %v1213
    %v2190 = vpack.c.b16 %v1230, %v1214
    %v2191 = vpack.c.b16 %v1231, %v1215
    %v2192 = vpack.c.b16 %v1232, %v1216
    %v2193 = vpack.c.b16 %v1249, %v1233
    %v2194 = vpack.c.b16 %v1250, %v1234
    %v2195 = vpack.c.b16 %v1251, %v1235
    %v2196 = vpack.c.b16 %v1252, %v1236
    %v2197 = vpack.c.b16 %v1253, %v1237
    %v2198 = vpack.c.b16 %v1254, %v1238
    %v2199 = vpack.c.b16 %v1255, %v1239
    %v2200 = vpack.c.b16 %v1256, %v1240
    %v2201 = vpack.c.b16 %v1257, %v1241
    %v2202 = vpack.c.b16 %v1258, %v1242
    %v2203 = vpack.c.b16 %v1259, %v1243
    %v2204 = vpack.c.b16 %v1260, %v1244
    %v2205 = vpack.c.b16 %v1261, %v1245
    %v2206 = vpack.c.b16 %v1262, %v1246
    %v2207 = vpack.c.b16 %v1263, %v1247
    %v2208 = vpack.c.b16 %v1264, %v1248
    %v2209 = vpack.c.b16 %v1281, %v1265
    %v2210 = vpack.c.b16 %v1282, %v1266
    %v2211 = vpack.c.b16 %v1283, %v1267
    %v2212 = vpack.c.b16 %v1284, %v1268
    %v2213 = vpack.c.b16 %v1285, %v1269
    %v2214 = vpack.c.b16 %v1286, %v1270
    %v2215 = vpack.c.b16 %v1287, %v1271
    %v2216 = vpack.c.b16 %v1288, %v1272
    %v2217 = vpack.c.b16 %v1289, %v1273
    %v2218 = vpack.c.b16 %v1290, %v1274
    %v2219 = vpack.c.b16 %v1291, %v1275
    %v2220 = vpack.c.b16 %v1292, %v1276
    %v2221 = vpack.c.b16 %v1293, %v1277
    %v2222 = vpack.c.b16 %v1294, %v1278
    %v2223 = vpack.c.b16 %v1295, %v1279
    %v2224 = vpack.c.b16 %v1296, %v1280
    %v2225 = vpack.c.b16 %v1313, %v1297
    %v2226 = vpack.c.b16 %v1314, %v1298
    %v2227 = vpack.c.b16 %v1315, %v1299
    %v2228 = vpack.c.b16 %v1316, %v1300
    %v2229 = vpack.c.b16 %v1317, %v1301
    %v2230 = vpack.c.b16 %v1318, %v1302
    %v2231 = vpack.c.b16 %v1319, %v1303
    %v2232 = vpack.c.b16 %v1320, %v1304
    %v2233 = vpack.c.b16 %v1321, %v1305
    %v2234 = vpack.c.b16 %v1322, %v1306
    %v2235 = vpack.c.b16 %v1323, %v1307
    %v2236 = vpack.c.b16 %v1324, %v1308
    %v2237 = vpack.c.b16 %v1325, %v1309
    %v2238 = vpack.c.b16 %v1326, %v1310
    %v2239 = vpack.c.b16 %v1327, %v1311
    %v2240 = vpack.c.b16 %v1328, %v1312
    %v2241 = vpack.c.b16 %v1345, %v1329
    %v2242 = vpack.c.b16 %v1346, %v1330
    %v2243 = vpack.c.b16 %v1347, %v1331
    %v2244 = vpack.c.b16 %v1348, %v1332
    %v2245 = vpack.c.b16 %v1349, %v1333
    %v2246 = vpack.c.b16 %v1350, %v1334
    %v2247 = vpack.c.b16 %v1351, %v1335
    %v2248 = vpack.c.b16 %v1352, %v1336
    %v2249 = vpack.c.b16 %v1353, %v1337
    %v2250 = vpack.c.b16 %v1354, %v1338
    %v2251 = vpack.c.b16 %v1355, %v1339
    %v2252 = vpack.c.b16 %v1356, %v1340
    %v2253 = vpack.c.b16 %v1357, %v1341
    %v2254 = vpack.c.b16 %v1358, %v1342
    %v2255 = vpack.c.b16 %v1359, %v1343
    %v2256 = vpack.c.b16 %v1360, %v1344
    %v2257 = vpack.c.b16 %v1377, %v1361
    %v2258 = vpack.c.b16 %v1378, %v1362
    %v2259 = vpack.c.b16 %v1379, %v1363
    %v2260 = vpack.c.b16 %v1380, %v1364
    %v2261 = vpack.c.b16 %v1381, %v1365
    %v2262 = vpack.c.b16 %v1382, %v1366
    %v2263 = vpack.c.b16 %v1383, %v1367
    %v2264 = vpack.c.b16 %v1384, %v1368
    %v2265 = vpack.c.b16 %v1385, %v1369
    %v2266 = vpack.c.b16 %v1386, %v1370
    %v2267 = vpack.c.b16 %v1387, %v1371
    %v2268 = vpack.c.b16 %v1388, %v1372
    %v2269 = vpack.c.b16 %v1389, %v1373
    %v2270 = vpack.c.b16 %v1390, %v1374
    %v2271 = vpack.c.b16 %v1391, %v1375
    %v2272 = vpack.c.b16 %v1392, %v1376
    %v2273 = vpack.c.b16 %v1409, %v1393
    %v2274 = vpack.c.b16 %v1410, %v1394
    %v2275 = vpack.c.b16 %v1411, %v1395
    %v2276 = vpack.c.b16 %v1412, %v1396
    %v2277 = vpack.c.b16 %v1413, %v1397
    %v2278 = vpack.c.b16 %v1414, %v1398
    %v2279 = vpack.c.b16 %v1415, %v1399
    %v2280 = vpack.c.b16 %v1416, %v1400
    %v2281 = vpack.c.b16 %v1417, %v1401
    %v2282 = vpack.c.b16 %v1418, %v1402
    %v2283 = vpack.c.b16 %v1419, %v1403
    %v2284 = vpack.c.b16 %v1420, %v1404
    %v2285 = vpack.c.b16 %v1421, %v1405
    %v2286 = vpack.c.b16 %v1422, %v1406
    %v2287 = vpack.c.b16 %v1423, %v1407
    %v2288 = vpack.c.b16 %v1424, %v1408
    %v2289 = vpack.c.b16 %v1441, %v1425
    %v2290 = vpack.c.b16 %v1442, %v1426
    %v2291 = vpack.c.b16 %v1443, %v1427
    %v2292 = vpack.c.b16 %v1444, %v1428
    %v2293 = vpack.c.b16 %v1445, %v1429
    %v2294 = vpack.c.b16 %v1446, %v1430
    %v2295 = vpack.c.b16 %v1447, %v1431
    %v2296 = vpack.c.b16 %v1448, %v1432
    %v2297 = vpack.c.b16 %v1449, %v1433
    %v2298 = vpack.c.b16 %v1450, %v1434
    %v2299 = vpack.c.b16 %v1451, %v1435
    %v2300 = vpack.c.b16 %v1452, %v1436
    %v2301 = vpack.c.b16 %v1453, %v1437
    %v2302 = vpack.c.b16 %v1454, %v1438
    %v2303 = vpack.c.b16 %v1455, %v1439
    %v2304 = vpack.c.b16 %v1456, %v1440
    %v2305 = vpack.c.b16 %v1473, %v1457
    %v2306 = vpack.c.b16 %v1474, %v1458
    %v2307 = vpack.c.b16 %v1475, %v1459
    %v2308 = vpack.c.b16 %v1476, %v1460
    %v2309 = vpack.c.b16 %v1477, %v1461
    %v2310 = vpack.c.b16 %v1478, %v1462
    %v2311 = vpack.c.b16 %v1479, %v1463
    %v2312 = vpack.c.b16 %v1480, %v1464
    %v2313 = vpack.c.b16 %v1481, %v1465
    %v2314 = vpack.c.b16 %v1482, %v1466
    %v2315 = vpack.c.b16 %v1483, %v1467
    %v2316 = vpack.c.b16 %v1484, %v1468
    %v2317 = vpack.c.b16 %v1485, %v1469
    %v2318 = vpack.c.b16 %v1486, %v1470
    %v2319 = vpack.c.b16 %v1487, %v1471
    %v2320 = vpack.c.b16 %v1488, %v1472
    %v2321 = vpack.c.b16 %v1505, %v1489
    %v2322 = vpack.c.b16 %v1506, %v1490
    %v2323 = vpack.c.b16 %v1507, %v1491
    %v2324 = vpack.c.b16 %v1508, %v1492
    %v2325 = vpack.c.b16 %v1509, %v1493
    %v2326 = vpack.c.b16 %v1510, %v1494
    %v2327 = vpack.c.b16 %v1511, %v1495
    %v2328 = vpack.c.b16 %v1512, %v1496
    %v2329 = vpack.c.b16 %v1513, %v1497
    %v2330 = vpack.c.b16 %v1514, %v1498
    %v2331 = vpack.c.b16 %v1515, %v1499
    %v2332 = vpack.c.b16 %v1516, %v1500
    %v2333 = vpack.c.b16 %v1517, %v1501
    %v2334 = vpack.c.b16 %v1518, %v1502
    %v2335 = vpack.c.b16 %v1519, %v1503
    %v2336 = vpack.c.b16 %v1520, %v1504
    %v2337 = vpack.c.b16 %v1537, %v1521
    %v2338 = vpack.c.b16 %v1538, %v1522
    %v2339 = vpack.c.b16 %v1539, %v1523
    %v2340 = vpack.c.b16 %v1540, %v1524
    %v2341 = vpack.c.b16 %v1541, %v1525
    %v2342 = vpack.c.b16 %v1542, %v1526
    %v2343 = vpack.c.b16 %v1543, %v1527
    %v2344 = vpack.c.b16 %v1544, %v1528
    %v2345 = vpack.c.b16 %v1545, %v1529
    %v2346 = vpack.c.b16 %v1546, %v1530
    %v2347 = vpack.c.b16 %v1547, %v1531
    %v2348 = vpack.c.b16 %v1548, %v1532
    %v2349 = vpack.c.b16 %v1549, %v1533
    %v2350 = vpack.c.b16 %v1550, %v1534
    %v2351 = vpack.c.b16 %v1551, %v1535
    %v2352 = vpack.c.b16 %v1552, %v1536
    %v2353 = vpack.c.b16 %v1569, %v1553
    %v2354 = vpack.c.b16 %v1570, %v1554
    %v2355 = vpack.c.b16 %v1571, %v1555
    %v2356 = vpack.c.b16 %v1572, %v1556
    %v2357 = vpack.c.b16 %v1573, %v1557
    %v2358 = vpack.c.b16 %v1574, %v1558
    %v2359 = vpack.c.b16 %v1575, %v1559
    %v2360 = vpack.c.b16 %v1576, %v1560
    %v2361 = vpack.c.b16 %v1577, %v1561
    %v2362 = vpack.c.b16 %v1578, %v1562
    %v2363 = vpack.c.b16 %v1579, %v1563
    %v2364 = vpack.c.b16 %v1580, %v1564
    %v2365 = vpack.c.b16 %v1581, %v1565
    %v2366 = vpack.c.b16 %v1582, %v1566
    %v2367 = vpack.c.b16 %v1583, %v1567
    %v2368 = vpack.c.b16 %v1584, %v1568
    %v2369 = vpack.c.b16 %v1601, %v1585
    %v2370 = vpack.c.b16 %v1602, %v1586
    %v2371 = vpack.c.b16 %v1603, %v1587
    %v2372 = vpack.c.b16 %v1604, %v1588
    %v2373 = vpack.c.b16 %v1605, %v1589
    %v2374 = vpack.c.b16 %v1606, %v1590
    %v2375 = vpack.c.b16 %v1607, %v1591
    %v2376 = vpack.c.b16 %v1608, %v1592
    %v2377 = vpack.c.b16 %v1609, %v1593
    %v2378 = vpack.c.b16 %v1610, %v1594
    %v2379 = vpack.c.b16 %v1611, %v1595
    %v2380 = vpack.c.b16 %v1612, %v1596
    %v2381 = vpack.c.b16 %v1613, %v1597
    %v2382 = vpack.c.b16 %v1614, %v1598
    %v2383 = vpack.c.b16 %v1615, %v1599
    %v2384 = vpack.c.b16 %v1616, %v1600
    %v2385 = vpack.c.b16 %v1633, %v1617
    %v2386 = vpack.c.b16 %v1634, %v1618
    %v2387 = vpack.c.b16 %v1635, %v1619
    %v2388 = vpack.c.b16 %v1636, %v1620
    %v2389 = vpack.c.b16 %v1637, %v1621
    %v2390 = vpack.c.b16 %v1638, %v1622
    %v2391 = vpack.c.b16 %v1639, %v1623
    %v2392 = vpack.c.b16 %v1640, %v1624
    %v2393 = vpack.c.b16 %v1641, %v1625
    %v2394 = vpack.c.b16 %v1642, %v1626
    %v2395 = vpack.c.b16 %v1643, %v1627
    %v2396 = vpack.c.b16 %v1644, %v1628
    %v2397 = vpack.c.b16 %v1645, %v1629
    %v2398 = vpack.c.b16 %v1646, %v1630
    %v2399 = vpack.c.b16 %v1647, %v1631
    %v2400 = vpack.c.b16 %v1648, %v1632
    %v2401 = vpack.c.b16 %v1665, %v1649
    %v2402 = vpack.c.b16 %v1666, %v1650
    %v2403 = vpack.c.b16 %v1667, %v1651
    %v2404 = vpack.c.b16 %v1668, %v1652
    %v2405 = vpack.c.b16 %v1669, %v1653
    %v2406 = vpack.c.b16 %v1670, %v1654
    %v2407 = vpack.c.b16 %v1671, %v1655
    %v2408 = vpack.c.b16 %v1672, %v1656
    %v2409 = vpack.c.b16 %v1673, %v1657
    %v2410 = vpack.c.b16 %v1674, %v1658
    %v2411 = vpack.c.b16 %v1675, %v1659
    %v2412 = vpack.c.b16 %v1676, %v1660
    %v2413 = vpack.c.b16 %v1677, %v1661
    %v2414 = vpack.c.b16 %v1678, %v1662
    %v2415 = vpack.c.b16 %v1679, %v1663
    %v2416 = vpack.c.b16 %v1680, %v1664
    %v2417 = vpack.c.b16 %v1697, %v1681
    %v2418 = vpack.c.b16 %v1698, %v1682
    %v2419 = vpack.c.b16 %v1699, %v1683
    %v2420 = vpack.c.b16 %v1700, %v1684
    %v2421 = vpack.c.b16 %v1701, %v1685
    %v2422 = vpack.c.b16 %v1702, %v1686
    %v2423 = vpack.c.b16 %v1703, %v1687
    %v2424 = vpack.c.b16 %v1704, %v1688
    %v2425 = vpack.c.b16 %v1705, %v1689
    %v2426 = vpack.c.b16 %v1706, %v1690
    %v2427 = vpack.c.b16 %v1707, %v1691
    %v2428 = vpack.c.b16 %v1708, %v1692
    %v2429 = vpack.c.b16 %v1709, %v1693
    %v2430 = vpack.c.b16 %v1710, %v1694
    %v2431 = vpack.c.b16 %v1711, %v1695
    %v2432 = vpack.c.b16 %v1712, %v1696
    %v2433 = vpack.c.b16 %v1729, %v1713
    %v2434 = vpack.c.b16 %v1730, %v1714
    %v2435 = vpack.c.b16 %v1731, %v1715
    %v2436 = vpack.c.b16 %v1732, %v1716
    %v2437 = vpack.c.b16 %v1733, %v1717
    %v2438 = vpack.c.b16 %v1734, %v1718
    %v2439 = vpack.c.b16 %v1735, %v1719
    %v2440 = vpack.c.b16 %v1736, %v1720
    %v2441 = vpack.c.b16 %v1737, %v1721
    %v2442 = vpack.c.b16 %v1738, %v1722
    %v2443 = vpack.c.b16 %v1739, %v1723
    %v2444 = vpack.c.b16 %v1740, %v1724
    %v2445 = vpack.c.b16 %v1741, %v1725
    %v2446 = vpack.c.b16 %v1742, %v1726
    %v2447 = vpack.c.b16 %v1743, %v1727
    %v2448 = vpack.c.b16 %v1744, %v1728
    %v2449 = vpack.c.b16 %v1761, %v1745
    %v2450 = vpack.c.b16 %v1762, %v1746
    %v2451 = vpack.c.b16 %v1763, %v1747
    %v2452 = vpack.c.b16 %v1764, %v1748
    %v2453 = vpack.c.b16 %v1765, %v1749
    %v2454 = vpack.c.b16 %v1766, %v1750
    %v2455 = vpack.c.b16 %v1767, %v1751
    %v2456 = vpack.c.b16 %v1768, %v1752
    %v2457 = vpack.c.b16 %v1769, %v1753
    %v2458 = vpack.c.b16 %v1770, %v1754
    %v2459 = vpack.c.b16 %v1771, %v1755
    %v2460 = vpack.c.b16 %v1772, %v1756
    %v2461 = vpack.c.b16 %v1773, %v1757
    %v2462 = vpack.c.b16 %v1774, %v1758
    %v2463 = vpack.c.b16 %v1775, %v1759
    %v2464 = vpack.c.b16 %v1776, %v1760
    %v2465 = vpack.c.b16 %v1793, %v1777
    %v2466 = vpack.c.b16 %v1794, %v1778
    %v2467 = vpack.c.b16 %v1795, %v1779
    %v2468 = vpack.c.b16 %v1796, %v1780
    %v2469 = vpack.c.b16 %v1797, %v1781
    %v2470 = vpack.c.b16 %v1798, %v1782
    %v2471 = vpack.c.b16 %v1799, %v1783
    %v2472 = vpack.c.b16 %v1800, %v1784
    %v2473 = vpack.c.b16 %v1801, %v1785
    %v2474 = vpack.c.b16 %v1802, %v1786
    %v2475 = vpack.c.b16 %v1803, %v1787
    %v2476 = vpack.c.b16 %v1804, %v1788
    %v2477 = vpack.c.b16 %v1805, %v1789
    %v2478 = vpack.c.b16 %v1806, %v1790
    %v2479 = vpack.c.b16 %v1807, %v1791
    %v2480 = vpack.c.b16 %v1808, %v1792
    %v2481 = vpack.c.b16 %v1825, %v1809
    %v2482 = vpack.c.b16 %v1826, %v1810
    %v2483 = vpack.c.b16 %v1827, %v1811
    %v2484 = vpack.c.b16 %v1828, %v1812
    %v2485 = vpack.c.b16 %v1829, %v1813
    %v2486 = vpack.c.b16 %v1830, %v1814
    %v2487 = vpack.c.b16 %v1831, %v1815
    %v2488 = vpack.c.b16 %v1832, %v1816
    %v2489 = vpack.c.b16 %v1833, %v1817
    %v2490 = vpack.c.b16 %v1834, %v1818
    %v2491 = vpack.c.b16 %v1835, %v1819
    %v2492 = vpack.c.b16 %v1836, %v1820
    %v2493 = vpack.c.b16 %v1837, %v1821
    %v2494 = vpack.c.b16 %v1838, %v1822
    %v2495 = vpack.c.b16 %v1839, %v1823
    %v2496 = vpack.c.b16 %v1840, %v1824
    %v2497 = vpack.c.b16 %v1857, %v1841
    %v2498 = vpack.c.b16 %v1858, %v1842
    %v2499 = vpack.c.b16 %v1859, %v1843
    %v2500 = vpack.c.b16 %v1860, %v1844
    %v2501 = vpack.c.b16 %v1861, %v1845
    %v2502 = vpack.c.b16 %v1862, %v1846
    %v2503 = vpack.c.b16 %v1863, %v1847
    %v2504 = vpack.c.b16 %v1864, %v1848
    %v2505 = vpack.c.b16 %v1865, %v1849
    %v2506 = vpack.c.b16 %v1866, %v1850
    %v2507 = vpack.c.b16 %v1867, %v1851
    %v2508 = vpack.c.b16 %v1868, %v1852
    %v2509 = vpack.c.b16 %v1869, %v1853
    %v2510 = vpack.c.b16 %v1870, %v1854
    %v2511 = vpack.c.b16 %v1871, %v1855
    %v2512 = vpack.c.b16 %v1872, %v1856
    %v2513 = vpack.c.b16 %v1889, %v1873
    %v2514 = vpack.c.b16 %v1890, %v1874
    %v2515 = vpack.c.b16 %v1891, %v1875
    %v2516 = vpack.c.b16 %v1892, %v1876
    %v2517 = vpack.c.b16 %v1893, %v1877
    %v2518 = vpack.c.b16 %v1894, %v1878
    %v2519 = vpack.c.b16 %v1895, %v1879
    %v2520 = vpack.c.b16 %v1896, %v1880
    %v2521 = vpack.c.b16 %v1897, %v1881
    %v2522 = vpack.c.b16 %v1898, %v1882
    %v2523 = vpack.c.b16 %v1899, %v1883
    %v2524 = vpack.c.b16 %v1900, %v1884
    %v2525 = vpack.c.b16 %v1901, %v1885
    %v2526 = vpack.c.b16 %v1902, %v1886
    %v2527 = vpack.c.b16 %v1903, %v1887
    %v2528 = vpack.c.b16 %v1904, %v1888
    %v2529 = vpack.c.b16 %v1921, %v1905
    %v2530 = vpack.c.b16 %v1922, %v1906
    %v2531 = vpack.c.b16 %v1923, %v1907
    %v2532 = vpack.c.b16 %v1924, %v1908
    %v2533 = vpack.c.b16 %v1925, %v1909
    %v2534 = vpack.c.b16 %v1926, %v1910
    %v2535 = vpack.c.b16 %v1927, %v1911
    %v2536 = vpack.c.b16 %v1928, %v1912
    %v2537 = vpack.c.b16 %v1929, %v1913
    %v2538 = vpack.c.b16 %v1930, %v1914
    %v2539 = vpack.c.b16 %v1931, %v1915
    %v2540 = vpack.c.b16 %v1932, %v1916
    %v2541 = vpack.c.b16 %v1933, %v1917
    %v2542 = vpack.c.b16 %v1934, %v1918
    %v2543 = vpack.c.b16 %v1935, %v1919
    %v2544 = vpack.c.b16 %v1936, %v1920
    %v2545 = vpack.c.b16 %v1953, %v1937
    %v2546 = vpack.c.b16 %v1954, %v1938
    %v2547 = vpack.c.b16 %v1955, %v1939
    %v2548 = vpack.c.b16 %v1956, %v1940
    %v2549 = vpack.c.b16 %v1957, %v1941
    %v2550 = vpack.c.b16 %v1958, %v1942
    %v2551 = vpack.c.b16 %v1959, %v1943
    %v2552 = vpack.c.b16 %v1960, %v1944
    %v2553 = vpack.c.b16 %v1961, %v1945
    %v2554 = vpack.c.b16 %v1962, %v1946
    %v2555 = vpack.c.b16 %v1963, %v1947
    %v2556 = vpack.c.b16 %v1964, %v1948
    %v2557 = vpack.c.b16 %v1965, %v1949
    %v2558 = vpack.c.b16 %v1966, %v1950
    %v2559 = vpack.c.b16 %v1967, %v1951
    %v2560 = vpack.c.b16 %v1968, %v1952
    %v2561 = vpack.c.b16 %v1985, %v1969
    %v2562 = vpack.c.b16 %v1986, %v1970
    %v2563 = vpack.c.b16 %v1987, %v1971
    %v2564 = vpack.c.b16 %v1988, %v1972
    %v2565 = vpack.c.b16 %v1989, %v1973
    %v2566 = vpack.c.b16 %v1990, %v1974
    %v2567 = vpack.c.b16 %v1991, %v1975
    %v2568 = vpack.c.b16 %v1992, %v1976
    %v2569 = vpack.c.b16 %v1993, %v1977
    %v2570 = vpack.c.b16 %v1994, %v1978
    %v2571 = vpack.c.b16 %v1995, %v1979
    %v2572 = vpack.c.b16 %v1996, %v1980
    %v2573 = vpack.c.b16 %v1997, %v1981
    %v2574 = vpack.c.b16 %v1998, %v1982
    %v2575 = vpack.c.b16 %v1999, %v1983
    %v2576 = vpack.c.b16 %v2000, %v1984
    %v2577 = vpack.c.b16 %v2017, %v2001
    %v2578 = vpack.c.b16 %v2018, %v2002
    %v2579 = vpack.c.b16 %v2019, %v2003
    %v2580 = vpack.c.b16 %v2020, %v2004
    %v2581 = vpack.c.b16 %v2021, %v2005
    %v2582 = vpack.c.b16 %v2022, %v2006
    %v2583 = vpack.c.b16 %v2023, %v2007
    %v2584 = vpack.c.b16 %v2024, %v2008
    %v2585 = vpack.c.b16 %v2025, %v2009
    %v2586 = vpack.c.b16 %v2026, %v2010
    %v2587 = vpack.c.b16 %v2027, %v2011
    %v2588 = vpack.c.b16 %v2028, %v2012
    %v2589 = vpack.c.b16 %v2029, %v2013
    %v2590 = vpack.c.b16 %v2030, %v2014
    %v2591 = vpack.c.b16 %v2031, %v2015
    %v2592 = vpack.c.b16 %v2032, %v2016
    %v2593 = vpack.c.b16 %v2049, %v2033
    %v2594 = vpack.c.b16 %v2050, %v2034
    %v2595 = vpack.c.b16 %v2051, %v2035
    %v2596 = vpack.c.b16 %v2052, %v2036
    %v2597 = vpack.c.b16 %v2053, %v2037
    %v2598 = vpack.c.b16 %v2054, %v2038
    %v2599 = vpack.c.b16 %v2055, %v2039
    %v2600 = vpack.c.b16 %v2056, %v2040
    %v2601 = vpack.c.b16 %v2057, %v2041
    %v2602 = vpack.c.b16 %v2058, %v2042
    %v2603 = vpack.c.b16 %v2059, %v2043
    %v2604 = vpack.c.b16 %v2060, %v2044
    %v2605 = vpack.c.b16 %v2061, %v2045
    %v2606 = vpack.c.b16 %v2062, %v2046
    %v2607 = vpack.c.b16 %v2063, %v2047
    %v2608 = vpack.c.b16 %v2064, %v2048
    %v2609 = vpack.c.b16 %v2081, %v2065
    %v2610 = vpack.c.b16 %v2082, %v2066
    %v2611 = vpack.c.b16 %v2083, %v2067
    %v2612 = vpack.c.b16 %v2084, %v2068
    %v2613 = vpack.c.b16 %v2085, %v2069
    %v2614 = vpack.c.b16 %v2086, %v2070
    %v2615 = vpack.c.b16 %v2087, %v2071
    %v2616 = vpack.c.b16 %v2088, %v2072
    %v2617 = vpack.c.b16 %v2089, %v2073
    %v2618 = vpack.c.b16 %v2090, %v2074
    %v2619 = vpack.c.b16 %v2091, %v2075
    %v2620 = vpack.c.b16 %v2092, %v2076
    %v2621 = vpack.c.b16 %v2093, %v2077
    %v2622 = vpack.c.b16 %v2094, %v2078
    %v2623 = vpack.c.b16 %v2095, %v2079
    %v2624 = vpack.c.b16 %v2096, %v2080
    %v2625 = vpack.c.b16 %v2113, %v2097
    %v2626 = vpack.c.b16 %v2114, %v2098
    %v2627 = vpack.c.b16 %v2115, %v2099
    %v2628 = vpack.c.b16 %v2116, %v2100
    %v2629 = vpack.c.b16 %v2117, %v2101
    %v2630 = vpack.c.b16 %v2118, %v2102
    %v2631 = vpack.c.b16 %v2119, %v2103
    %v2632 = vpack.c.b16 %v2120, %v2104
    %v2633 = vpack.c.b16 %v2121, %v2105
    %v2634 = vpack.c.b16 %v2122, %v2106
    %v2635 = vpack.c.b16 %v2123, %v2107
    %v2636 = vpack.c.b16 %v2124, %v2108
    %v2637 = vpack.c.b16 %v2125, %v2109
    %v2638 = vpack.c.b16 %v2126, %v2110
    %v2639 = vpack.c.b16 %v2127, %v2111
    %v2640 = vpack.c.b16 %v2128, %v2112
    %3153 = vmatpush.bf16.msra.mxu0 %v2241
    %3154 = vmatpush.bf16.msra.mxu0 %v2225
    %3155 = vmatpush.bf16.msra.mxu0 %v2209
    %3156 = vmatpush.bf16.msra.mxu0 %v2193
    %3157 = vmatpush.bf16.msra.mxu0 %v2177
    %3158 = vmatpush.bf16.msra.mxu0 %v2161
    %3159 = vmatpush.bf16.msra.mxu0 %v2145
    %3160 = vmatpush.bf16.msra.mxu0 %v2129
    %3161 = vmatmul.bf16.gmra.mxu0 %v585
    %v3162 = vpop.f32.mrf.mxu0
    %v3163 = vadd.f32 %v541, %v3162
    %v3164 = vpop.f32.mrf.mxu0
    %v3165 = vadd.f32 %v541, %v3164
    %3166 = vdwg.mxu0
    %3167 = vmatpush.bf16.msra.mxu0 %v2369
    %3168 = vmatpush.bf16.msra.mxu0 %v2353
    %3169 = vmatpush.bf16.msra.mxu0 %v2337
    %3170 = vmatpush.bf16.msra.mxu0 %v2321
    %3171 = vmatpush.bf16.msra.mxu0 %v2305
    %3172 = vmatpush.bf16.msra.mxu0 %v2289
    %3173 = vmatpush.bf16.msra.mxu0 %v2273
    %3174 = vmatpush.bf16.msra.mxu0 %v2257
    %3175 = vmatmul.bf16.gmra.mxu0 %v586
    %v3176 = vpop.f32.mrf.mxu0
    %v3177 = vadd.f32 %v3163, %v3176
    %v3178 = vpop.f32.mrf.mxu0
    %v3179 = vadd.f32 %v3165, %v3178
    %3180 = vdwg.mxu0
    %3181 = vmatpush.bf16.msra.mxu0 %v2497
    %3182 = vmatpush.bf16.msra.mxu0 %v2481
    %3183 = vmatpush.bf16.msra.mxu0 %v2465
    %3184 = vmatpush.bf16.msra.mxu0 %v2449
    %3185 = vmatpush.bf16.msra.mxu0 %v2433
    %3186 = vmatpush.bf16.msra.mxu0 %v2417
    %3187 = vmatpush.bf16.msra.mxu0 %v2401
    %3188 = vmatpush.bf16.msra.mxu0 %v2385
    %3189 = vmatmul.bf16.gmra.mxu0 %v587
    %v3190 = vpop.f32.mrf.mxu0
    %v3191 = vadd.f32 %v3177, %v3190
    %v3192 = vpop.f32.mrf.mxu0
    %v3193 = vadd.f32 %v3179, %v3192
    %3194 = vdwg.mxu0
    %3195 = vmatpush.bf16.msra.mxu0 %v2625
    %3196 = vmatpush.bf16.msra.mxu0 %v2609
    %3197 = vmatpush.bf16.msra.mxu0 %v2593
    %3198 = vmatpush.bf16.msra.mxu0 %v2577
    %3199 = vmatpush.bf16.msra.mxu0 %v2561
    %3200 = vmatpush.bf16.msra.mxu0 %v2545
    %3201 = vmatpush.bf16.msra.mxu0 %v2529
    %3202 = vmatpush.bf16.msra.mxu0 %v2513
    %3203 = vmatmul.bf16.gmra.mxu0 %v588
    %v3204 = vpop.f32.mrf.mxu0
    %v3205 = vadd.f32 %v3191, %v3204
    %v3206 = vpop.f32.mrf.mxu0
    %v3207 = vadd.f32 %v3193, %v3206
    %3208 = vdwg.mxu0
    %3209 = vmatpush.bf16.msra.mxu0 %v2242
    %3210 = vmatpush.bf16.msra.mxu0 %v2226
    %3211 = vmatpush.bf16.msra.mxu0 %v2210
    %3212 = vmatpush.bf16.msra.mxu0 %v2194
    %3213 = vmatpush.bf16.msra.mxu0 %v2178
    %3214 = vmatpush.bf16.msra.mxu0 %v2162
    %3215 = vmatpush.bf16.msra.mxu0 %v2146
    %3216 = vmatpush.bf16.msra.mxu0 %v2130
    %3217 = vmatmul.bf16.gmra.mxu0 %v585
    %v3218 = vpop.f32.mrf.mxu0
    %v3219 = vadd.f32 %v542, %v3218
    %v3220 = vpop.f32.mrf.mxu0
    %v3221 = vadd.f32 %v542, %v3220
    %3222 = vdwg.mxu0
    %3223 = vmatpush.bf16.msra.mxu0 %v2370
    %3224 = vmatpush.bf16.msra.mxu0 %v2354
    %3225 = vmatpush.bf16.msra.mxu0 %v2338
    %3226 = vmatpush.bf16.msra.mxu0 %v2322
    %3227 = vmatpush.bf16.msra.mxu0 %v2306
    %3228 = vmatpush.bf16.msra.mxu0 %v2290
    %3229 = vmatpush.bf16.msra.mxu0 %v2274
    %3230 = vmatpush.bf16.msra.mxu0 %v2258
    %3231 = vmatmul.bf16.gmra.mxu0 %v586
    %v3232 = vpop.f32.mrf.mxu0
    %v3233 = vadd.f32 %v3219, %v3232
    %v3234 = vpop.f32.mrf.mxu0
    %v3235 = vadd.f32 %v3221, %v3234
    %3236 = vdwg.mxu0
    %3237 = vmatpush.bf16.msra.mxu0 %v2498
    %3238 = vmatpush.bf16.msra.mxu0 %v2482
    %3239 = vmatpush.bf16.msra.mxu0 %v2466
    %3240 = vmatpush.bf16.msra.mxu0 %v2450
    %3241 = vmatpush.bf16.msra.mxu0 %v2434
    %3242 = vmatpush.bf16.msra.mxu0 %v2418
    %3243 = vmatpush.bf16.msra.mxu0 %v2402
    %3244 = vmatpush.bf16.msra.mxu0 %v2386
    %3245 = vmatmul.bf16.gmra.mxu0 %v587
    %v3246 = vpop.f32.mrf.mxu0
    %v3247 = vadd.f32 %v3233, %v3246
    %v3248 = vpop.f32.mrf.mxu0
    %v3249 = vadd.f32 %v3235, %v3248
    %3250 = vdwg.mxu0
    %3251 = vmatpush.bf16.msra.mxu0 %v2626
    %3252 = vmatpush.bf16.msra.mxu0 %v2610
    %3253 = vmatpush.bf16.msra.mxu0 %v2594
    %3254 = vmatpush.bf16.msra.mxu0 %v2578
    %3255 = vmatpush.bf16.msra.mxu0 %v2562
    %3256 = vmatpush.bf16.msra.mxu0 %v2546
    %3257 = vmatpush.bf16.msra.mxu0 %v2530
    %3258 = vmatpush.bf16.msra.mxu0 %v2514
    %3259 = vmatmul.bf16.gmra.mxu0 %v588
    %v3260 = vpop.f32.mrf.mxu0
    %v3261 = vadd.f32 %v3247, %v3260
    %v3262 = vpop.f32.mrf.mxu0
    %v3263 = vadd.f32 %v3249, %v3262
    %3264 = vdwg.mxu0
    %3265 = vmatpush.bf16.msra.mxu0 %v2243
    %3266 = vmatpush.bf16.msra.mxu0 %v2227
    %3267 = vmatpush.bf16.msra.mxu0 %v2211
    %3268 = vmatpush.bf16.msra.mxu0 %v2195
    %3269 = vmatpush.bf16.msra.mxu0 %v2179
    %3270 = vmatpush.bf16.msra.mxu0 %v2163
    %3271 = vmatpush.bf16.msra.mxu0 %v2147
    %3272 = vmatpush.bf16.msra.mxu0 %v2131
    %3273 = vmatmul.bf16.gmra.mxu0 %v585
    %v3274 = vpop.f32.mrf.mxu0
    %v3275 = vadd.f32 %v543, %v3274
    %v3276 = vpop.f32.mrf.mxu0
    %v3277 = vadd.f32 %v543, %v3276
    %3278 = vdwg.mxu0
    %3279 = vmatpush.bf16.msra.mxu0 %v2371
    %3280 = vmatpush.bf16.msra.mxu0 %v2355
    %3281 = vmatpush.bf16.msra.mxu0 %v2339
    %3282 = vmatpush.bf16.msra.mxu0 %v2323
    %3283 = vmatpush.bf16.msra.mxu0 %v2307
    %3284 = vmatpush.bf16.msra.mxu0 %v2291
    %3285 = vmatpush.bf16.msra.mxu0 %v2275
    %3286 = vmatpush.bf16.msra.mxu0 %v2259
    %3287 = vmatmul.bf16.gmra.mxu0 %v586
    %v3288 = vpop.f32.mrf.mxu0
    %v3289 = vadd.f32 %v3275, %v3288
    %v3290 = vpop.f32.mrf.mxu0
    %v3291 = vadd.f32 %v3277, %v3290
    %3292 = vdwg.mxu0
    %3293 = vmatpush.bf16.msra.mxu0 %v2499
    %3294 = vmatpush.bf16.msra.mxu0 %v2483
    %3295 = vmatpush.bf16.msra.mxu0 %v2467
    %3296 = vmatpush.bf16.msra.mxu0 %v2451
    %3297 = vmatpush.bf16.msra.mxu0 %v2435
    %3298 = vmatpush.bf16.msra.mxu0 %v2419
    %3299 = vmatpush.bf16.msra.mxu0 %v2403
    %3300 = vmatpush.bf16.msra.mxu0 %v2387
    %3301 = vmatmul.bf16.gmra.mxu0 %v587
    %v3302 = vpop.f32.mrf.mxu0
    %v3303 = vadd.f32 %v3289, %v3302
    %v3304 = vpop.f32.mrf.mxu0
    %v3305 = vadd.f32 %v3291, %v3304
    %3306 = vdwg.mxu0
    %3307 = vmatpush.bf16.msra.mxu0 %v2627
    %3308 = vmatpush.bf16.msra.mxu0 %v2611
    %3309 = vmatpush.bf16.msra.mxu0 %v2595
    %3310 = vmatpush.bf16.msra.mxu0 %v2579
    %3311 = vmatpush.bf16.msra.mxu0 %v2563
    %3312 = vmatpush.bf16.msra.mxu0 %v2547
    %3313 = vmatpush.bf16.msra.mxu0 %v2531
    %3314 = vmatpush.bf16.msra.mxu0 %v2515
    %3315 = vmatmul.bf16.gmra.mxu0 %v588
    %v3316 = vpop.f32.mrf.mxu0
    %v3317 = vadd.f32 %v3303, %v3316
    %v3318 = vpop.f32.mrf.mxu0
    %v3319 = vadd.f32 %v3305, %v3318
    %3320 = vdwg.mxu0
    %3321 = vmatpush.bf16.msra.mxu0 %v2244
    %3322 = vmatpush.bf16.msra.mxu0 %v2228
    %3323 = vmatpush.bf16.msra.mxu0 %v2212
    %3324 = vmatpush.bf16.msra.mxu0 %v2196
    %3325 = vmatpush.bf16.msra.mxu0 %v2180
    %3326 = vmatpush.bf16.msra.mxu0 %v2164
    %3327 = vmatpush.bf16.msra.mxu0 %v2148
    %3328 = vmatpush.bf16.msra.mxu0 %v2132
    %3329 = vmatmul.bf16.gmra.mxu0 %v585
    %v3330 = vpop.f32.mrf.mxu0
    %v3331 = vadd.f32 %v544, %v3330
    %v3332 = vpop.f32.mrf.mxu0
    %v3333 = vadd.f32 %v544, %v3332
    %3334 = vdwg.mxu0
    %3335 = vmatpush.bf16.msra.mxu0 %v2372
    %3336 = vmatpush.bf16.msra.mxu0 %v2356
    %3337 = vmatpush.bf16.msra.mxu0 %v2340
    %3338 = vmatpush.bf16.msra.mxu0 %v2324
    %3339 = vmatpush.bf16.msra.mxu0 %v2308
    %3340 = vmatpush.bf16.msra.mxu0 %v2292
    %3341 = vmatpush.bf16.msra.mxu0 %v2276
    %3342 = vmatpush.bf16.msra.mxu0 %v2260
    %3343 = vmatmul.bf16.gmra.mxu0 %v586
    %v3344 = vpop.f32.mrf.mxu0
    %v3345 = vadd.f32 %v3331, %v3344
    %v3346 = vpop.f32.mrf.mxu0
    %v3347 = vadd.f32 %v3333, %v3346
    %3348 = vdwg.mxu0
    %3349 = vmatpush.bf16.msra.mxu0 %v2500
    %3350 = vmatpush.bf16.msra.mxu0 %v2484
    %3351 = vmatpush.bf16.msra.mxu0 %v2468
    %3352 = vmatpush.bf16.msra.mxu0 %v2452
    %3353 = vmatpush.bf16.msra.mxu0 %v2436
    %3354 = vmatpush.bf16.msra.mxu0 %v2420
    %3355 = vmatpush.bf16.msra.mxu0 %v2404
    %3356 = vmatpush.bf16.msra.mxu0 %v2388
    %3357 = vmatmul.bf16.gmra.mxu0 %v587
    %v3358 = vpop.f32.mrf.mxu0
    %v3359 = vadd.f32 %v3345, %v3358
    %v3360 = vpop.f32.mrf.mxu0
    %v3361 = vadd.f32 %v3347, %v3360
    %3362 = vdwg.mxu0
    %3363 = vmatpush.bf16.msra.mxu0 %v2628
    %3364 = vmatpush.bf16.msra.mxu0 %v2612
    %3365 = vmatpush.bf16.msra.mxu0 %v2596
    %3366 = vmatpush.bf16.msra.mxu0 %v2580
    %3367 = vmatpush.bf16.msra.mxu0 %v2564
    %3368 = vmatpush.bf16.msra.mxu0 %v2548
    %3369 = vmatpush.bf16.msra.mxu0 %v2532
    %3370 = vmatpush.bf16.msra.mxu0 %v2516
    %3371 = vmatmul.bf16.gmra.mxu0 %v588
    %v3372 = vpop.f32.mrf.mxu0
    %v3373 = vadd.f32 %v3359, %v3372
    %v3374 = vpop.f32.mrf.mxu0
    %v3375 = vadd.f32 %v3361, %v3374
    %3376 = vdwg.mxu0
    %3377 = vmatpush.bf16.msra.mxu0 %v2245
    %3378 = vmatpush.bf16.msra.mxu0 %v2229
    %3379 = vmatpush.bf16.msra.mxu0 %v2213
    %3380 = vmatpush.bf16.msra.mxu0 %v2197
    %3381 = vmatpush.bf16.msra.mxu0 %v2181
    %3382 = vmatpush.bf16.msra.mxu0 %v2165
    %3383 = vmatpush.bf16.msra.mxu0 %v2149
    %3384 = vmatpush.bf16.msra.mxu0 %v2133
    %3385 = vmatmul.bf16.gmra.mxu0 %v585
    %v3386 = vpop.f32.mrf.mxu0
    %v3387 = vadd.f32 %v545, %v3386
    %v3388 = vpop.f32.mrf.mxu0
    %v3389 = vadd.f32 %v545, %v3388
    %3390 = vdwg.mxu0
    %3391 = vmatpush.bf16.msra.mxu0 %v2373
    %3392 = vmatpush.bf16.msra.mxu0 %v2357
    %3393 = vmatpush.bf16.msra.mxu0 %v2341
    %3394 = vmatpush.bf16.msra.mxu0 %v2325
    %3395 = vmatpush.bf16.msra.mxu0 %v2309
    %3396 = vmatpush.bf16.msra.mxu0 %v2293
    %3397 = vmatpush.bf16.msra.mxu0 %v2277
    %3398 = vmatpush.bf16.msra.mxu0 %v2261
    %3399 = vmatmul.bf16.gmra.mxu0 %v586
    %v3400 = vpop.f32.mrf.mxu0
    %v3401 = vadd.f32 %v3387, %v3400
    %v3402 = vpop.f32.mrf.mxu0
    %v3403 = vadd.f32 %v3389, %v3402
    %3404 = vdwg.mxu0
    %3405 = vmatpush.bf16.msra.mxu0 %v2501
    %3406 = vmatpush.bf16.msra.mxu0 %v2485
    %3407 = vmatpush.bf16.msra.mxu0 %v2469
    %3408 = vmatpush.bf16.msra.mxu0 %v2453
    %3409 = vmatpush.bf16.msra.mxu0 %v2437
    %3410 = vmatpush.bf16.msra.mxu0 %v2421
    %3411 = vmatpush.bf16.msra.mxu0 %v2405
    %3412 = vmatpush.bf16.msra.mxu0 %v2389
    %3413 = vmatmul.bf16.gmra.mxu0 %v587
    %v3414 = vpop.f32.mrf.mxu0
    %v3415 = vadd.f32 %v3401, %v3414
    %v3416 = vpop.f32.mrf.mxu0
    %v3417 = vadd.f32 %v3403, %v3416
    %3418 = vdwg.mxu0
    %3419 = vmatpush.bf16.msra.mxu0 %v2629
    %3420 = vmatpush.bf16.msra.mxu0 %v2613
    %3421 = vmatpush.bf16.msra.mxu0 %v2597
    %3422 = vmatpush.bf16.msra.mxu0 %v2581
    %3423 = vmatpush.bf16.msra.mxu0 %v2565
    %3424 = vmatpush.bf16.msra.mxu0 %v2549
    %3425 = vmatpush.bf16.msra.mxu0 %v2533
    %3426 = vmatpush.bf16.msra.mxu0 %v2517
    %3427 = vmatmul.bf16.gmra.mxu0 %v588
    %v3428 = vpop.f32.mrf.mxu0
    %v3429 = vadd.f32 %v3415, %v3428
    %v3430 = vpop.f32.mrf.mxu0
    %v3431 = vadd.f32 %v3417, %v3430
    %3432 = vdwg.mxu0
    %3433 = vmatpush.bf16.msra.mxu0 %v2246
    %3434 = vmatpush.bf16.msra.mxu0 %v2230
    %3435 = vmatpush.bf16.msra.mxu0 %v2214
    %3436 = vmatpush.bf16.msra.mxu0 %v2198
    %3437 = vmatpush.bf16.msra.mxu0 %v2182
    %3438 = vmatpush.bf16.msra.mxu0 %v2166
    %3439 = vmatpush.bf16.msra.mxu0 %v2150
    %3440 = vmatpush.bf16.msra.mxu0 %v2134
    %3441 = vmatmul.bf16.gmra.mxu0 %v585
    %v3442 = vpop.f32.mrf.mxu0
    %v3443 = vadd.f32 %v546, %v3442
    %v3444 = vpop.f32.mrf.mxu0
    %v3445 = vadd.f32 %v546, %v3444
    %3446 = vdwg.mxu0
    %3447 = vmatpush.bf16.msra.mxu0 %v2374
    %3448 = vmatpush.bf16.msra.mxu0 %v2358
    %3449 = vmatpush.bf16.msra.mxu0 %v2342
    %3450 = vmatpush.bf16.msra.mxu0 %v2326
    %3451 = vmatpush.bf16.msra.mxu0 %v2310
    %3452 = vmatpush.bf16.msra.mxu0 %v2294
    %3453 = vmatpush.bf16.msra.mxu0 %v2278
    %3454 = vmatpush.bf16.msra.mxu0 %v2262
    %3455 = vmatmul.bf16.gmra.mxu0 %v586
    %v3456 = vpop.f32.mrf.mxu0
    %v3457 = vadd.f32 %v3443, %v3456
    %v3458 = vpop.f32.mrf.mxu0
    %v3459 = vadd.f32 %v3445, %v3458
    %3460 = vdwg.mxu0
    %3461 = vmatpush.bf16.msra.mxu0 %v2502
    %3462 = vmatpush.bf16.msra.mxu0 %v2486
    %3463 = vmatpush.bf16.msra.mxu0 %v2470
    %3464 = vmatpush.bf16.msra.mxu0 %v2454
    %3465 = vmatpush.bf16.msra.mxu0 %v2438
    %3466 = vmatpush.bf16.msra.mxu0 %v2422
    %3467 = vmatpush.bf16.msra.mxu0 %v2406
    %3468 = vmatpush.bf16.msra.mxu0 %v2390
    %3469 = vmatmul.bf16.gmra.mxu0 %v587
    %v3470 = vpop.f32.mrf.mxu0
    %v3471 = vadd.f32 %v3457, %v3470
    %v3472 = vpop.f32.mrf.mxu0
    %v3473 = vadd.f32 %v3459, %v3472
    %3474 = vdwg.mxu0
    %3475 = vmatpush.bf16.msra.mxu0 %v2630
    %3476 = vmatpush.bf16.msra.mxu0 %v2614
    %3477 = vmatpush.bf16.msra.mxu0 %v2598
    %3478 = vmatpush.bf16.msra.mxu0 %v2582
    %3479 = vmatpush.bf16.msra.mxu0 %v2566
    %3480 = vmatpush.bf16.msra.mxu0 %v2550
    %3481 = vmatpush.bf16.msra.mxu0 %v2534
    %3482 = vmatpush.bf16.msra.mxu0 %v2518
    %3483 = vmatmul.bf16.gmra.mxu0 %v588
    %v3484 = vpop.f32.mrf.mxu0
    %v3485 = vadd.f32 %v3471, %v3484
    %v3486 = vpop.f32.mrf.mxu0
    %v3487 = vadd.f32 %v3473, %v3486
    %3488 = vdwg.mxu0
    %3489 = vmatpush.bf16.msra.mxu0 %v2247
    %3490 = vmatpush.bf16.msra.mxu0 %v2231
    %3491 = vmatpush.bf16.msra.mxu0 %v2215
    %3492 = vmatpush.bf16.msra.mxu0 %v2199
    %3493 = vmatpush.bf16.msra.mxu0 %v2183
    %3494 = vmatpush.bf16.msra.mxu0 %v2167
    %3495 = vmatpush.bf16.msra.mxu0 %v2151
    %3496 = vmatpush.bf16.msra.mxu0 %v2135
    %3497 = vmatmul.bf16.gmra.mxu0 %v585
    %v3498 = vpop.f32.mrf.mxu0
    %v3499 = vadd.f32 %v547, %v3498
    %v3500 = vpop.f32.mrf.mxu0
    %v3501 = vadd.f32 %v547, %v3500
    %3502 = vdwg.mxu0
    %3503 = vmatpush.bf16.msra.mxu0 %v2375
    %3504 = vmatpush.bf16.msra.mxu0 %v2359
    %3505 = vmatpush.bf16.msra.mxu0 %v2343
    %3506 = vmatpush.bf16.msra.mxu0 %v2327
    %3507 = vmatpush.bf16.msra.mxu0 %v2311
    %3508 = vmatpush.bf16.msra.mxu0 %v2295
    %3509 = vmatpush.bf16.msra.mxu0 %v2279
    %3510 = vmatpush.bf16.msra.mxu0 %v2263
    %3511 = vmatmul.bf16.gmra.mxu0 %v586
    %v3512 = vpop.f32.mrf.mxu0
    %v3513 = vadd.f32 %v3499, %v3512
    %v3514 = vpop.f32.mrf.mxu0
    %v3515 = vadd.f32 %v3501, %v3514
    %3516 = vdwg.mxu0
    %3517 = vmatpush.bf16.msra.mxu0 %v2503
    %3518 = vmatpush.bf16.msra.mxu0 %v2487
    %3519 = vmatpush.bf16.msra.mxu0 %v2471
    %3520 = vmatpush.bf16.msra.mxu0 %v2455
    %3521 = vmatpush.bf16.msra.mxu0 %v2439
    %3522 = vmatpush.bf16.msra.mxu0 %v2423
    %3523 = vmatpush.bf16.msra.mxu0 %v2407
    %3524 = vmatpush.bf16.msra.mxu0 %v2391
    %3525 = vmatmul.bf16.gmra.mxu0 %v587
    %v3526 = vpop.f32.mrf.mxu0
    %v3527 = vadd.f32 %v3513, %v3526
    %v3528 = vpop.f32.mrf.mxu0
    %v3529 = vadd.f32 %v3515, %v3528
    %3530 = vdwg.mxu0
    %3531 = vmatpush.bf16.msra.mxu0 %v2631
    %3532 = vmatpush.bf16.msra.mxu0 %v2615
    %3533 = vmatpush.bf16.msra.mxu0 %v2599
    %3534 = vmatpush.bf16.msra.mxu0 %v2583
    %3535 = vmatpush.bf16.msra.mxu0 %v2567
    %3536 = vmatpush.bf16.msra.mxu0 %v2551
    %3537 = vmatpush.bf16.msra.mxu0 %v2535
    %3538 = vmatpush.bf16.msra.mxu0 %v2519
    %3539 = vmatmul.bf16.gmra.mxu0 %v588
    %v3540 = vpop.f32.mrf.mxu0
    %v3541 = vadd.f32 %v3527, %v3540
    %v3542 = vpop.f32.mrf.mxu0
    %v3543 = vadd.f32 %v3529, %v3542
    %3544 = vdwg.mxu0
    %3545 = vmatpush.bf16.msra.mxu0 %v2248
    %3546 = vmatpush.bf16.msra.mxu0 %v2232
    %3547 = vmatpush.bf16.msra.mxu0 %v2216
    %3548 = vmatpush.bf16.msra.mxu0 %v2200
    %3549 = vmatpush.bf16.msra.mxu0 %v2184
    %3550 = vmatpush.bf16.msra.mxu0 %v2168
    %3551 = vmatpush.bf16.msra.mxu0 %v2152
    %3552 = vmatpush.bf16.msra.mxu0 %v2136
    %3553 = vmatmul.bf16.gmra.mxu0 %v585
    %v3554 = vpop.f32.mrf.mxu0
    %v3555 = vadd.f32 %v548, %v3554
    %v3556 = vpop.f32.mrf.mxu0
    %v3557 = vadd.f32 %v548, %v3556
    %3558 = vdwg.mxu0
    %3559 = vmatpush.bf16.msra.mxu0 %v2376
    %3560 = vmatpush.bf16.msra.mxu0 %v2360
    %3561 = vmatpush.bf16.msra.mxu0 %v2344
    %3562 = vmatpush.bf16.msra.mxu0 %v2328
    %3563 = vmatpush.bf16.msra.mxu0 %v2312
    %3564 = vmatpush.bf16.msra.mxu0 %v2296
    %3565 = vmatpush.bf16.msra.mxu0 %v2280
    %3566 = vmatpush.bf16.msra.mxu0 %v2264
    %3567 = vmatmul.bf16.gmra.mxu0 %v586
    %v3568 = vpop.f32.mrf.mxu0
    %v3569 = vadd.f32 %v3555, %v3568
    %v3570 = vpop.f32.mrf.mxu0
    %v3571 = vadd.f32 %v3557, %v3570
    %3572 = vdwg.mxu0
    %3573 = vmatpush.bf16.msra.mxu0 %v2504
    %3574 = vmatpush.bf16.msra.mxu0 %v2488
    %3575 = vmatpush.bf16.msra.mxu0 %v2472
    %3576 = vmatpush.bf16.msra.mxu0 %v2456
    %3577 = vmatpush.bf16.msra.mxu0 %v2440
    %3578 = vmatpush.bf16.msra.mxu0 %v2424
    %3579 = vmatpush.bf16.msra.mxu0 %v2408
    %3580 = vmatpush.bf16.msra.mxu0 %v2392
    %3581 = vmatmul.bf16.gmra.mxu0 %v587
    %v3582 = vpop.f32.mrf.mxu0
    %v3583 = vadd.f32 %v3569, %v3582
    %v3584 = vpop.f32.mrf.mxu0
    %v3585 = vadd.f32 %v3571, %v3584
    %3586 = vdwg.mxu0
    %3587 = vmatpush.bf16.msra.mxu0 %v2632
    %3588 = vmatpush.bf16.msra.mxu0 %v2616
    %3589 = vmatpush.bf16.msra.mxu0 %v2600
    %3590 = vmatpush.bf16.msra.mxu0 %v2584
    %3591 = vmatpush.bf16.msra.mxu0 %v2568
    %3592 = vmatpush.bf16.msra.mxu0 %v2552
    %3593 = vmatpush.bf16.msra.mxu0 %v2536
    %3594 = vmatpush.bf16.msra.mxu0 %v2520
    %3595 = vmatmul.bf16.gmra.mxu0 %v588
    %v3596 = vpop.f32.mrf.mxu0
    %v3597 = vadd.f32 %v3583, %v3596
    %v3598 = vpop.f32.mrf.mxu0
    %v3599 = vadd.f32 %v3585, %v3598
    %3600 = vdwg.mxu0
    %3601 = vmatpush.bf16.msra.mxu0 %v2249
    %3602 = vmatpush.bf16.msra.mxu0 %v2233
    %3603 = vmatpush.bf16.msra.mxu0 %v2217
    %3604 = vmatpush.bf16.msra.mxu0 %v2201
    %3605 = vmatpush.bf16.msra.mxu0 %v2185
    %3606 = vmatpush.bf16.msra.mxu0 %v2169
    %3607 = vmatpush.bf16.msra.mxu0 %v2153
    %3608 = vmatpush.bf16.msra.mxu0 %v2137
    %3609 = vmatmul.bf16.gmra.mxu0 %v585
    %v3610 = vpop.f32.mrf.mxu0
    %v3611 = vadd.f32 %v549, %v3610
    %v3612 = vpop.f32.mrf.mxu0
    %v3613 = vadd.f32 %v549, %v3612
    %3614 = vdwg.mxu0
    %3615 = vmatpush.bf16.msra.mxu0 %v2377
    %3616 = vmatpush.bf16.msra.mxu0 %v2361
    %3617 = vmatpush.bf16.msra.mxu0 %v2345
    %3618 = vmatpush.bf16.msra.mxu0 %v2329
    %3619 = vmatpush.bf16.msra.mxu0 %v2313
    %3620 = vmatpush.bf16.msra.mxu0 %v2297
    %3621 = vmatpush.bf16.msra.mxu0 %v2281
    %3622 = vmatpush.bf16.msra.mxu0 %v2265
    %3623 = vmatmul.bf16.gmra.mxu0 %v586
    %v3624 = vpop.f32.mrf.mxu0
    %v3625 = vadd.f32 %v3611, %v3624
    %v3626 = vpop.f32.mrf.mxu0
    %v3627 = vadd.f32 %v3613, %v3626
    %3628 = vdwg.mxu0
    %3629 = vmatpush.bf16.msra.mxu0 %v2505
    %3630 = vmatpush.bf16.msra.mxu0 %v2489
    %3631 = vmatpush.bf16.msra.mxu0 %v2473
    %3632 = vmatpush.bf16.msra.mxu0 %v2457
    %3633 = vmatpush.bf16.msra.mxu0 %v2441
    %3634 = vmatpush.bf16.msra.mxu0 %v2425
    %3635 = vmatpush.bf16.msra.mxu0 %v2409
    %3636 = vmatpush.bf16.msra.mxu0 %v2393
    %3637 = vmatmul.bf16.gmra.mxu0 %v587
    %v3638 = vpop.f32.mrf.mxu0
    %v3639 = vadd.f32 %v3625, %v3638
    %v3640 = vpop.f32.mrf.mxu0
    %v3641 = vadd.f32 %v3627, %v3640
    %3642 = vdwg.mxu0
    %3643 = vmatpush.bf16.msra.mxu0 %v2633
    %3644 = vmatpush.bf16.msra.mxu0 %v2617
    %3645 = vmatpush.bf16.msra.mxu0 %v2601
    %3646 = vmatpush.bf16.msra.mxu0 %v2585
    %3647 = vmatpush.bf16.msra.mxu0 %v2569
    %3648 = vmatpush.bf16.msra.mxu0 %v2553
    %3649 = vmatpush.bf16.msra.mxu0 %v2537
    %3650 = vmatpush.bf16.msra.mxu0 %v2521
    %3651 = vmatmul.bf16.gmra.mxu0 %v588
    %v3652 = vpop.f32.mrf.mxu0
    %v3653 = vadd.f32 %v3639, %v3652
    %v3654 = vpop.f32.mrf.mxu0
    %v3655 = vadd.f32 %v3641, %v3654
    %3656 = vdwg.mxu0
    %3657 = vmatpush.bf16.msra.mxu0 %v2250
    %3658 = vmatpush.bf16.msra.mxu0 %v2234
    %3659 = vmatpush.bf16.msra.mxu0 %v2218
    %3660 = vmatpush.bf16.msra.mxu0 %v2202
    %3661 = vmatpush.bf16.msra.mxu0 %v2186
    %3662 = vmatpush.bf16.msra.mxu0 %v2170
    %3663 = vmatpush.bf16.msra.mxu0 %v2154
    %3664 = vmatpush.bf16.msra.mxu0 %v2138
    %3665 = vmatmul.bf16.gmra.mxu0 %v585
    %v3666 = vpop.f32.mrf.mxu0
    %v3667 = vadd.f32 %v550, %v3666
    %v3668 = vpop.f32.mrf.mxu0
    %v3669 = vadd.f32 %v550, %v3668
    %3670 = vdwg.mxu0
    %3671 = vmatpush.bf16.msra.mxu0 %v2378
    %3672 = vmatpush.bf16.msra.mxu0 %v2362
    %3673 = vmatpush.bf16.msra.mxu0 %v2346
    %3674 = vmatpush.bf16.msra.mxu0 %v2330
    %3675 = vmatpush.bf16.msra.mxu0 %v2314
    %3676 = vmatpush.bf16.msra.mxu0 %v2298
    %3677 = vmatpush.bf16.msra.mxu0 %v2282
    %3678 = vmatpush.bf16.msra.mxu0 %v2266
    %3679 = vmatmul.bf16.gmra.mxu0 %v586
    %v3680 = vpop.f32.mrf.mxu0
    %v3681 = vadd.f32 %v3667, %v3680
    %v3682 = vpop.f32.mrf.mxu0
    %v3683 = vadd.f32 %v3669, %v3682
    %3684 = vdwg.mxu0
    %3685 = vmatpush.bf16.msra.mxu0 %v2506
    %3686 = vmatpush.bf16.msra.mxu0 %v2490
    %3687 = vmatpush.bf16.msra.mxu0 %v2474
    %3688 = vmatpush.bf16.msra.mxu0 %v2458
    %3689 = vmatpush.bf16.msra.mxu0 %v2442
    %3690 = vmatpush.bf16.msra.mxu0 %v2426
    %3691 = vmatpush.bf16.msra.mxu0 %v2410
    %3692 = vmatpush.bf16.msra.mxu0 %v2394
    %3693 = vmatmul.bf16.gmra.mxu0 %v587
    %v3694 = vpop.f32.mrf.mxu0
    %v3695 = vadd.f32 %v3681, %v3694
    %v3696 = vpop.f32.mrf.mxu0
    %v3697 = vadd.f32 %v3683, %v3696
    %3698 = vdwg.mxu0
    %3699 = vmatpush.bf16.msra.mxu0 %v2634
    %3700 = vmatpush.bf16.msra.mxu0 %v2618
    %3701 = vmatpush.bf16.msra.mxu0 %v2602
    %3702 = vmatpush.bf16.msra.mxu0 %v2586
    %3703 = vmatpush.bf16.msra.mxu0 %v2570
    %3704 = vmatpush.bf16.msra.mxu0 %v2554
    %3705 = vmatpush.bf16.msra.mxu0 %v2538
    %3706 = vmatpush.bf16.msra.mxu0 %v2522
    %3707 = vmatmul.bf16.gmra.mxu0 %v588
    %v3708 = vpop.f32.mrf.mxu0
    %v3709 = vadd.f32 %v3695, %v3708
    %v3710 = vpop.f32.mrf.mxu0
    %v3711 = vadd.f32 %v3697, %v3710
    %3712 = vdwg.mxu0
    %3713 = vmatpush.bf16.msra.mxu0 %v2251
    %3714 = vmatpush.bf16.msra.mxu0 %v2235
    %3715 = vmatpush.bf16.msra.mxu0 %v2219
    %3716 = vmatpush.bf16.msra.mxu0 %v2203
    %3717 = vmatpush.bf16.msra.mxu0 %v2187
    %3718 = vmatpush.bf16.msra.mxu0 %v2171
    %3719 = vmatpush.bf16.msra.mxu0 %v2155
    %3720 = vmatpush.bf16.msra.mxu0 %v2139
    %3721 = vmatmul.bf16.gmra.mxu0 %v585
    %v3722 = vpop.f32.mrf.mxu0
    %v3723 = vadd.f32 %v551, %v3722
    %v3724 = vpop.f32.mrf.mxu0
    %v3725 = vadd.f32 %v551, %v3724
    %3726 = vdwg.mxu0
    %3727 = vmatpush.bf16.msra.mxu0 %v2379
    %3728 = vmatpush.bf16.msra.mxu0 %v2363
    %3729 = vmatpush.bf16.msra.mxu0 %v2347
    %3730 = vmatpush.bf16.msra.mxu0 %v2331
    %3731 = vmatpush.bf16.msra.mxu0 %v2315
    %3732 = vmatpush.bf16.msra.mxu0 %v2299
    %3733 = vmatpush.bf16.msra.mxu0 %v2283
    %3734 = vmatpush.bf16.msra.mxu0 %v2267
    %3735 = vmatmul.bf16.gmra.mxu0 %v586
    %v3736 = vpop.f32.mrf.mxu0
    %v3737 = vadd.f32 %v3723, %v3736
    %v3738 = vpop.f32.mrf.mxu0
    %v3739 = vadd.f32 %v3725, %v3738
    %3740 = vdwg.mxu0
    %3741 = vmatpush.bf16.msra.mxu0 %v2507
    %3742 = vmatpush.bf16.msra.mxu0 %v2491
    %3743 = vmatpush.bf16.msra.mxu0 %v2475
    %3744 = vmatpush.bf16.msra.mxu0 %v2459
    %3745 = vmatpush.bf16.msra.mxu0 %v2443
    %3746 = vmatpush.bf16.msra.mxu0 %v2427
    %3747 = vmatpush.bf16.msra.mxu0 %v2411
    %3748 = vmatpush.bf16.msra.mxu0 %v2395
    %3749 = vmatmul.bf16.gmra.mxu0 %v587
    %v3750 = vpop.f32.mrf.mxu0
    %v3751 = vadd.f32 %v3737, %v3750
    %v3752 = vpop.f32.mrf.mxu0
    %v3753 = vadd.f32 %v3739, %v3752
    %3754 = vdwg.mxu0
    %3755 = vmatpush.bf16.msra.mxu0 %v2635
    %3756 = vmatpush.bf16.msra.mxu0 %v2619
    %3757 = vmatpush.bf16.msra.mxu0 %v2603
    %3758 = vmatpush.bf16.msra.mxu0 %v2587
    %3759 = vmatpush.bf16.msra.mxu0 %v2571
    %3760 = vmatpush.bf16.msra.mxu0 %v2555
    %3761 = vmatpush.bf16.msra.mxu0 %v2539
    %3762 = vmatpush.bf16.msra.mxu0 %v2523
    %3763 = vmatmul.bf16.gmra.mxu0 %v588
    %v3764 = vpop.f32.mrf.mxu0
    %v3765 = vadd.f32 %v3751, %v3764
    %v3766 = vpop.f32.mrf.mxu0
    %v3767 = vadd.f32 %v3753, %v3766
    %3768 = vdwg.mxu0
    %3769 = vmatpush.bf16.msra.mxu0 %v2252
    %3770 = vmatpush.bf16.msra.mxu0 %v2236
    %3771 = vmatpush.bf16.msra.mxu0 %v2220
    %3772 = vmatpush.bf16.msra.mxu0 %v2204
    %3773 = vmatpush.bf16.msra.mxu0 %v2188
    %3774 = vmatpush.bf16.msra.mxu0 %v2172
    %3775 = vmatpush.bf16.msra.mxu0 %v2156
    %3776 = vmatpush.bf16.msra.mxu0 %v2140
    %3777 = vmatmul.bf16.gmra.mxu0 %v585
    %v3778 = vpop.f32.mrf.mxu0
    %v3779 = vadd.f32 %v552, %v3778
    %v3780 = vpop.f32.mrf.mxu0
    %v3781 = vadd.f32 %v552, %v3780
    %3782 = vdwg.mxu0
    %3783 = vmatpush.bf16.msra.mxu0 %v2380
    %3784 = vmatpush.bf16.msra.mxu0 %v2364
    %3785 = vmatpush.bf16.msra.mxu0 %v2348
    %3786 = vmatpush.bf16.msra.mxu0 %v2332
    %3787 = vmatpush.bf16.msra.mxu0 %v2316
    %3788 = vmatpush.bf16.msra.mxu0 %v2300
    %3789 = vmatpush.bf16.msra.mxu0 %v2284
    %3790 = vmatpush.bf16.msra.mxu0 %v2268
    %3791 = vmatmul.bf16.gmra.mxu0 %v586
    %v3792 = vpop.f32.mrf.mxu0
    %v3793 = vadd.f32 %v3779, %v3792
    %v3794 = vpop.f32.mrf.mxu0
    %v3795 = vadd.f32 %v3781, %v3794
    %3796 = vdwg.mxu0
    %3797 = vmatpush.bf16.msra.mxu0 %v2508
    %3798 = vmatpush.bf16.msra.mxu0 %v2492
    %3799 = vmatpush.bf16.msra.mxu0 %v2476
    %3800 = vmatpush.bf16.msra.mxu0 %v2460
    %3801 = vmatpush.bf16.msra.mxu0 %v2444
    %3802 = vmatpush.bf16.msra.mxu0 %v2428
    %3803 = vmatpush.bf16.msra.mxu0 %v2412
    %3804 = vmatpush.bf16.msra.mxu0 %v2396
    %3805 = vmatmul.bf16.gmra.mxu0 %v587
    %v3806 = vpop.f32.mrf.mxu0
    %v3807 = vadd.f32 %v3793, %v3806
    %v3808 = vpop.f32.mrf.mxu0
    %v3809 = vadd.f32 %v3795, %v3808
    %3810 = vdwg.mxu0
    %3811 = vmatpush.bf16.msra.mxu0 %v2636
    %3812 = vmatpush.bf16.msra.mxu0 %v2620
    %3813 = vmatpush.bf16.msra.mxu0 %v2604
    %3814 = vmatpush.bf16.msra.mxu0 %v2588
    %3815 = vmatpush.bf16.msra.mxu0 %v2572
    %3816 = vmatpush.bf16.msra.mxu0 %v2556
    %3817 = vmatpush.bf16.msra.mxu0 %v2540
    %3818 = vmatpush.bf16.msra.mxu0 %v2524
    %3819 = vmatmul.bf16.gmra.mxu0 %v588
    %v3820 = vpop.f32.mrf.mxu0
    %v3821 = vadd.f32 %v3807, %v3820
    %v3822 = vpop.f32.mrf.mxu0
    %v3823 = vadd.f32 %v3809, %v3822
    %3824 = vdwg.mxu0
    %3825 = vmatpush.bf16.msra.mxu0 %v2253
    %3826 = vmatpush.bf16.msra.mxu0 %v2237
    %3827 = vmatpush.bf16.msra.mxu0 %v2221
    %3828 = vmatpush.bf16.msra.mxu0 %v2205
    %3829 = vmatpush.bf16.msra.mxu0 %v2189
    %3830 = vmatpush.bf16.msra.mxu0 %v2173
    %3831 = vmatpush.bf16.msra.mxu0 %v2157
    %3832 = vmatpush.bf16.msra.mxu0 %v2141
    %3833 = vmatmul.bf16.gmra.mxu0 %v585
    %v3834 = vpop.f32.mrf.mxu0
    %v3835 = vadd.f32 %v553, %v3834
    %v3836 = vpop.f32.mrf.mxu0
    %v3837 = vadd.f32 %v553, %v3836
    %3838 = vdwg.mxu0
    %3839 = vmatpush.bf16.msra.mxu0 %v2381
    %3840 = vmatpush.bf16.msra.mxu0 %v2365
    %3841 = vmatpush.bf16.msra.mxu0 %v2349
    %3842 = vmatpush.bf16.msra.mxu0 %v2333
    %3843 = vmatpush.bf16.msra.mxu0 %v2317
    %3844 = vmatpush.bf16.msra.mxu0 %v2301
    %3845 = vmatpush.bf16.msra.mxu0 %v2285
    %3846 = vmatpush.bf16.msra.mxu0 %v2269
    %3847 = vmatmul.bf16.gmra.mxu0 %v586
    %v3848 = vpop.f32.mrf.mxu0
    %v3849 = vadd.f32 %v3835, %v3848
    %v3850 = vpop.f32.mrf.mxu0
    %v3851 = vadd.f32 %v3837, %v3850
    %3852 = vdwg.mxu0
    %3853 = vmatpush.bf16.msra.mxu0 %v2509
    %3854 = vmatpush.bf16.msra.mxu0 %v2493
    %3855 = vmatpush.bf16.msra.mxu0 %v2477
    %3856 = vmatpush.bf16.msra.mxu0 %v2461
    %3857 = vmatpush.bf16.msra.mxu0 %v2445
    %3858 = vmatpush.bf16.msra.mxu0 %v2429
    %3859 = vmatpush.bf16.msra.mxu0 %v2413
    %3860 = vmatpush.bf16.msra.mxu0 %v2397
    %3861 = vmatmul.bf16.gmra.mxu0 %v587
    %v3862 = vpop.f32.mrf.mxu0
    %v3863 = vadd.f32 %v3849, %v3862
    %v3864 = vpop.f32.mrf.mxu0
    %v3865 = vadd.f32 %v3851, %v3864
    %3866 = vdwg.mxu0
    %3867 = vmatpush.bf16.msra.mxu0 %v2637
    %3868 = vmatpush.bf16.msra.mxu0 %v2621
    %3869 = vmatpush.bf16.msra.mxu0 %v2605
    %3870 = vmatpush.bf16.msra.mxu0 %v2589
    %3871 = vmatpush.bf16.msra.mxu0 %v2573
    %3872 = vmatpush.bf16.msra.mxu0 %v2557
    %3873 = vmatpush.bf16.msra.mxu0 %v2541
    %3874 = vmatpush.bf16.msra.mxu0 %v2525
    %3875 = vmatmul.bf16.gmra.mxu0 %v588
    %v3876 = vpop.f32.mrf.mxu0
    %v3877 = vadd.f32 %v3863, %v3876
    %v3878 = vpop.f32.mrf.mxu0
    %v3879 = vadd.f32 %v3865, %v3878
    %3880 = vdwg.mxu0
    %3881 = vmatpush.bf16.msra.mxu0 %v2254
    %3882 = vmatpush.bf16.msra.mxu0 %v2238
    %3883 = vmatpush.bf16.msra.mxu0 %v2222
    %3884 = vmatpush.bf16.msra.mxu0 %v2206
    %3885 = vmatpush.bf16.msra.mxu0 %v2190
    %3886 = vmatpush.bf16.msra.mxu0 %v2174
    %3887 = vmatpush.bf16.msra.mxu0 %v2158
    %3888 = vmatpush.bf16.msra.mxu0 %v2142
    %3889 = vmatmul.bf16.gmra.mxu0 %v585
    %v3890 = vpop.f32.mrf.mxu0
    %v3891 = vadd.f32 %v554, %v3890
    %v3892 = vpop.f32.mrf.mxu0
    %v3893 = vadd.f32 %v554, %v3892
    %3894 = vdwg.mxu0
    %3895 = vmatpush.bf16.msra.mxu0 %v2382
    %3896 = vmatpush.bf16.msra.mxu0 %v2366
    %3897 = vmatpush.bf16.msra.mxu0 %v2350
    %3898 = vmatpush.bf16.msra.mxu0 %v2334
    %3899 = vmatpush.bf16.msra.mxu0 %v2318
    %3900 = vmatpush.bf16.msra.mxu0 %v2302
    %3901 = vmatpush.bf16.msra.mxu0 %v2286
    %3902 = vmatpush.bf16.msra.mxu0 %v2270
    %3903 = vmatmul.bf16.gmra.mxu0 %v586
    %v3904 = vpop.f32.mrf.mxu0
    %v3905 = vadd.f32 %v3891, %v3904
    %v3906 = vpop.f32.mrf.mxu0
    %v3907 = vadd.f32 %v3893, %v3906
    %3908 = vdwg.mxu0
    %3909 = vmatpush.bf16.msra.mxu0 %v2510
    %3910 = vmatpush.bf16.msra.mxu0 %v2494
    %3911 = vmatpush.bf16.msra.mxu0 %v2478
    %3912 = vmatpush.bf16.msra.mxu0 %v2462
    %3913 = vmatpush.bf16.msra.mxu0 %v2446
    %3914 = vmatpush.bf16.msra.mxu0 %v2430
    %3915 = vmatpush.bf16.msra.mxu0 %v2414
    %3916 = vmatpush.bf16.msra.mxu0 %v2398
    %3917 = vmatmul.bf16.gmra.mxu0 %v587
    %v3918 = vpop.f32.mrf.mxu0
    %v3919 = vadd.f32 %v3905, %v3918
    %v3920 = vpop.f32.mrf.mxu0
    %v3921 = vadd.f32 %v3907, %v3920
    %3922 = vdwg.mxu0
    %3923 = vmatpush.bf16.msra.mxu0 %v2638
    %3924 = vmatpush.bf16.msra.mxu0 %v2622
    %3925 = vmatpush.bf16.msra.mxu0 %v2606
    %3926 = vmatpush.bf16.msra.mxu0 %v2590
    %3927 = vmatpush.bf16.msra.mxu0 %v2574
    %3928 = vmatpush.bf16.msra.mxu0 %v2558
    %3929 = vmatpush.bf16.msra.mxu0 %v2542
    %3930 = vmatpush.bf16.msra.mxu0 %v2526
    %3931 = vmatmul.bf16.gmra.mxu0 %v588
    %v3932 = vpop.f32.mrf.mxu0
    %v3933 = vadd.f32 %v3919, %v3932
    %v3934 = vpop.f32.mrf.mxu0
    %v3935 = vadd.f32 %v3921, %v3934
    %3936 = vdwg.mxu0
    %3937 = vmatpush.bf16.msra.mxu0 %v2255
    %3938 = vmatpush.bf16.msra.mxu0 %v2239
    %3939 = vmatpush.bf16.msra.mxu0 %v2223
    %3940 = vmatpush.bf16.msra.mxu0 %v2207
    %3941 = vmatpush.bf16.msra.mxu0 %v2191
    %3942 = vmatpush.bf16.msra.mxu0 %v2175
    %3943 = vmatpush.bf16.msra.mxu0 %v2159
    %3944 = vmatpush.bf16.msra.mxu0 %v2143
    %3945 = vmatmul.bf16.gmra.mxu0 %v585
    %v3946 = vpop.f32.mrf.mxu0
    %v3947 = vadd.f32 %v555, %v3946
    %v3948 = vpop.f32.mrf.mxu0
    %v3949 = vadd.f32 %v555, %v3948
    %3950 = vdwg.mxu0
    %3951 = vmatpush.bf16.msra.mxu0 %v2383
    %3952 = vmatpush.bf16.msra.mxu0 %v2367
    %3953 = vmatpush.bf16.msra.mxu0 %v2351
    %3954 = vmatpush.bf16.msra.mxu0 %v2335
    %3955 = vmatpush.bf16.msra.mxu0 %v2319
    %3956 = vmatpush.bf16.msra.mxu0 %v2303
    %3957 = vmatpush.bf16.msra.mxu0 %v2287
    %3958 = vmatpush.bf16.msra.mxu0 %v2271
    %3959 = vmatmul.bf16.gmra.mxu0 %v586
    %v3960 = vpop.f32.mrf.mxu0
    %v3961 = vadd.f32 %v3947, %v3960
    %v3962 = vpop.f32.mrf.mxu0
    %v3963 = vadd.f32 %v3949, %v3962
    %3964 = vdwg.mxu0
    %3965 = vmatpush.bf16.msra.mxu0 %v2511
    %3966 = vmatpush.bf16.msra.mxu0 %v2495
    %3967 = vmatpush.bf16.msra.mxu0 %v2479
    %3968 = vmatpush.bf16.msra.mxu0 %v2463
    %3969 = vmatpush.bf16.msra.mxu0 %v2447
    %3970 = vmatpush.bf16.msra.mxu0 %v2431
    %3971 = vmatpush.bf16.msra.mxu0 %v2415
    %3972 = vmatpush.bf16.msra.mxu0 %v2399
    %3973 = vmatmul.bf16.gmra.mxu0 %v587
    %v3974 = vpop.f32.mrf.mxu0
    %v3975 = vadd.f32 %v3961, %v3974
    %v3976 = vpop.f32.mrf.mxu0
    %v3977 = vadd.f32 %v3963, %v3976
    %3978 = vdwg.mxu0
    %3979 = vmatpush.bf16.msra.mxu0 %v2639
    %3980 = vmatpush.bf16.msra.mxu0 %v2623
    %3981 = vmatpush.bf16.msra.mxu0 %v2607
    %3982 = vmatpush.bf16.msra.mxu0 %v2591
    %3983 = vmatpush.bf16.msra.mxu0 %v2575
    %3984 = vmatpush.bf16.msra.mxu0 %v2559
    %3985 = vmatpush.bf16.msra.mxu0 %v2543
    %3986 = vmatpush.bf16.msra.mxu0 %v2527
    %3987 = vmatmul.bf16.gmra.mxu0 %v588
    %v3988 = vpop.f32.mrf.mxu0
    %v3989 = vadd.f32 %v3975, %v3988
    %v3990 = vpop.f32.mrf.mxu0
    %v3991 = vadd.f32 %v3977, %v3990
    %3992 = vdwg.mxu0
    %3993 = vmatpush.bf16.msra.mxu0 %v2256
    %3994 = vmatpush.bf16.msra.mxu0 %v2240
    %3995 = vmatpush.bf16.msra.mxu0 %v2224
    %3996 = vmatpush.bf16.msra.mxu0 %v2208
    %3997 = vmatpush.bf16.msra.mxu0 %v2192
    %3998 = vmatpush.bf16.msra.mxu0 %v2176
    %3999 = vmatpush.bf16.msra.mxu0 %v2160
    %4000 = vmatpush.bf16.msra.mxu0 %v2144
    %4001 = vmatmul.bf16.gmra.mxu0 %v585
    %v4002 = vpop.f32.mrf.mxu0
    %v4003 = vadd.f32 %v556, %v4002
    %v4004 = vpop.f32.mrf.mxu0
    %v4005 = vadd.f32 %v556, %v4004
    %4006 = vdwg.mxu0
    %4007 = vmatpush.bf16.msra.mxu0 %v2384
    %4008 = vmatpush.bf16.msra.mxu0 %v2368
    %4009 = vmatpush.bf16.msra.mxu0 %v2352
    %4010 = vmatpush.bf16.msra.mxu0 %v2336
    %4011 = vmatpush.bf16.msra.mxu0 %v2320
    %4012 = vmatpush.bf16.msra.mxu0 %v2304
    %4013 = vmatpush.bf16.msra.mxu0 %v2288
    %4014 = vmatpush.bf16.msra.mxu0 %v2272
    %4015 = vmatmul.bf16.gmra.mxu0 %v586
    %v4016 = vpop.f32.mrf.mxu0
    %v4017 = vadd.f32 %v4003, %v4016
    %v4018 = vpop.f32.mrf.mxu0
    %v4019 = vadd.f32 %v4005, %v4018
    %4020 = vdwg.mxu0
    %4021 = vmatpush.bf16.msra.mxu0 %v2512
    %4022 = vmatpush.bf16.msra.mxu0 %v2496
    %4023 = vmatpush.bf16.msra.mxu0 %v2480
    %4024 = vmatpush.bf16.msra.mxu0 %v2464
    %4025 = vmatpush.bf16.msra.mxu0 %v2448
    %4026 = vmatpush.bf16.msra.mxu0 %v2432
    %4027 = vmatpush.bf16.msra.mxu0 %v2416
    %4028 = vmatpush.bf16.msra.mxu0 %v2400
    %4029 = vmatmul.bf16.gmra.mxu0 %v587
    %v4030 = vpop.f32.mrf.mxu0
    %v4031 = vadd.f32 %v4017, %v4030
    %v4032 = vpop.f32.mrf.mxu0
    %v4033 = vadd.f32 %v4019, %v4032
    %4034 = vdwg.mxu0
    %4035 = vmatpush.bf16.msra.mxu0 %v2640
    %4036 = vmatpush.bf16.msra.mxu0 %v2624
    %4037 = vmatpush.bf16.msra.mxu0 %v2608
    %4038 = vmatpush.bf16.msra.mxu0 %v2592
    %4039 = vmatpush.bf16.msra.mxu0 %v2576
    %4040 = vmatpush.bf16.msra.mxu0 %v2560
    %4041 = vmatpush.bf16.msra.mxu0 %v2544
    %4042 = vmatpush.bf16.msra.mxu0 %v2528
    %4043 = vmatmul.bf16.gmra.mxu0 %v588
    %v4044 = vpop.f32.mrf.mxu0
    %v4045 = vadd.f32 %v4031, %v4044
    %v4046 = vpop.f32.mrf.mxu0
    %v4047 = vadd.f32 %v4033, %v4046
    %4048 = vdwg.mxu0
    %v4049 = vmax.f32 %v3205, 0.0
    %v4050 = vmax.f32 %v3261, 0.0
    %v4051 = vmax.f32 %v3317, 0.0
    %v4052 = vmax.f32 %v3373, 0.0
    %v4053 = vmax.f32 %v3429, 0.0
    %v4054 = vmax.f32 %v3485, 0.0
    %v4055 = vmax.f32 %v3541, 0.0
    %v4056 = vmax.f32 %v3597, 0.0
    %v4057 = vmax.f32 %v3653, 0.0
    %v4058 = vmax.f32 %v3709, 0.0
    %v4059 = vmax.f32 %v3765, 0.0
    %v4060 = vmax.f32 %v3821, 0.0
    %v4061 = vmax.f32 %v3877, 0.0
    %v4062 = vmax.f32 %v3933, 0.0
    %v4063 = vmax.f32 %v3989, 0.0
    %v4064 = vmax.f32 %v4045, 0.0
    %v4065 = vmax.f32 %v3207, 0.0
    %v4066 = vmax.f32 %v3263, 0.0
    %v4067 = vmax.f32 %v3319, 0.0
    %v4068 = vmax.f32 %v3375, 0.0
    %v4069 = vmax.f32 %v3431, 0.0
    %v4070 = vmax.f32 %v3487, 0.0
    %v4071 = vmax.f32 %v3543, 0.0
    %v4072 = vmax.f32 %v3599, 0.0
    %v4073 = vmax.f32 %v3655, 0.0
    %v4074 = vmax.f32 %v3711, 0.0
    %v4075 = vmax.f32 %v3767, 0.0
    %v4076 = vmax.f32 %v3823, 0.0
    %v4077 = vmax.f32 %v3879, 0.0
    %v4078 = vmax.f32 %v3935, 0.0
    %v4079 = vmax.f32 %v3991, 0.0
    %v4080 = vmax.f32 %v4047, 0.0
    %v4081 = vpack.c.bf16 %v4065, %v4049
    %v4082 = vpack.c.bf16 %v4066, %v4050
    %v4083 = vpack.c.bf16 %v4067, %v4051
    %v4084 = vpack.c.bf16 %v4068, %v4052
    %v4085 = vpack.c.bf16 %v4069, %v4053
    %v4086 = vpack.c.bf16 %v4070, %v4054
    %v4087 = vpack.c.bf16 %v4071, %v4055
    %v4088 = vpack.c.bf16 %v4072, %v4056
    %v4089 = vpack.c.bf16 %v4073, %v4057
    %v4090 = vpack.c.bf16 %v4074, %v4058
    %v4091 = vpack.c.bf16 %v4075, %v4059
    %v4092 = vpack.c.bf16 %v4076, %v4060
    %v4093 = vpack.c.bf16 %v4077, %v4061
    %v4094 = vpack.c.bf16 %v4078, %v4062
    %v4095 = vpack.c.bf16 %v4079, %v4063
    %v4096 = vpack.c.bf16 %v4080, %v4064
    %v4097 = vld [vmem:[%s3] sm:$0xff]
    %v4098 = vld [vmem:[%s3 + $0x8] sm:$0xff]
    %v4099 = vld [vmem:[%s3 + $0x10] sm:$0xff]
    %v4100 = vld [vmem:[%s3 + $0x18] sm:$0xff]
    %v4101 = vld [vmem:[%s3 + $0x20] sm:$0xff]
    %v4102 = vld [vmem:[%s3 + $0x28] sm:$0xff]
    %v4103 = vld [vmem:[%s3 + $0x30] sm:$0xff]
    %v4104 = vld [vmem:[%s3 + $0x38] sm:$0xff]
    %v4105 = vld [vmem:[%s3 + $0x40] sm:$0xff]
    %v4106 = vld [vmem:[%s3 + $0x48] sm:$0xff]
    %v4107 = vld [vmem:[%s3 + $0x50] sm:$0xff]
    %v4108 = vld [vmem:[%s3 + $0x58] sm:$0xff]
    %v4109 = vld [vmem:[%s3 + $0x60] sm:$0xff]
    %v4110 = vld [vmem:[%s3 + $0x68] sm:$0xff]
    %v4111 = vld [vmem:[%s3 + $0x70] sm:$0xff]
    %v4112 = vld [vmem:[%s3 + $0x78] sm:$0xff]
    %v4113 = vld [vmem:[%s3 + $0x80] sm:$0xff]
    %v4114 = vld [vmem:[%s3 + $0x88] sm:$0xff]
    %v4115 = vld [vmem:[%s3 + $0x90] sm:$0xff]
    %v4116 = vld [vmem:[%s3 + $0x98] sm:$0xff]
    %v4117 = vld [vmem:[%s3 + $0xa0] sm:$0xff]
    %v4118 = vld [vmem:[%s3 + $0xa8] sm:$0xff]
    %v4119 = vld [vmem:[%s3 + $0xb0] sm:$0xff]
    %v4120 = vld [vmem:[%s3 + $0xb8] sm:$0xff]
    %v4121 = vld [vmem:[%s3 + $0xc0] sm:$0xff]
    %v4122 = vld [vmem:[%s3 + $0xc8] sm:$0xff]
    %v4123 = vld [vmem:[%s3 + $0xd0] sm:$0xff]
    %v4124 = vld [vmem:[%s3 + $0xd8] sm:$0xff]
    %v4125 = vld [vmem:[%s3 + $0xe0] sm:$0xff]
    %v4126 = vld [vmem:[%s3 + $0xe8] sm:$0xff]
    %v4127 = vld [vmem:[%s3 + $0xf0] sm:$0xff]
    %v4128 = vld [vmem:[%s3 + $0xf8] sm:$0xff]
    %v4129 = vld [vmem:[%s3 + $0x100] sm:$0xff]
    %v4130 = vld [vmem:[%s3 + $0x108] sm:$0xff]
    %v4131 = vld [vmem:[%s3 + $0x110] sm:$0xff]
    %v4132 = vld [vmem:[%s3 + $0x118] sm:$0xff]
    %v4133 = vld [vmem:[%s3 + $0x120] sm:$0xff]
    %v4134 = vld [vmem:[%s3 + $0x128] sm:$0xff]
    %v4135 = vld [vmem:[%s3 + $0x130] sm:$0xff]
    %v4136 = vld [vmem:[%s3 + $0x138] sm:$0xff]
    %v4137 = vld [vmem:[%s3 + $0x140] sm:$0xff]
    %v4138 = vld [vmem:[%s3 + $0x148] sm:$0xff]
    %v4139 = vld [vmem:[%s3 + $0x150] sm:$0xff]
    %v4140 = vld [vmem:[%s3 + $0x158] sm:$0xff]
    %v4141 = vld [vmem:[%s3 + $0x160] sm:$0xff]
    %v4142 = vld [vmem:[%s3 + $0x168] sm:$0xff]
    %v4143 = vld [vmem:[%s3 + $0x170] sm:$0xff]
    %v4144 = vld [vmem:[%s3 + $0x178] sm:$0xff]
    %v4145 = vld [vmem:[%s3 + $0x180] sm:$0xff]
    %v4146 = vld [vmem:[%s3 + $0x188] sm:$0xff]
    %v4147 = vld [vmem:[%s3 + $0x190] sm:$0xff]
    %v4148 = vld [vmem:[%s3 + $0x198] sm:$0xff]
    %v4149 = vld [vmem:[%s3 + $0x1a0] sm:$0xff]
    %v4150 = vld [vmem:[%s3 + $0x1a8] sm:$0xff]
    %v4151 = vld [vmem:[%s3 + $0x1b0] sm:$0xff]
    %v4152 = vld [vmem:[%s3 + $0x1b8] sm:$0xff]
    %v4153 = vld [vmem:[%s3 + $0x1c0] sm:$0xff]
    %v4154 = vld [vmem:[%s3 + $0x1c8] sm:$0xff]
    %v4155 = vld [vmem:[%s3 + $0x1d0] sm:$0xff]
    %v4156 = vld [vmem:[%s3 + $0x1d8] sm:$0xff]
    %v4157 = vld [vmem:[%s3 + $0x1e0] sm:$0xff]
    %v4158 = vld [vmem:[%s3 + $0x1e8] sm:$0xff]
    %v4159 = vld [vmem:[%s3 + $0x1f0] sm:$0xff]
    %v4160 = vld [vmem:[%s3 + $0x1f8] sm:$0xff]
    %v4161 = vld [vmem:[%s3 + $0x200] sm:$0xff]
    %v4162 = vld [vmem:[%s3 + $0x208] sm:$0xff]
    %v4163 = vld [vmem:[%s3 + $0x210] sm:$0xff]
    %v4164 = vld [vmem:[%s3 + $0x218] sm:$0xff]
    %v4165 = vld [vmem:[%s3 + $0x220] sm:$0xff]
    %v4166 = vld [vmem:[%s3 + $0x228] sm:$0xff]
    %v4167 = vld [vmem:[%s3 + $0x230] sm:$0xff]
    %v4168 = vld [vmem:[%s3 + $0x238] sm:$0xff]
    %v4169 = vld [vmem:[%s3 + $0x240] sm:$0xff]
    %v4170 = vld [vmem:[%s3 + $0x248] sm:$0xff]
    %v4171 = vld [vmem:[%s3 + $0x250] sm:$0xff]
    %v4172 = vld [vmem:[%s3 + $0x258] sm:$0xff]
    %v4173 = vld [vmem:[%s3 + $0x260] sm:$0xff]
    %v4174 = vld [vmem:[%s3 + $0x268] sm:$0xff]
    %v4175 = vld [vmem:[%s3 + $0x270] sm:$0xff]
    %v4176 = vld [vmem:[%s3 + $0x278] sm:$0xff]
    %v4177 = vld [vmem:[%s3 + $0x280] sm:$0xff]
    %v4178 = vld [vmem:[%s3 + $0x288] sm:$0xff]
    %v4179 = vld [vmem:[%s3 + $0x290] sm:$0xff]
    %v4180 = vld [vmem:[%s3 + $0x298] sm:$0xff]
    %v4181 = vld [vmem:[%s3 + $0x2a0] sm:$0xff]
    %v4182 = vld [vmem:[%s3 + $0x2a8] sm:$0xff]
    %v4183 = vld [vmem:[%s3 + $0x2b0] sm:$0xff]
    %v4184 = vld [vmem:[%s3 + $0x2b8] sm:$0xff]
    %v4185 = vld [vmem:[%s3 + $0x2c0] sm:$0xff]
    %v4186 = vld [vmem:[%s3 + $0x2c8] sm:$0xff]
    %v4187 = vld [vmem:[%s3 + $0x2d0] sm:$0xff]
    %v4188 = vld [vmem:[%s3 + $0x2d8] sm:$0xff]
    %v4189 = vld [vmem:[%s3 + $0x2e0] sm:$0xff]
    %v4190 = vld [vmem:[%s3 + $0x2e8] sm:$0xff]
    %v4191 = vld [vmem:[%s3 + $0x2f0] sm:$0xff]
    %v4192 = vld [vmem:[%s3 + $0x2f8] sm:$0xff]
    %v4193 = vld [vmem:[%s3 + $0x300] sm:$0xff]
    %v4194 = vld [vmem:[%s3 + $0x308] sm:$0xff]
    %v4195 = vld [vmem:[%s3 + $0x310] sm:$0xff]
    %v4196 = vld [vmem:[%s3 + $0x318] sm:$0xff]
    %v4197 = vld [vmem:[%s3 + $0x320] sm:$0xff]
    %v4198 = vld [vmem:[%s3 + $0x328] sm:$0xff]
    %v4199 = vld [vmem:[%s3 + $0x330] sm:$0xff]
    %v4200 = vld [vmem:[%s3 + $0x338] sm:$0xff]
    %v4201 = vld [vmem:[%s3 + $0x340] sm:$0xff]
    %v4202 = vld [vmem:[%s3 + $0x348] sm:$0xff]
    %v4203 = vld [vmem:[%s3 + $0x350] sm:$0xff]
    %v4204 = vld [vmem:[%s3 + $0x358] sm:$0xff]
    %v4205 = vld [vmem:[%s3 + $0x360] sm:$0xff]
    %v4206 = vld [vmem:[%s3 + $0x368] sm:$0xff]
    %v4207 = vld [vmem:[%s3 + $0x370] sm:$0xff]
    %v4208 = vld [vmem:[%s3 + $0x378] sm:$0xff]
    %v4209 = vld [vmem:[%s3 + $0x380] sm:$0xff]
    %v4210 = vld [vmem:[%s3 + $0x388] sm:$0xff]
    %v4211 = vld [vmem:[%s3 + $0x390] sm:$0xff]
    %v4212 = vld [vmem:[%s3 + $0x398] sm:$0xff]
    %v4213 = vld [vmem:[%s3 + $0x3a0] sm:$0xff]
    %v4214 = vld [vmem:[%s3 + $0x3a8] sm:$0xff]
    %v4215 = vld [vmem:[%s3 + $0x3b0] sm:$0xff]
    %v4216 = vld [vmem:[%s3 + $0x3b8] sm:$0xff]
    %v4217 = vld [vmem:[%s3 + $0x3c0] sm:$0xff]
    %v4218 = vld [vmem:[%s3 + $0x3c8] sm:$0xff]
    %v4219 = vld [vmem:[%s3 + $0x3d0] sm:$0xff]
    %v4220 = vld [vmem:[%s3 + $0x3d8] sm:$0xff]
    %v4221 = vld [vmem:[%s3 + $0x3e0] sm:$0xff]
    %v4222 = vld [vmem:[%s3 + $0x3e8] sm:$0xff]
    %v4223 = vld [vmem:[%s3 + $0x3f0] sm:$0xff]
    %v4224 = vld [vmem:[%s3 + $0x3f8] sm:$0xff]
    %v4225 = vld [vmem:[%s3 + $0x400] sm:$0xff]
    %v4226 = vld [vmem:[%s3 + $0x408] sm:$0xff]
    %v4227 = vld [vmem:[%s3 + $0x410] sm:$0xff]
    %v4228 = vld [vmem:[%s3 + $0x418] sm:$0xff]
    %v4229 = vld [vmem:[%s3 + $0x420] sm:$0xff]
    %v4230 = vld [vmem:[%s3 + $0x428] sm:$0xff]
    %v4231 = vld [vmem:[%s3 + $0x430] sm:$0xff]
    %v4232 = vld [vmem:[%s3 + $0x438] sm:$0xff]
    %v4233 = vld [vmem:[%s3 + $0x440] sm:$0xff]
    %v4234 = vld [vmem:[%s3 + $0x448] sm:$0xff]
    %v4235 = vld [vmem:[%s3 + $0x450] sm:$0xff]
    %v4236 = vld [vmem:[%s3 + $0x458] sm:$0xff]
    %v4237 = vld [vmem:[%s3 + $0x460] sm:$0xff]
    %v4238 = vld [vmem:[%s3 + $0x468] sm:$0xff]
    %v4239 = vld [vmem:[%s3 + $0x470] sm:$0xff]
    %v4240 = vld [vmem:[%s3 + $0x478] sm:$0xff]
    %v4241 = vld [vmem:[%s3 + $0x480] sm:$0xff]
    %v4242 = vld [vmem:[%s3 + $0x488] sm:$0xff]
    %v4243 = vld [vmem:[%s3 + $0x490] sm:$0xff]
    %v4244 = vld [vmem:[%s3 + $0x498] sm:$0xff]
    %v4245 = vld [vmem:[%s3 + $0x4a0] sm:$0xff]
    %v4246 = vld [vmem:[%s3 + $0x4a8] sm:$0xff]
    %v4247 = vld [vmem:[%s3 + $0x4b0] sm:$0xff]
    %v4248 = vld [vmem:[%s3 + $0x4b8] sm:$0xff]
    %v4249 = vld [vmem:[%s3 + $0x4c0] sm:$0xff]
    %v4250 = vld [vmem:[%s3 + $0x4c8] sm:$0xff]
    %v4251 = vld [vmem:[%s3 + $0x4d0] sm:$0xff]
    %v4252 = vld [vmem:[%s3 + $0x4d8] sm:$0xff]
    %v4253 = vld [vmem:[%s3 + $0x4e0] sm:$0xff]
    %v4254 = vld [vmem:[%s3 + $0x4e8] sm:$0xff]
    %v4255 = vld [vmem:[%s3 + $0x4f0] sm:$0xff]
    %v4256 = vld [vmem:[%s3 + $0x4f8] sm:$0xff]
    %v4257 = vld [vmem:[%s3 + $0x500] sm:$0xff]
    %v4258 = vld [vmem:[%s3 + $0x508] sm:$0xff]
    %v4259 = vld [vmem:[%s3 + $0x510] sm:$0xff]
    %v4260 = vld [vmem:[%s3 + $0x518] sm:$0xff]
    %v4261 = vld [vmem:[%s3 + $0x520] sm:$0xff]
    %v4262 = vld [vmem:[%s3 + $0x528] sm:$0xff]
    %v4263 = vld [vmem:[%s3 + $0x530] sm:$0xff]
    %v4264 = vld [vmem:[%s3 + $0x538] sm:$0xff]
    %v4265 = vld [vmem:[%s3 + $0x540] sm:$0xff]
    %v4266 = vld [vmem:[%s3 + $0x548] sm:$0xff]
    %v4267 = vld [vmem:[%s3 + $0x550] sm:$0xff]
    %v4268 = vld [vmem:[%s3 + $0x558] sm:$0xff]
    %v4269 = vld [vmem:[%s3 + $0x560] sm:$0xff]
    %v4270 = vld [vmem:[%s3 + $0x568] sm:$0xff]
    %v4271 = vld [vmem:[%s3 + $0x570] sm:$0xff]
    %v4272 = vld [vmem:[%s3 + $0x578] sm:$0xff]
    %v4273 = vld [vmem:[%s3 + $0x580] sm:$0xff]
    %v4274 = vld [vmem:[%s3 + $0x588] sm:$0xff]
    %v4275 = vld [vmem:[%s3 + $0x590] sm:$0xff]
    %v4276 = vld [vmem:[%s3 + $0x598] sm:$0xff]
    %v4277 = vld [vmem:[%s3 + $0x5a0] sm:$0xff]
    %v4278 = vld [vmem:[%s3 + $0x5a8] sm:$0xff]
    %v4279 = vld [vmem:[%s3 + $0x5b0] sm:$0xff]
    %v4280 = vld [vmem:[%s3 + $0x5b8] sm:$0xff]
    %v4281 = vld [vmem:[%s3 + $0x5c0] sm:$0xff]
    %v4282 = vld [vmem:[%s3 + $0x5c8] sm:$0xff]
    %v4283 = vld [vmem:[%s3 + $0x5d0] sm:$0xff]
    %v4284 = vld [vmem:[%s3 + $0x5d8] sm:$0xff]
    %v4285 = vld [vmem:[%s3 + $0x5e0] sm:$0xff]
    %v4286 = vld [vmem:[%s3 + $0x5e8] sm:$0xff]
    %v4287 = vld [vmem:[%s3 + $0x5f0] sm:$0xff]
    %v4288 = vld [vmem:[%s3 + $0x5f8] sm:$0xff]
    %v4289 = vld [vmem:[%s3 + $0x600] sm:$0xff]
    %v4290 = vld [vmem:[%s3 + $0x608] sm:$0xff]
    %v4291 = vld [vmem:[%s3 + $0x610] sm:$0xff]
    %v4292 = vld [vmem:[%s3 + $0x618] sm:$0xff]
    %v4293 = vld [vmem:[%s3 + $0x620] sm:$0xff]
    %v4294 = vld [vmem:[%s3 + $0x628] sm:$0xff]
    %v4295 = vld [vmem:[%s3 + $0x630] sm:$0xff]
    %v4296 = vld [vmem:[%s3 + $0x638] sm:$0xff]
    %v4297 = vld [vmem:[%s3 + $0x640] sm:$0xff]
    %v4298 = vld [vmem:[%s3 + $0x648] sm:$0xff]
    %v4299 = vld [vmem:[%s3 + $0x650] sm:$0xff]
    %v4300 = vld [vmem:[%s3 + $0x658] sm:$0xff]
    %v4301 = vld [vmem:[%s3 + $0x660] sm:$0xff]
    %v4302 = vld [vmem:[%s3 + $0x668] sm:$0xff]
    %v4303 = vld [vmem:[%s3 + $0x670] sm:$0xff]
    %v4304 = vld [vmem:[%s3 + $0x678] sm:$0xff]
    %v4305 = vld [vmem:[%s3 + $0x680] sm:$0xff]
    %v4306 = vld [vmem:[%s3 + $0x688] sm:$0xff]
    %v4307 = vld [vmem:[%s3 + $0x690] sm:$0xff]
    %v4308 = vld [vmem:[%s3 + $0x698] sm:$0xff]
    %v4309 = vld [vmem:[%s3 + $0x6a0] sm:$0xff]
    %v4310 = vld [vmem:[%s3 + $0x6a8] sm:$0xff]
    %v4311 = vld [vmem:[%s3 + $0x6b0] sm:$0xff]
    %v4312 = vld [vmem:[%s3 + $0x6b8] sm:$0xff]
    %v4313 = vld [vmem:[%s3 + $0x6c0] sm:$0xff]
    %v4314 = vld [vmem:[%s3 + $0x6c8] sm:$0xff]
    %v4315 = vld [vmem:[%s3 + $0x6d0] sm:$0xff]
    %v4316 = vld [vmem:[%s3 + $0x6d8] sm:$0xff]
    %v4317 = vld [vmem:[%s3 + $0x6e0] sm:$0xff]
    %v4318 = vld [vmem:[%s3 + $0x6e8] sm:$0xff]
    %v4319 = vld [vmem:[%s3 + $0x6f0] sm:$0xff]
    %v4320 = vld [vmem:[%s3 + $0x6f8] sm:$0xff]
    %v4321 = vld [vmem:[%s3 + $0x700] sm:$0xff]
    %v4322 = vld [vmem:[%s3 + $0x708] sm:$0xff]
    %v4323 = vld [vmem:[%s3 + $0x710] sm:$0xff]
    %v4324 = vld [vmem:[%s3 + $0x718] sm:$0xff]
    %v4325 = vld [vmem:[%s3 + $0x720] sm:$0xff]
    %v4326 = vld [vmem:[%s3 + $0x728] sm:$0xff]
    %v4327 = vld [vmem:[%s3 + $0x730] sm:$0xff]
    %v4328 = vld [vmem:[%s3 + $0x738] sm:$0xff]
    %v4329 = vld [vmem:[%s3 + $0x740] sm:$0xff]
    %v4330 = vld [vmem:[%s3 + $0x748] sm:$0xff]
    %v4331 = vld [vmem:[%s3 + $0x750] sm:$0xff]
    %v4332 = vld [vmem:[%s3 + $0x758] sm:$0xff]
    %v4333 = vld [vmem:[%s3 + $0x760] sm:$0xff]
    %v4334 = vld [vmem:[%s3 + $0x768] sm:$0xff]
    %v4335 = vld [vmem:[%s3 + $0x770] sm:$0xff]
    %v4336 = vld [vmem:[%s3 + $0x778] sm:$0xff]
    %v4337 = vld [vmem:[%s3 + $0x780] sm:$0xff]
    %v4338 = vld [vmem:[%s3 + $0x788] sm:$0xff]
    %v4339 = vld [vmem:[%s3 + $0x790] sm:$0xff]
    %v4340 = vld [vmem:[%s3 + $0x798] sm:$0xff]
    %v4341 = vld [vmem:[%s3 + $0x7a0] sm:$0xff]
    %v4342 = vld [vmem:[%s3 + $0x7a8] sm:$0xff]
    %v4343 = vld [vmem:[%s3 + $0x7b0] sm:$0xff]
    %v4344 = vld [vmem:[%s3 + $0x7b8] sm:$0xff]
    %v4345 = vld [vmem:[%s3 + $0x7c0] sm:$0xff]
    %v4346 = vld [vmem:[%s3 + $0x7c8] sm:$0xff]
    %v4347 = vld [vmem:[%s3 + $0x7d0] sm:$0xff]
    %v4348 = vld [vmem:[%s3 + $0x7d8] sm:$0xff]
    %v4349 = vld [vmem:[%s3 + $0x7e0] sm:$0xff]
    %v4350 = vld [vmem:[%s3 + $0x7e8] sm:$0xff]
    %v4351 = vld [vmem:[%s3 + $0x7f0] sm:$0xff]
    %v4352 = vld [vmem:[%s3 + $0x7f8] sm:$0xff]
    %v4353 = vld [vmem:[%s3 + $0x800] sm:$0xff]
    %v4354 = vld [vmem:[%s3 + $0x808] sm:$0xff]
    %v4355 = vld [vmem:[%s3 + $0x810] sm:$0xff]
    %v4356 = vld [vmem:[%s3 + $0x818] sm:$0xff]
    %v4357 = vld [vmem:[%s3 + $0x820] sm:$0xff]
    %v4358 = vld [vmem:[%s3 + $0x828] sm:$0xff]
    %v4359 = vld [vmem:[%s3 + $0x830] sm:$0xff]
    %v4360 = vld [vmem:[%s3 + $0x838] sm:$0xff]
    %v4361 = vld [vmem:[%s3 + $0x840] sm:$0xff]
    %v4362 = vld [vmem:[%s3 + $0x848] sm:$0xff]
    %v4363 = vld [vmem:[%s3 + $0x850] sm:$0xff]
    %v4364 = vld [vmem:[%s3 + $0x858] sm:$0xff]
    %v4365 = vld [vmem:[%s3 + $0x860] sm:$0xff]
    %v4366 = vld [vmem:[%s3 + $0x868] sm:$0xff]
    %v4367 = vld [vmem:[%s3 + $0x870] sm:$0xff]
    %v4368 = vld [vmem:[%s3 + $0x878] sm:$0xff]
    %v4369 = vld [vmem:[%s3 + $0x880] sm:$0xff]
    %v4370 = vld [vmem:[%s3 + $0x888] sm:$0xff]
    %v4371 = vld [vmem:[%s3 + $0x890] sm:$0xff]
    %v4372 = vld [vmem:[%s3 + $0x898] sm:$0xff]
    %v4373 = vld [vmem:[%s3 + $0x8a0] sm:$0xff]
    %v4374 = vld [vmem:[%s3 + $0x8a8] sm:$0xff]
    %v4375 = vld [vmem:[%s3 + $0x8b0] sm:$0xff]
    %v4376 = vld [vmem:[%s3 + $0x8b8] sm:$0xff]
    %v4377 = vld [vmem:[%s3 + $0x8c0] sm:$0xff]
    %v4378 = vld [vmem:[%s3 + $0x8c8] sm:$0xff]
    %v4379 = vld [vmem:[%s3 + $0x8d0] sm:$0xff]
    %v4380 = vld [vmem:[%s3 + $0x8d8] sm:$0xff]
    %v4381 = vld [vmem:[%s3 + $0x8e0] sm:$0xff]
    %v4382 = vld [vmem:[%s3 + $0x8e8] sm:$0xff]
    %v4383 = vld [vmem:[%s3 + $0x8f0] sm:$0xff]
    %v4384 = vld [vmem:[%s3 + $0x8f8] sm:$0xff]
    %v4385 = vld [vmem:[%s3 + $0x900] sm:$0xff]
    %v4386 = vld [vmem:[%s3 + $0x908] sm:$0xff]
    %v4387 = vld [vmem:[%s3 + $0x910] sm:$0xff]
    %v4388 = vld [vmem:[%s3 + $0x918] sm:$0xff]
    %v4389 = vld [vmem:[%s3 + $0x920] sm:$0xff]
    %v4390 = vld [vmem:[%s3 + $0x928] sm:$0xff]
    %v4391 = vld [vmem:[%s3 + $0x930] sm:$0xff]
    %v4392 = vld [vmem:[%s3 + $0x938] sm:$0xff]
    %v4393 = vld [vmem:[%s3 + $0x940] sm:$0xff]
    %v4394 = vld [vmem:[%s3 + $0x948] sm:$0xff]
    %v4395 = vld [vmem:[%s3 + $0x950] sm:$0xff]
    %v4396 = vld [vmem:[%s3 + $0x958] sm:$0xff]
    %v4397 = vld [vmem:[%s3 + $0x960] sm:$0xff]
    %v4398 = vld [vmem:[%s3 + $0x968] sm:$0xff]
    %v4399 = vld [vmem:[%s3 + $0x970] sm:$0xff]
    %v4400 = vld [vmem:[%s3 + $0x978] sm:$0xff]
    %v4401 = vld [vmem:[%s3 + $0x980] sm:$0xff]
    %v4402 = vld [vmem:[%s3 + $0x988] sm:$0xff]
    %v4403 = vld [vmem:[%s3 + $0x990] sm:$0xff]
    %v4404 = vld [vmem:[%s3 + $0x998] sm:$0xff]
    %v4405 = vld [vmem:[%s3 + $0x9a0] sm:$0xff]
    %v4406 = vld [vmem:[%s3 + $0x9a8] sm:$0xff]
    %v4407 = vld [vmem:[%s3 + $0x9b0] sm:$0xff]
    %v4408 = vld [vmem:[%s3 + $0x9b8] sm:$0xff]
    %v4409 = vld [vmem:[%s3 + $0x9c0] sm:$0xff]
    %v4410 = vld [vmem:[%s3 + $0x9c8] sm:$0xff]
    %v4411 = vld [vmem:[%s3 + $0x9d0] sm:$0xff]
    %v4412 = vld [vmem:[%s3 + $0x9d8] sm:$0xff]
    %v4413 = vld [vmem:[%s3 + $0x9e0] sm:$0xff]
    %v4414 = vld [vmem:[%s3 + $0x9e8] sm:$0xff]
    %v4415 = vld [vmem:[%s3 + $0x9f0] sm:$0xff]
    %v4416 = vld [vmem:[%s3 + $0x9f8] sm:$0xff]
    %v4417 = vld [vmem:[%s3 + $0xa00] sm:$0xff]
    %v4418 = vld [vmem:[%s3 + $0xa08] sm:$0xff]
    %v4419 = vld [vmem:[%s3 + $0xa10] sm:$0xff]
    %v4420 = vld [vmem:[%s3 + $0xa18] sm:$0xff]
    %v4421 = vld [vmem:[%s3 + $0xa20] sm:$0xff]
    %v4422 = vld [vmem:[%s3 + $0xa28] sm:$0xff]
    %v4423 = vld [vmem:[%s3 + $0xa30] sm:$0xff]
    %v4424 = vld [vmem:[%s3 + $0xa38] sm:$0xff]
    %v4425 = vld [vmem:[%s3 + $0xa40] sm:$0xff]
    %v4426 = vld [vmem:[%s3 + $0xa48] sm:$0xff]
    %v4427 = vld [vmem:[%s3 + $0xa50] sm:$0xff]
    %v4428 = vld [vmem:[%s3 + $0xa58] sm:$0xff]
    %v4429 = vld [vmem:[%s3 + $0xa60] sm:$0xff]
    %v4430 = vld [vmem:[%s3 + $0xa68] sm:$0xff]
    %v4431 = vld [vmem:[%s3 + $0xa70] sm:$0xff]
    %v4432 = vld [vmem:[%s3 + $0xa78] sm:$0xff]
    %v4433 = vld [vmem:[%s3 + $0xa80] sm:$0xff]
    %v4434 = vld [vmem:[%s3 + $0xa88] sm:$0xff]
    %v4435 = vld [vmem:[%s3 + $0xa90] sm:$0xff]
    %v4436 = vld [vmem:[%s3 + $0xa98] sm:$0xff]
    %v4437 = vld [vmem:[%s3 + $0xaa0] sm:$0xff]
    %v4438 = vld [vmem:[%s3 + $0xaa8] sm:$0xff]
    %v4439 = vld [vmem:[%s3 + $0xab0] sm:$0xff]
    %v4440 = vld [vmem:[%s3 + $0xab8] sm:$0xff]
    %v4441 = vld [vmem:[%s3 + $0xac0] sm:$0xff]
    %v4442 = vld [vmem:[%s3 + $0xac8] sm:$0xff]
    %v4443 = vld [vmem:[%s3 + $0xad0] sm:$0xff]
    %v4444 = vld [vmem:[%s3 + $0xad8] sm:$0xff]
    %v4445 = vld [vmem:[%s3 + $0xae0] sm:$0xff]
    %v4446 = vld [vmem:[%s3 + $0xae8] sm:$0xff]
    %v4447 = vld [vmem:[%s3 + $0xaf0] sm:$0xff]
    %v4448 = vld [vmem:[%s3 + $0xaf8] sm:$0xff]
    %v4449 = vld [vmem:[%s3 + $0xb00] sm:$0xff]
    %v4450 = vld [vmem:[%s3 + $0xb08] sm:$0xff]
    %v4451 = vld [vmem:[%s3 + $0xb10] sm:$0xff]
    %v4452 = vld [vmem:[%s3 + $0xb18] sm:$0xff]
    %v4453 = vld [vmem:[%s3 + $0xb20] sm:$0xff]
    %v4454 = vld [vmem:[%s3 + $0xb28] sm:$0xff]
    %v4455 = vld [vmem:[%s3 + $0xb30] sm:$0xff]
    %v4456 = vld [vmem:[%s3 + $0xb38] sm:$0xff]
    %v4457 = vld [vmem:[%s3 + $0xb40] sm:$0xff]
    %v4458 = vld [vmem:[%s3 + $0xb48] sm:$0xff]
    %v4459 = vld [vmem:[%s3 + $0xb50] sm:$0xff]
    %v4460 = vld [vmem:[%s3 + $0xb58] sm:$0xff]
    %v4461 = vld [vmem:[%s3 + $0xb60] sm:$0xff]
    %v4462 = vld [vmem:[%s3 + $0xb68] sm:$0xff]
    %v4463 = vld [vmem:[%s3 + $0xb70] sm:$0xff]
    %v4464 = vld [vmem:[%s3 + $0xb78] sm:$0xff]
    %v4465 = vld [vmem:[%s3 + $0xb80] sm:$0xff]
    %v4466 = vld [vmem:[%s3 + $0xb88] sm:$0xff]
    %v4467 = vld [vmem:[%s3 + $0xb90] sm:$0xff]
    %v4468 = vld [vmem:[%s3 + $0xb98] sm:$0xff]
    %v4469 = vld [vmem:[%s3 + $0xba0] sm:$0xff]
    %v4470 = vld [vmem:[%s3 + $0xba8] sm:$0xff]
    %v4471 = vld [vmem:[%s3 + $0xbb0] sm:$0xff]
    %v4472 = vld [vmem:[%s3 + $0xbb8] sm:$0xff]
    %v4473 = vld [vmem:[%s3 + $0xbc0] sm:$0xff]
    %v4474 = vld [vmem:[%s3 + $0xbc8] sm:$0xff]
    %v4475 = vld [vmem:[%s3 + $0xbd0] sm:$0xff]
    %v4476 = vld [vmem:[%s3 + $0xbd8] sm:$0xff]
    %v4477 = vld [vmem:[%s3 + $0xbe0] sm:$0xff]
    %v4478 = vld [vmem:[%s3 + $0xbe8] sm:$0xff]
    %v4479 = vld [vmem:[%s3 + $0xbf0] sm:$0xff]
    %v4480 = vld [vmem:[%s3 + $0xbf8] sm:$0xff]
    %v4481 = vld [vmem:[%s3 + $0xc00] sm:$0xff]
    %v4482 = vld [vmem:[%s3 + $0xc08] sm:$0xff]
    %v4483 = vld [vmem:[%s3 + $0xc10] sm:$0xff]
    %v4484 = vld [vmem:[%s3 + $0xc18] sm:$0xff]
    %v4485 = vld [vmem:[%s3 + $0xc20] sm:$0xff]
    %v4486 = vld [vmem:[%s3 + $0xc28] sm:$0xff]
    %v4487 = vld [vmem:[%s3 + $0xc30] sm:$0xff]
    %v4488 = vld [vmem:[%s3 + $0xc38] sm:$0xff]
    %v4489 = vld [vmem:[%s3 + $0xc40] sm:$0xff]
    %v4490 = vld [vmem:[%s3 + $0xc48] sm:$0xff]
    %v4491 = vld [vmem:[%s3 + $0xc50] sm:$0xff]
    %v4492 = vld [vmem:[%s3 + $0xc58] sm:$0xff]
    %v4493 = vld [vmem:[%s3 + $0xc60] sm:$0xff]
    %v4494 = vld [vmem:[%s3 + $0xc68] sm:$0xff]
    %v4495 = vld [vmem:[%s3 + $0xc70] sm:$0xff]
    %v4496 = vld [vmem:[%s3 + $0xc78] sm:$0xff]
    %v4497 = vld [vmem:[%s3 + $0xc80] sm:$0xff]
    %v4498 = vld [vmem:[%s3 + $0xc88] sm:$0xff]
    %v4499 = vld [vmem:[%s3 + $0xc90] sm:$0xff]
    %v4500 = vld [vmem:[%s3 + $0xc98] sm:$0xff]
    %v4501 = vld [vmem:[%s3 + $0xca0] sm:$0xff]
    %v4502 = vld [vmem:[%s3 + $0xca8] sm:$0xff]
    %v4503 = vld [vmem:[%s3 + $0xcb0] sm:$0xff]
    %v4504 = vld [vmem:[%s3 + $0xcb8] sm:$0xff]
    %v4505 = vld [vmem:[%s3 + $0xcc0] sm:$0xff]
    %v4506 = vld [vmem:[%s3 + $0xcc8] sm:$0xff]
    %v4507 = vld [vmem:[%s3 + $0xcd0] sm:$0xff]
    %v4508 = vld [vmem:[%s3 + $0xcd8] sm:$0xff]
    %v4509 = vld [vmem:[%s3 + $0xce0] sm:$0xff]
    %v4510 = vld [vmem:[%s3 + $0xce8] sm:$0xff]
    %v4511 = vld [vmem:[%s3 + $0xcf0] sm:$0xff]
    %v4512 = vld [vmem:[%s3 + $0xcf8] sm:$0xff]
    %v4513 = vld [vmem:[%s3 + $0xd00] sm:$0xff]
    %v4514 = vld [vmem:[%s3 + $0xd08] sm:$0xff]
    %v4515 = vld [vmem:[%s3 + $0xd10] sm:$0xff]
    %v4516 = vld [vmem:[%s3 + $0xd18] sm:$0xff]
    %v4517 = vld [vmem:[%s3 + $0xd20] sm:$0xff]
    %v4518 = vld [vmem:[%s3 + $0xd28] sm:$0xff]
    %v4519 = vld [vmem:[%s3 + $0xd30] sm:$0xff]
    %v4520 = vld [vmem:[%s3 + $0xd38] sm:$0xff]
    %v4521 = vld [vmem:[%s3 + $0xd40] sm:$0xff]
    %v4522 = vld [vmem:[%s3 + $0xd48] sm:$0xff]
    %v4523 = vld [vmem:[%s3 + $0xd50] sm:$0xff]
    %v4524 = vld [vmem:[%s3 + $0xd58] sm:$0xff]
    %v4525 = vld [vmem:[%s3 + $0xd60] sm:$0xff]
    %v4526 = vld [vmem:[%s3 + $0xd68] sm:$0xff]
    %v4527 = vld [vmem:[%s3 + $0xd70] sm:$0xff]
    %v4528 = vld [vmem:[%s3 + $0xd78] sm:$0xff]
    %v4529 = vld [vmem:[%s3 + $0xd80] sm:$0xff]
    %v4530 = vld [vmem:[%s3 + $0xd88] sm:$0xff]
    %v4531 = vld [vmem:[%s3 + $0xd90] sm:$0xff]
    %v4532 = vld [vmem:[%s3 + $0xd98] sm:$0xff]
    %v4533 = vld [vmem:[%s3 + $0xda0] sm:$0xff]
    %v4534 = vld [vmem:[%s3 + $0xda8] sm:$0xff]
    %v4535 = vld [vmem:[%s3 + $0xdb0] sm:$0xff]
    %v4536 = vld [vmem:[%s3 + $0xdb8] sm:$0xff]
    %v4537 = vld [vmem:[%s3 + $0xdc0] sm:$0xff]
    %v4538 = vld [vmem:[%s3 + $0xdc8] sm:$0xff]
    %v4539 = vld [vmem:[%s3 + $0xdd0] sm:$0xff]
    %v4540 = vld [vmem:[%s3 + $0xdd8] sm:$0xff]
    %v4541 = vld [vmem:[%s3 + $0xde0] sm:$0xff]
    %v4542 = vld [vmem:[%s3 + $0xde8] sm:$0xff]
    %v4543 = vld [vmem:[%s3 + $0xdf0] sm:$0xff]
    %v4544 = vld [vmem:[%s3 + $0xdf8] sm:$0xff]
    %v4545 = vld [vmem:[%s3 + $0xe00] sm:$0xff]
    %v4546 = vld [vmem:[%s3 + $0xe08] sm:$0xff]
    %v4547 = vld [vmem:[%s3 + $0xe10] sm:$0xff]
    %v4548 = vld [vmem:[%s3 + $0xe18] sm:$0xff]
    %v4549 = vld [vmem:[%s3 + $0xe20] sm:$0xff]
    %v4550 = vld [vmem:[%s3 + $0xe28] sm:$0xff]
    %v4551 = vld [vmem:[%s3 + $0xe30] sm:$0xff]
    %v4552 = vld [vmem:[%s3 + $0xe38] sm:$0xff]
    %v4553 = vld [vmem:[%s3 + $0xe40] sm:$0xff]
    %v4554 = vld [vmem:[%s3 + $0xe48] sm:$0xff]
    %v4555 = vld [vmem:[%s3 + $0xe50] sm:$0xff]
    %v4556 = vld [vmem:[%s3 + $0xe58] sm:$0xff]
    %v4557 = vld [vmem:[%s3 + $0xe60] sm:$0xff]
    %v4558 = vld [vmem:[%s3 + $0xe68] sm:$0xff]
    %v4559 = vld [vmem:[%s3 + $0xe70] sm:$0xff]
    %v4560 = vld [vmem:[%s3 + $0xe78] sm:$0xff]
    %v4561 = vld [vmem:[%s3 + $0xe80] sm:$0xff]
    %v4562 = vld [vmem:[%s3 + $0xe88] sm:$0xff]
    %v4563 = vld [vmem:[%s3 + $0xe90] sm:$0xff]
    %v4564 = vld [vmem:[%s3 + $0xe98] sm:$0xff]
    %v4565 = vld [vmem:[%s3 + $0xea0] sm:$0xff]
    %v4566 = vld [vmem:[%s3 + $0xea8] sm:$0xff]
    %v4567 = vld [vmem:[%s3 + $0xeb0] sm:$0xff]
    %v4568 = vld [vmem:[%s3 + $0xeb8] sm:$0xff]
    %v4569 = vld [vmem:[%s3 + $0xec0] sm:$0xff]
    %v4570 = vld [vmem:[%s3 + $0xec8] sm:$0xff]
    %v4571 = vld [vmem:[%s3 + $0xed0] sm:$0xff]
    %v4572 = vld [vmem:[%s3 + $0xed8] sm:$0xff]
    %v4573 = vld [vmem:[%s3 + $0xee0] sm:$0xff]
    %v4574 = vld [vmem:[%s3 + $0xee8] sm:$0xff]
    %v4575 = vld [vmem:[%s3 + $0xef0] sm:$0xff]
    %v4576 = vld [vmem:[%s3 + $0xef8] sm:$0xff]
    %v4577 = vld [vmem:[%s3 + $0xf00] sm:$0xff]
    %v4578 = vld [vmem:[%s3 + $0xf08] sm:$0xff]
    %v4579 = vld [vmem:[%s3 + $0xf10] sm:$0xff]
    %v4580 = vld [vmem:[%s3 + $0xf18] sm:$0xff]
    %v4581 = vld [vmem:[%s3 + $0xf20] sm:$0xff]
    %v4582 = vld [vmem:[%s3 + $0xf28] sm:$0xff]
    %v4583 = vld [vmem:[%s3 + $0xf30] sm:$0xff]
    %v4584 = vld [vmem:[%s3 + $0xf38] sm:$0xff]
    %v4585 = vld [vmem:[%s3 + $0xf40] sm:$0xff]
    %v4586 = vld [vmem:[%s3 + $0xf48] sm:$0xff]
    %v4587 = vld [vmem:[%s3 + $0xf50] sm:$0xff]
    %v4588 = vld [vmem:[%s3 + $0xf58] sm:$0xff]
    %v4589 = vld [vmem:[%s3 + $0xf60] sm:$0xff]
    %v4590 = vld [vmem:[%s3 + $0xf68] sm:$0xff]
    %v4591 = vld [vmem:[%s3 + $0xf70] sm:$0xff]
    %v4592 = vld [vmem:[%s3 + $0xf78] sm:$0xff]
    %v4593 = vld [vmem:[%s3 + $0xf80] sm:$0xff]
    %v4594 = vld [vmem:[%s3 + $0xf88] sm:$0xff]
    %v4595 = vld [vmem:[%s3 + $0xf90] sm:$0xff]
    %v4596 = vld [vmem:[%s3 + $0xf98] sm:$0xff]
    %v4597 = vld [vmem:[%s3 + $0xfa0] sm:$0xff]
    %v4598 = vld [vmem:[%s3 + $0xfa8] sm:$0xff]
    %v4599 = vld [vmem:[%s3 + $0xfb0] sm:$0xff]
    %v4600 = vld [vmem:[%s3 + $0xfb8] sm:$0xff]
    %v4601 = vld [vmem:[%s3 + $0xfc0] sm:$0xff]
    %v4602 = vld [vmem:[%s3 + $0xfc8] sm:$0xff]
    %v4603 = vld [vmem:[%s3 + $0xfd0] sm:$0xff]
    %v4604 = vld [vmem:[%s3 + $0xfd8] sm:$0xff]
    %v4605 = vld [vmem:[%s3 + $0xfe0] sm:$0xff]
    %v4606 = vld [vmem:[%s3 + $0xfe8] sm:$0xff]
    %v4607 = vld [vmem:[%s3 + $0xff0] sm:$0xff]
    %v4608 = vld [vmem:[%s3 + $0xff8] sm:$0xff]
    %v4609 = vld [vmem:[%s4] sm:$0xf]
    %v4611 = vperm.slane %v4609, 0
    %v4612 = vperm.slane %v4609, 1
    %v4613 = vperm.slane %v4609, 2
    %v4614 = vperm.slane %v4609, 3
    %v5131 = vunpack.c.l.b16 %v4097
    %v5132 = vunpack.c.h.b16 %v4097
    %v5133 = vunpack.c.l.b16 %v4098
    %v5134 = vunpack.c.h.b16 %v4098
    %v5135 = vunpack.c.l.b16 %v4099
    %v5136 = vunpack.c.h.b16 %v4099
    %v5137 = vunpack.c.l.b16 %v4100
    %v5138 = vunpack.c.h.b16 %v4100
    %v5139 = vunpack.c.l.b16 %v4101
    %v5140 = vunpack.c.h.b16 %v4101
    %v5141 = vunpack.c.l.b16 %v4102
    %v5142 = vunpack.c.h.b16 %v4102
    %v5143 = vunpack.c.l.b16 %v4103
    %v5144 = vunpack.c.h.b16 %v4103
    %v5145 = vunpack.c.l.b16 %v4104
    %v5146 = vunpack.c.h.b16 %v4104
    %v5147 = vunpack.c.l.b16 %v4105
    %v5148 = vunpack.c.h.b16 %v4105
    %v5149 = vunpack.c.l.b16 %v4106
    %v5150 = vunpack.c.h.b16 %v4106
    %v5151 = vunpack.c.l.b16 %v4107
    %v5152 = vunpack.c.h.b16 %v4107
    %v5153 = vunpack.c.l.b16 %v4108
    %v5154 = vunpack.c.h.b16 %v4108
    %v5155 = vunpack.c.l.b16 %v4109
    %v5156 = vunpack.c.h.b16 %v4109
    %v5157 = vunpack.c.l.b16 %v4110
    %v5158 = vunpack.c.h.b16 %v4110
    %v5159 = vunpack.c.l.b16 %v4111
    %v5160 = vunpack.c.h.b16 %v4111
    %v5161 = vunpack.c.l.b16 %v4112
    %v5162 = vunpack.c.h.b16 %v4112
    %v5163 = vunpack.c.l.b16 %v4113
    %v5164 = vunpack.c.h.b16 %v4113
    %v5165 = vunpack.c.l.b16 %v4114
    %v5166 = vunpack.c.h.b16 %v4114
    %v5167 = vunpack.c.l.b16 %v4115
    %v5168 = vunpack.c.h.b16 %v4115
    %v5169 = vunpack.c.l.b16 %v4116
    %v5170 = vunpack.c.h.b16 %v4116
    %v5171 = vunpack.c.l.b16 %v4117
    %v5172 = vunpack.c.h.b16 %v4117
    %v5173 = vunpack.c.l.b16 %v4118
    %v5174 = vunpack.c.h.b16 %v4118
    %v5175 = vunpack.c.l.b16 %v4119
    %v5176 = vunpack.c.h.b16 %v4119
    %v5177 = vunpack.c.l.b16 %v4120
    %v5178 = vunpack.c.h.b16 %v4120
    %v5179 = vunpack.c.l.b16 %v4121
    %v5180 = vunpack.c.h.b16 %v4121
    %v5181 = vunpack.c.l.b16 %v4122
    %v5182 = vunpack.c.h.b16 %v4122
    %v5183 = vunpack.c.l.b16 %v4123
    %v5184 = vunpack.c.h.b16 %v4123
    %v5185 = vunpack.c.l.b16 %v4124
    %v5186 = vunpack.c.h.b16 %v4124
    %v5187 = vunpack.c.l.b16 %v4125
    %v5188 = vunpack.c.h.b16 %v4125
    %v5189 = vunpack.c.l.b16 %v4126
    %v5190 = vunpack.c.h.b16 %v4126
    %v5191 = vunpack.c.l.b16 %v4127
    %v5192 = vunpack.c.h.b16 %v4127
    %v5193 = vunpack.c.l.b16 %v4128
    %v5194 = vunpack.c.h.b16 %v4128
    %v5195 = vunpack.c.l.b16 %v4129
    %v5196 = vunpack.c.h.b16 %v4129
    %v5197 = vunpack.c.l.b16 %v4130
    %v5198 = vunpack.c.h.b16 %v4130
    %v5199 = vunpack.c.l.b16 %v4131
    %v5200 = vunpack.c.h.b16 %v4131
    %v5201 = vunpack.c.l.b16 %v4132
    %v5202 = vunpack.c.h.b16 %v4132
    %v5203 = vunpack.c.l.b16 %v4133
    %v5204 = vunpack.c.h.b16 %v4133
    %v5205 = vunpack.c.l.b16 %v4134
    %v5206 = vunpack.c.h.b16 %v4134
    %v5207 = vunpack.c.l.b16 %v4135
    %v5208 = vunpack.c.h.b16 %v4135
    %v5209 = vunpack.c.l.b16 %v4136
    %v5210 = vunpack.c.h.b16 %v4136
    %v5211 = vunpack.c.l.b16 %v4137
    %v5212 = vunpack.c.h.b16 %v4137
    %v5213 = vunpack.c.l.b16 %v4138
    %v5214 = vunpack.c.h.b16 %v4138
    %v5215 = vunpack.c.l.b16 %v4139
    %v5216 = vunpack.c.h.b16 %v4139
    %v5217 = vunpack.c.l.b16 %v4140
    %v5218 = vunpack.c.h.b16 %v4140
    %v5219 = vunpack.c.l.b16 %v4141
    %v5220 = vunpack.c.h.b16 %v4141
    %v5221 = vunpack.c.l.b16 %v4142
    %v5222 = vunpack.c.h.b16 %v4142
    %v5223 = vunpack.c.l.b16 %v4143
    %v5224 = vunpack.c.h.b16 %v4143
    %v5225 = vunpack.c.l.b16 %v4144
    %v5226 = vunpack.c.h.b16 %v4144
    %v5227 = vunpack.c.l.b16 %v4145
    %v5228 = vunpack.c.h.b16 %v4145
    %v5229 = vunpack.c.l.b16 %v4146
    %v5230 = vunpack.c.h.b16 %v4146
    %v5231 = vunpack.c.l.b16 %v4147
    %v5232 = vunpack.c.h.b16 %v4147
    %v5233 = vunpack.c.l.b16 %v4148
    %v5234 = vunpack.c.h.b16 %v4148
    %v5235 = vunpack.c.l.b16 %v4149
    %v5236 = vunpack.c.h.b16 %v4149
    %v5237 = vunpack.c.l.b16 %v4150
    %v5238 = vunpack.c.h.b16 %v4150
    %v5239 = vunpack.c.l.b16 %v4151
    %v5240 = vunpack.c.h.b16 %v4151
    %v5241 = vunpack.c.l.b16 %v4152
    %v5242 = vunpack.c.h.b16 %v4152
    %v5243 = vunpack.c.l.b16 %v4153
    %v5244 = vunpack.c.h.b16 %v4153
    %v5245 = vunpack.c.l.b16 %v4154
    %v5246 = vunpack.c.h.b16 %v4154
    %v5247 = vunpack.c.l.b16 %v4155
    %v5248 = vunpack.c.h.b16 %v4155
    %v5249 = vunpack.c.l.b16 %v4156
    %v5250 = vunpack.c.h.b16 %v4156
    %v5251 = vunpack.c.l.b16 %v4157
    %v5252 = vunpack.c.h.b16 %v4157
    %v5253 = vunpack.c.l.b16 %v4158
    %v5254 = vunpack.c.h.b16 %v4158
    %v5255 = vunpack.c.l.b16 %v4159
    %v5256 = vunpack.c.h.b16 %v4159
    %v5257 = vunpack.c.l.b16 %v4160
    %v5258 = vunpack.c.h.b16 %v4160
    %v5259 = vunpack.c.l.b16 %v4161
    %v5260 = vunpack.c.h.b16 %v4161
    %v5261 = vunpack.c.l.b16 %v4162
    %v5262 = vunpack.c.h.b16 %v4162
    %v5263 = vunpack.c.l.b16 %v4163
    %v5264 = vunpack.c.h.b16 %v4163
    %v5265 = vunpack.c.l.b16 %v4164
    %v5266 = vunpack.c.h.b16 %v4164
    %v5267 = vunpack.c.l.b16 %v4165
    %v5268 = vunpack.c.h.b16 %v4165
    %v5269 = vunpack.c.l.b16 %v4166
    %v5270 = vunpack.c.h.b16 %v4166
    %v5271 = vunpack.c.l.b16 %v4167
    %v5272 = vunpack.c.h.b16 %v4167
    %v5273 = vunpack.c.l.b16 %v4168
    %v5274 = vunpack.c.h.b16 %v4168
    %v5275 = vunpack.c.l.b16 %v4169
    %v5276 = vunpack.c.h.b16 %v4169
    %v5277 = vunpack.c.l.b16 %v4170
    %v5278 = vunpack.c.h.b16 %v4170
    %v5279 = vunpack.c.l.b16 %v4171
    %v5280 = vunpack.c.h.b16 %v4171
    %v5281 = vunpack.c.l.b16 %v4172
    %v5282 = vunpack.c.h.b16 %v4172
    %v5283 = vunpack.c.l.b16 %v4173
    %v5284 = vunpack.c.h.b16 %v4173
    %v5285 = vunpack.c.l.b16 %v4174
    %v5286 = vunpack.c.h.b16 %v4174
    %v5287 = vunpack.c.l.b16 %v4175
    %v5288 = vunpack.c.h.b16 %v4175
    %v5289 = vunpack.c.l.b16 %v4176
    %v5290 = vunpack.c.h.b16 %v4176
    %v5291 = vunpack.c.l.b16 %v4177
    %v5292 = vunpack.c.h.b16 %v4177
    %v5293 = vunpack.c.l.b16 %v4178
    %v5294 = vunpack.c.h.b16 %v4178
    %v5295 = vunpack.c.l.b16 %v4179
    %v5296 = vunpack.c.h.b16 %v4179
    %v5297 = vunpack.c.l.b16 %v4180
    %v5298 = vunpack.c.h.b16 %v4180
    %v5299 = vunpack.c.l.b16 %v4181
    %v5300 = vunpack.c.h.b16 %v4181
    %v5301 = vunpack.c.l.b16 %v4182
    %v5302 = vunpack.c.h.b16 %v4182
    %v5303 = vunpack.c.l.b16 %v4183
    %v5304 = vunpack.c.h.b16 %v4183
    %v5305 = vunpack.c.l.b16 %v4184
    %v5306 = vunpack.c.h.b16 %v4184
    %v5307 = vunpack.c.l.b16 %v4185
    %v5308 = vunpack.c.h.b16 %v4185
    %v5309 = vunpack.c.l.b16 %v4186
    %v5310 = vunpack.c.h.b16 %v4186
    %v5311 = vunpack.c.l.b16 %v4187
    %v5312 = vunpack.c.h.b16 %v4187
    %v5313 = vunpack.c.l.b16 %v4188
    %v5314 = vunpack.c.h.b16 %v4188
    %v5315 = vunpack.c.l.b16 %v4189
    %v5316 = vunpack.c.h.b16 %v4189
    %v5317 = vunpack.c.l.b16 %v4190
    %v5318 = vunpack.c.h.b16 %v4190
    %v5319 = vunpack.c.l.b16 %v4191
    %v5320 = vunpack.c.h.b16 %v4191
    %v5321 = vunpack.c.l.b16 %v4192
    %v5322 = vunpack.c.h.b16 %v4192
    %v5323 = vunpack.c.l.b16 %v4193
    %v5324 = vunpack.c.h.b16 %v4193
    %v5325 = vunpack.c.l.b16 %v4194
    %v5326 = vunpack.c.h.b16 %v4194
    %v5327 = vunpack.c.l.b16 %v4195
    %v5328 = vunpack.c.h.b16 %v4195
    %v5329 = vunpack.c.l.b16 %v4196
    %v5330 = vunpack.c.h.b16 %v4196
    %v5331 = vunpack.c.l.b16 %v4197
    %v5332 = vunpack.c.h.b16 %v4197
    %v5333 = vunpack.c.l.b16 %v4198
    %v5334 = vunpack.c.h.b16 %v4198
    %v5335 = vunpack.c.l.b16 %v4199
    %v5336 = vunpack.c.h.b16 %v4199
    %v5337 = vunpack.c.l.b16 %v4200
    %v5338 = vunpack.c.h.b16 %v4200
    %v5339 = vunpack.c.l.b16 %v4201
    %v5340 = vunpack.c.h.b16 %v4201
    %v5341 = vunpack.c.l.b16 %v4202
    %v5342 = vunpack.c.h.b16 %v4202
    %v5343 = vunpack.c.l.b16 %v4203
    %v5344 = vunpack.c.h.b16 %v4203
    %v5345 = vunpack.c.l.b16 %v4204
    %v5346 = vunpack.c.h.b16 %v4204
    %v5347 = vunpack.c.l.b16 %v4205
    %v5348 = vunpack.c.h.b16 %v4205
    %v5349 = vunpack.c.l.b16 %v4206
    %v5350 = vunpack.c.h.b16 %v4206
    %v5351 = vunpack.c.l.b16 %v4207
    %v5352 = vunpack.c.h.b16 %v4207
    %v5353 = vunpack.c.l.b16 %v4208
    %v5354 = vunpack.c.h.b16 %v4208
    %v5355 = vunpack.c.l.b16 %v4209
    %v5356 = vunpack.c.h.b16 %v4209
    %v5357 = vunpack.c.l.b16 %v4210
    %v5358 = vunpack.c.h.b16 %v4210
    %v5359 = vunpack.c.l.b16 %v4211
    %v5360 = vunpack.c.h.b16 %v4211
    %v5361 = vunpack.c.l.b16 %v4212
    %v5362 = vunpack.c.h.b16 %v4212
    %v5363 = vunpack.c.l.b16 %v4213
    %v5364 = vunpack.c.h.b16 %v4213
    %v5365 = vunpack.c.l.b16 %v4214
    %v5366 = vunpack.c.h.b16 %v4214
    %v5367 = vunpack.c.l.b16 %v4215
    %v5368 = vunpack.c.h.b16 %v4215
    %v5369 = vunpack.c.l.b16 %v4216
    %v5370 = vunpack.c.h.b16 %v4216
    %v5371 = vunpack.c.l.b16 %v4217
    %v5372 = vunpack.c.h.b16 %v4217
    %v5373 = vunpack.c.l.b16 %v4218
    %v5374 = vunpack.c.h.b16 %v4218
    %v5375 = vunpack.c.l.b16 %v4219
    %v5376 = vunpack.c.h.b16 %v4219
    %v5377 = vunpack.c.l.b16 %v4220
    %v5378 = vunpack.c.h.b16 %v4220
    %v5379 = vunpack.c.l.b16 %v4221
    %v5380 = vunpack.c.h.b16 %v4221
    %v5381 = vunpack.c.l.b16 %v4222
    %v5382 = vunpack.c.h.b16 %v4222
    %v5383 = vunpack.c.l.b16 %v4223
    %v5384 = vunpack.c.h.b16 %v4223
    %v5385 = vunpack.c.l.b16 %v4224
    %v5386 = vunpack.c.h.b16 %v4224
    %v5387 = vunpack.c.l.b16 %v4225
    %v5388 = vunpack.c.h.b16 %v4225
    %v5389 = vunpack.c.l.b16 %v4226
    %v5390 = vunpack.c.h.b16 %v4226
    %v5391 = vunpack.c.l.b16 %v4227
    %v5392 = vunpack.c.h.b16 %v4227
    %v5393 = vunpack.c.l.b16 %v4228
    %v5394 = vunpack.c.h.b16 %v4228
    %v5395 = vunpack.c.l.b16 %v4229
    %v5396 = vunpack.c.h.b16 %v4229
    %v5397 = vunpack.c.l.b16 %v4230
    %v5398 = vunpack.c.h.b16 %v4230
    %v5399 = vunpack.c.l.b16 %v4231
    %v5400 = vunpack.c.h.b16 %v4231
    %v5401 = vunpack.c.l.b16 %v4232
    %v5402 = vunpack.c.h.b16 %v4232
    %v5403 = vunpack.c.l.b16 %v4233
    %v5404 = vunpack.c.h.b16 %v4233
    %v5405 = vunpack.c.l.b16 %v4234
    %v5406 = vunpack.c.h.b16 %v4234
    %v5407 = vunpack.c.l.b16 %v4235
    %v5408 = vunpack.c.h.b16 %v4235
    %v5409 = vunpack.c.l.b16 %v4236
    %v5410 = vunpack.c.h.b16 %v4236
    %v5411 = vunpack.c.l.b16 %v4237
    %v5412 = vunpack.c.h.b16 %v4237
    %v5413 = vunpack.c.l.b16 %v4238
    %v5414 = vunpack.c.h.b16 %v4238
    %v5415 = vunpack.c.l.b16 %v4239
    %v5416 = vunpack.c.h.b16 %v4239
    %v5417 = vunpack.c.l.b16 %v4240
    %v5418 = vunpack.c.h.b16 %v4240
    %v5419 = vunpack.c.l.b16 %v4241
    %v5420 = vunpack.c.h.b16 %v4241
    %v5421 = vunpack.c.l.b16 %v4242
    %v5422 = vunpack.c.h.b16 %v4242
    %v5423 = vunpack.c.l.b16 %v4243
    %v5424 = vunpack.c.h.b16 %v4243
    %v5425 = vunpack.c.l.b16 %v4244
    %v5426 = vunpack.c.h.b16 %v4244
    %v5427 = vunpack.c.l.b16 %v4245
    %v5428 = vunpack.c.h.b16 %v4245
    %v5429 = vunpack.c.l.b16 %v4246
    %v5430 = vunpack.c.h.b16 %v4246
    %v5431 = vunpack.c.l.b16 %v4247
    %v5432 = vunpack.c.h.b16 %v4247
    %v5433 = vunpack.c.l.b16 %v4248
    %v5434 = vunpack.c.h.b16 %v4248
    %v5435 = vunpack.c.l.b16 %v4249
    %v5436 = vunpack.c.h.b16 %v4249
    %v5437 = vunpack.c.l.b16 %v4250
    %v5438 = vunpack.c.h.b16 %v4250
    %v5439 = vunpack.c.l.b16 %v4251
    %v5440 = vunpack.c.h.b16 %v4251
    %v5441 = vunpack.c.l.b16 %v4252
    %v5442 = vunpack.c.h.b16 %v4252
    %v5443 = vunpack.c.l.b16 %v4253
    %v5444 = vunpack.c.h.b16 %v4253
    %v5445 = vunpack.c.l.b16 %v4254
    %v5446 = vunpack.c.h.b16 %v4254
    %v5447 = vunpack.c.l.b16 %v4255
    %v5448 = vunpack.c.h.b16 %v4255
    %v5449 = vunpack.c.l.b16 %v4256
    %v5450 = vunpack.c.h.b16 %v4256
    %v5451 = vunpack.c.l.b16 %v4257
    %v5452 = vunpack.c.h.b16 %v4257
    %v5453 = vunpack.c.l.b16 %v4258
    %v5454 = vunpack.c.h.b16 %v4258
    %v5455 = vunpack.c.l.b16 %v4259
    %v5456 = vunpack.c.h.b16 %v4259
    %v5457 = vunpack.c.l.b16 %v4260
    %v5458 = vunpack.c.h.b16 %v4260
    %v5459 = vunpack.c.l.b16 %v4261
    %v5460 = vunpack.c.h.b16 %v4261
    %v5461 = vunpack.c.l.b16 %v4262
    %v5462 = vunpack.c.h.b16 %v4262
    %v5463 = vunpack.c.l.b16 %v4263
    %v5464 = vunpack.c.h.b16 %v4263
    %v5465 = vunpack.c.l.b16 %v4264
    %v5466 = vunpack.c.h.b16 %v4264
    %v5467 = vunpack.c.l.b16 %v4265
    %v5468 = vunpack.c.h.b16 %v4265
    %v5469 = vunpack.c.l.b16 %v4266
    %v5470 = vunpack.c.h.b16 %v4266
    %v5471 = vunpack.c.l.b16 %v4267
    %v5472 = vunpack.c.h.b16 %v4267
    %v5473 = vunpack.c.l.b16 %v4268
    %v5474 = vunpack.c.h.b16 %v4268
    %v5475 = vunpack.c.l.b16 %v4269
    %v5476 = vunpack.c.h.b16 %v4269
    %v5477 = vunpack.c.l.b16 %v4270
    %v5478 = vunpack.c.h.b16 %v4270
    %v5479 = vunpack.c.l.b16 %v4271
    %v5480 = vunpack.c.h.b16 %v4271
    %v5481 = vunpack.c.l.b16 %v4272
    %v5482 = vunpack.c.h.b16 %v4272
    %v5483 = vunpack.c.l.b16 %v4273
    %v5484 = vunpack.c.h.b16 %v4273
    %v5485 = vunpack.c.l.b16 %v4274
    %v5486 = vunpack.c.h.b16 %v4274
    %v5487 = vunpack.c.l.b16 %v4275
    %v5488 = vunpack.c.h.b16 %v4275
    %v5489 = vunpack.c.l.b16 %v4276
    %v5490 = vunpack.c.h.b16 %v4276
    %v5491 = vunpack.c.l.b16 %v4277
    %v5492 = vunpack.c.h.b16 %v4277
    %v5493 = vunpack.c.l.b16 %v4278
    %v5494 = vunpack.c.h.b16 %v4278
    %v5495 = vunpack.c.l.b16 %v4279
    %v5496 = vunpack.c.h.b16 %v4279
    %v5497 = vunpack.c.l.b16 %v4280
    %v5498 = vunpack.c.h.b16 %v4280
    %v5499 = vunpack.c.l.b16 %v4281
    %v5500 = vunpack.c.h.b16 %v4281
    %v5501 = vunpack.c.l.b16 %v4282
    %v5502 = vunpack.c.h.b16 %v4282
    %v5503 = vunpack.c.l.b16 %v4283
    %v5504 = vunpack.c.h.b16 %v4283
    %v5505 = vunpack.c.l.b16 %v4284
    %v5506 = vunpack.c.h.b16 %v4284
    %v5507 = vunpack.c.l.b16 %v4285
    %v5508 = vunpack.c.h.b16 %v4285
    %v5509 = vunpack.c.l.b16 %v4286
    %v5510 = vunpack.c.h.b16 %v4286
    %v5511 = vunpack.c.l.b16 %v4287
    %v5512 = vunpack.c.h.b16 %v4287
    %v5513 = vunpack.c.l.b16 %v4288
    %v5514 = vunpack.c.h.b16 %v4288
    %v5515 = vunpack.c.l.b16 %v4289
    %v5516 = vunpack.c.h.b16 %v4289
    %v5517 = vunpack.c.l.b16 %v4290
    %v5518 = vunpack.c.h.b16 %v4290
    %v5519 = vunpack.c.l.b16 %v4291
    %v5520 = vunpack.c.h.b16 %v4291
    %v5521 = vunpack.c.l.b16 %v4292
    %v5522 = vunpack.c.h.b16 %v4292
    %v5523 = vunpack.c.l.b16 %v4293
    %v5524 = vunpack.c.h.b16 %v4293
    %v5525 = vunpack.c.l.b16 %v4294
    %v5526 = vunpack.c.h.b16 %v4294
    %v5527 = vunpack.c.l.b16 %v4295
    %v5528 = vunpack.c.h.b16 %v4295
    %v5529 = vunpack.c.l.b16 %v4296
    %v5530 = vunpack.c.h.b16 %v4296
    %v5531 = vunpack.c.l.b16 %v4297
    %v5532 = vunpack.c.h.b16 %v4297
    %v5533 = vunpack.c.l.b16 %v4298
    %v5534 = vunpack.c.h.b16 %v4298
    %v5535 = vunpack.c.l.b16 %v4299
    %v5536 = vunpack.c.h.b16 %v4299
    %v5537 = vunpack.c.l.b16 %v4300
    %v5538 = vunpack.c.h.b16 %v4300
    %v5539 = vunpack.c.l.b16 %v4301
    %v5540 = vunpack.c.h.b16 %v4301
    %v5541 = vunpack.c.l.b16 %v4302
    %v5542 = vunpack.c.h.b16 %v4302
    %v5543 = vunpack.c.l.b16 %v4303
    %v5544 = vunpack.c.h.b16 %v4303
    %v5545 = vunpack.c.l.b16 %v4304
    %v5546 = vunpack.c.h.b16 %v4304
    %v5547 = vunpack.c.l.b16 %v4305
    %v5548 = vunpack.c.h.b16 %v4305
    %v5549 = vunpack.c.l.b16 %v4306
    %v5550 = vunpack.c.h.b16 %v4306
    %v5551 = vunpack.c.l.b16 %v4307
    %v5552 = vunpack.c.h.b16 %v4307
    %v5553 = vunpack.c.l.b16 %v4308
    %v5554 = vunpack.c.h.b16 %v4308
    %v5555 = vunpack.c.l.b16 %v4309
    %v5556 = vunpack.c.h.b16 %v4309
    %v5557 = vunpack.c.l.b16 %v4310
    %v5558 = vunpack.c.h.b16 %v4310
    %v5559 = vunpack.c.l.b16 %v4311
    %v5560 = vunpack.c.h.b16 %v4311
    %v5561 = vunpack.c.l.b16 %v4312
    %v5562 = vunpack.c.h.b16 %v4312
    %v5563 = vunpack.c.l.b16 %v4313
    %v5564 = vunpack.c.h.b16 %v4313
    %v5565 = vunpack.c.l.b16 %v4314
    %v5566 = vunpack.c.h.b16 %v4314
    %v5567 = vunpack.c.l.b16 %v4315
    %v5568 = vunpack.c.h.b16 %v4315
    %v5569 = vunpack.c.l.b16 %v4316
    %v5570 = vunpack.c.h.b16 %v4316
    %v5571 = vunpack.c.l.b16 %v4317
    %v5572 = vunpack.c.h.b16 %v4317
    %v5573 = vunpack.c.l.b16 %v4318
    %v5574 = vunpack.c.h.b16 %v4318
    %v5575 = vunpack.c.l.b16 %v4319
    %v5576 = vunpack.c.h.b16 %v4319
    %v5577 = vunpack.c.l.b16 %v4320
    %v5578 = vunpack.c.h.b16 %v4320
    %v5579 = vunpack.c.l.b16 %v4321
    %v5580 = vunpack.c.h.b16 %v4321
    %v5581 = vunpack.c.l.b16 %v4322
    %v5582 = vunpack.c.h.b16 %v4322
    %v5583 = vunpack.c.l.b16 %v4323
    %v5584 = vunpack.c.h.b16 %v4323
    %v5585 = vunpack.c.l.b16 %v4324
    %v5586 = vunpack.c.h.b16 %v4324
    %v5587 = vunpack.c.l.b16 %v4325
    %v5588 = vunpack.c.h.b16 %v4325
    %v5589 = vunpack.c.l.b16 %v4326
    %v5590 = vunpack.c.h.b16 %v4326
    %v5591 = vunpack.c.l.b16 %v4327
    %v5592 = vunpack.c.h.b16 %v4327
    %v5593 = vunpack.c.l.b16 %v4328
    %v5594 = vunpack.c.h.b16 %v4328
    %v5595 = vunpack.c.l.b16 %v4329
    %v5596 = vunpack.c.h.b16 %v4329
    %v5597 = vunpack.c.l.b16 %v4330
    %v5598 = vunpack.c.h.b16 %v4330
    %v5599 = vunpack.c.l.b16 %v4331
    %v5600 = vunpack.c.h.b16 %v4331
    %v5601 = vunpack.c.l.b16 %v4332
    %v5602 = vunpack.c.h.b16 %v4332
    %v5603 = vunpack.c.l.b16 %v4333
    %v5604 = vunpack.c.h.b16 %v4333
    %v5605 = vunpack.c.l.b16 %v4334
    %v5606 = vunpack.c.h.b16 %v4334
    %v5607 = vunpack.c.l.b16 %v4335
    %v5608 = vunpack.c.h.b16 %v4335
    %v5609 = vunpack.c.l.b16 %v4336
    %v5610 = vunpack.c.h.b16 %v4336
    %v5611 = vunpack.c.l.b16 %v4337
    %v5612 = vunpack.c.h.b16 %v4337
    %v5613 = vunpack.c.l.b16 %v4338
    %v5614 = vunpack.c.h.b16 %v4338
    %v5615 = vunpack.c.l.b16 %v4339
    %v5616 = vunpack.c.h.b16 %v4339
    %v5617 = vunpack.c.l.b16 %v4340
    %v5618 = vunpack.c.h.b16 %v4340
    %v5619 = vunpack.c.l.b16 %v4341
    %v5620 = vunpack.c.h.b16 %v4341
    %v5621 = vunpack.c.l.b16 %v4342
    %v5622 = vunpack.c.h.b16 %v4342
    %v5623 = vunpack.c.l.b16 %v4343
    %v5624 = vunpack.c.h.b16 %v4343
    %v5625 = vunpack.c.l.b16 %v4344
    %v5626 = vunpack.c.h.b16 %v4344
    %v5627 = vunpack.c.l.b16 %v4345
    %v5628 = vunpack.c.h.b16 %v4345
    %v5629 = vunpack.c.l.b16 %v4346
    %v5630 = vunpack.c.h.b16 %v4346
    %v5631 = vunpack.c.l.b16 %v4347
    %v5632 = vunpack.c.h.b16 %v4347
    %v5633 = vunpack.c.l.b16 %v4348
    %v5634 = vunpack.c.h.b16 %v4348
    %v5635 = vunpack.c.l.b16 %v4349
    %v5636 = vunpack.c.h.b16 %v4349
    %v5637 = vunpack.c.l.b16 %v4350
    %v5638 = vunpack.c.h.b16 %v4350
    %v5639 = vunpack.c.l.b16 %v4351
    %v5640 = vunpack.c.h.b16 %v4351
    %v5641 = vunpack.c.l.b16 %v4352
    %v5642 = vunpack.c.h.b16 %v4352
    %v5643 = vunpack.c.l.b16 %v4353
    %v5644 = vunpack.c.h.b16 %v4353
    %v5645 = vunpack.c.l.b16 %v4354
    %v5646 = vunpack.c.h.b16 %v4354
    %v5647 = vunpack.c.l.b16 %v4355
    %v5648 = vunpack.c.h.b16 %v4355
    %v5649 = vunpack.c.l.b16 %v4356
    %v5650 = vunpack.c.h.b16 %v4356
    %v5651 = vunpack.c.l.b16 %v4357
    %v5652 = vunpack.c.h.b16 %v4357
    %v5653 = vunpack.c.l.b16 %v4358
    %v5654 = vunpack.c.h.b16 %v4358
    %v5655 = vunpack.c.l.b16 %v4359
    %v5656 = vunpack.c.h.b16 %v4359
    %v5657 = vunpack.c.l.b16 %v4360
    %v5658 = vunpack.c.h.b16 %v4360
    %v5659 = vunpack.c.l.b16 %v4361
    %v5660 = vunpack.c.h.b16 %v4361
    %v5661 = vunpack.c.l.b16 %v4362
    %v5662 = vunpack.c.h.b16 %v4362
    %v5663 = vunpack.c.l.b16 %v4363
    %v5664 = vunpack.c.h.b16 %v4363
    %v5665 = vunpack.c.l.b16 %v4364
    %v5666 = vunpack.c.h.b16 %v4364
    %v5667 = vunpack.c.l.b16 %v4365
    %v5668 = vunpack.c.h.b16 %v4365
    %v5669 = vunpack.c.l.b16 %v4366
    %v5670 = vunpack.c.h.b16 %v4366
    %v5671 = vunpack.c.l.b16 %v4367
    %v5672 = vunpack.c.h.b16 %v4367
    %v5673 = vunpack.c.l.b16 %v4368
    %v5674 = vunpack.c.h.b16 %v4368
    %v5675 = vunpack.c.l.b16 %v4369
    %v5676 = vunpack.c.h.b16 %v4369
    %v5677 = vunpack.c.l.b16 %v4370
    %v5678 = vunpack.c.h.b16 %v4370
    %v5679 = vunpack.c.l.b16 %v4371
    %v5680 = vunpack.c.h.b16 %v4371
    %v5681 = vunpack.c.l.b16 %v4372
    %v5682 = vunpack.c.h.b16 %v4372
    %v5683 = vunpack.c.l.b16 %v4373
    %v5684 = vunpack.c.h.b16 %v4373
    %v5685 = vunpack.c.l.b16 %v4374
    %v5686 = vunpack.c.h.b16 %v4374
    %v5687 = vunpack.c.l.b16 %v4375
    %v5688 = vunpack.c.h.b16 %v4375
    %v5689 = vunpack.c.l.b16 %v4376
    %v5690 = vunpack.c.h.b16 %v4376
    %v5691 = vunpack.c.l.b16 %v4377
    %v5692 = vunpack.c.h.b16 %v4377
    %v5693 = vunpack.c.l.b16 %v4378
    %v5694 = vunpack.c.h.b16 %v4378
    %v5695 = vunpack.c.l.b16 %v4379
    %v5696 = vunpack.c.h.b16 %v4379
    %v5697 = vunpack.c.l.b16 %v4380
    %v5698 = vunpack.c.h.b16 %v4380
    %v5699 = vunpack.c.l.b16 %v4381
    %v5700 = vunpack.c.h.b16 %v4381
    %v5701 = vunpack.c.l.b16 %v4382
    %v5702 = vunpack.c.h.b16 %v4382
    %v5703 = vunpack.c.l.b16 %v4383
    %v5704 = vunpack.c.h.b16 %v4383
    %v5705 = vunpack.c.l.b16 %v4384
    %v5706 = vunpack.c.h.b16 %v4384
    %v5707 = vunpack.c.l.b16 %v4385
    %v5708 = vunpack.c.h.b16 %v4385
    %v5709 = vunpack.c.l.b16 %v4386
    %v5710 = vunpack.c.h.b16 %v4386
    %v5711 = vunpack.c.l.b16 %v4387
    %v5712 = vunpack.c.h.b16 %v4387
    %v5713 = vunpack.c.l.b16 %v4388
    %v5714 = vunpack.c.h.b16 %v4388
    %v5715 = vunpack.c.l.b16 %v4389
    %v5716 = vunpack.c.h.b16 %v4389
    %v5717 = vunpack.c.l.b16 %v4390
    %v5718 = vunpack.c.h.b16 %v4390
    %v5719 = vunpack.c.l.b16 %v4391
    %v5720 = vunpack.c.h.b16 %v4391
    %v5721 = vunpack.c.l.b16 %v4392
    %v5722 = vunpack.c.h.b16 %v4392
    %v5723 = vunpack.c.l.b16 %v4393
    %v5724 = vunpack.c.h.b16 %v4393
    %v5725 = vunpack.c.l.b16 %v4394
    %v5726 = vunpack.c.h.b16 %v4394
    %v5727 = vunpack.c.l.b16 %v4395
    %v5728 = vunpack.c.h.b16 %v4395
    %v5729 = vunpack.c.l.b16 %v4396
    %v5730 = vunpack.c.h.b16 %v4396
    %v5731 = vunpack.c.l.b16 %v4397
    %v5732 = vunpack.c.h.b16 %v4397
    %v5733 = vunpack.c.l.b16 %v4398
    %v5734 = vunpack.c.h.b16 %v4398
    %v5735 = vunpack.c.l.b16 %v4399
    %v5736 = vunpack.c.h.b16 %v4399
    %v5737 = vunpack.c.l.b16 %v4400
    %v5738 = vunpack.c.h.b16 %v4400
    %v5739 = vunpack.c.l.b16 %v4401
    %v5740 = vunpack.c.h.b16 %v4401
    %v5741 = vunpack.c.l.b16 %v4402
    %v5742 = vunpack.c.h.b16 %v4402
    %v5743 = vunpack.c.l.b16 %v4403
    %v5744 = vunpack.c.h.b16 %v4403
    %v5745 = vunpack.c.l.b16 %v4404
    %v5746 = vunpack.c.h.b16 %v4404
    %v5747 = vunpack.c.l.b16 %v4405
    %v5748 = vunpack.c.h.b16 %v4405
    %v5749 = vunpack.c.l.b16 %v4406
    %v5750 = vunpack.c.h.b16 %v4406
    %v5751 = vunpack.c.l.b16 %v4407
    %v5752 = vunpack.c.h.b16 %v4407
    %v5753 = vunpack.c.l.b16 %v4408
    %v5754 = vunpack.c.h.b16 %v4408
    %v5755 = vunpack.c.l.b16 %v4409
    %v5756 = vunpack.c.h.b16 %v4409
    %v5757 = vunpack.c.l.b16 %v4410
    %v5758 = vunpack.c.h.b16 %v4410
    %v5759 = vunpack.c.l.b16 %v4411
    %v5760 = vunpack.c.h.b16 %v4411
    %v5761 = vunpack.c.l.b16 %v4412
    %v5762 = vunpack.c.h.b16 %v4412
    %v5763 = vunpack.c.l.b16 %v4413
    %v5764 = vunpack.c.h.b16 %v4413
    %v5765 = vunpack.c.l.b16 %v4414
    %v5766 = vunpack.c.h.b16 %v4414
    %v5767 = vunpack.c.l.b16 %v4415
    %v5768 = vunpack.c.h.b16 %v4415
    %v5769 = vunpack.c.l.b16 %v4416
    %v5770 = vunpack.c.h.b16 %v4416
    %v5771 = vunpack.c.l.b16 %v4417
    %v5772 = vunpack.c.h.b16 %v4417
    %v5773 = vunpack.c.l.b16 %v4418
    %v5774 = vunpack.c.h.b16 %v4418
    %v5775 = vunpack.c.l.b16 %v4419
    %v5776 = vunpack.c.h.b16 %v4419
    %v5777 = vunpack.c.l.b16 %v4420
    %v5778 = vunpack.c.h.b16 %v4420
    %v5779 = vunpack.c.l.b16 %v4421
    %v5780 = vunpack.c.h.b16 %v4421
    %v5781 = vunpack.c.l.b16 %v4422
    %v5782 = vunpack.c.h.b16 %v4422
    %v5783 = vunpack.c.l.b16 %v4423
    %v5784 = vunpack.c.h.b16 %v4423
    %v5785 = vunpack.c.l.b16 %v4424
    %v5786 = vunpack.c.h.b16 %v4424
    %v5787 = vunpack.c.l.b16 %v4425
    %v5788 = vunpack.c.h.b16 %v4425
    %v5789 = vunpack.c.l.b16 %v4426
    %v5790 = vunpack.c.h.b16 %v4426
    %v5791 = vunpack.c.l.b16 %v4427
    %v5792 = vunpack.c.h.b16 %v4427
    %v5793 = vunpack.c.l.b16 %v4428
    %v5794 = vunpack.c.h.b16 %v4428
    %v5795 = vunpack.c.l.b16 %v4429
    %v5796 = vunpack.c.h.b16 %v4429
    %v5797 = vunpack.c.l.b16 %v4430
    %v5798 = vunpack.c.h.b16 %v4430
    %v5799 = vunpack.c.l.b16 %v4431
    %v5800 = vunpack.c.h.b16 %v4431
    %v5801 = vunpack.c.l.b16 %v4432
    %v5802 = vunpack.c.h.b16 %v4432
    %v5803 = vunpack.c.l.b16 %v4433
    %v5804 = vunpack.c.h.b16 %v4433
    %v5805 = vunpack.c.l.b16 %v4434
    %v5806 = vunpack.c.h.b16 %v4434
    %v5807 = vunpack.c.l.b16 %v4435
    %v5808 = vunpack.c.h.b16 %v4435
    %v5809 = vunpack.c.l.b16 %v4436
    %v5810 = vunpack.c.h.b16 %v4436
    %v5811 = vunpack.c.l.b16 %v4437
    %v5812 = vunpack.c.h.b16 %v4437
    %v5813 = vunpack.c.l.b16 %v4438
    %v5814 = vunpack.c.h.b16 %v4438
    %v5815 = vunpack.c.l.b16 %v4439
    %v5816 = vunpack.c.h.b16 %v4439
    %v5817 = vunpack.c.l.b16 %v4440
    %v5818 = vunpack.c.h.b16 %v4440
    %v5819 = vunpack.c.l.b16 %v4441
    %v5820 = vunpack.c.h.b16 %v4441
    %v5821 = vunpack.c.l.b16 %v4442
    %v5822 = vunpack.c.h.b16 %v4442
    %v5823 = vunpack.c.l.b16 %v4443
    %v5824 = vunpack.c.h.b16 %v4443
    %v5825 = vunpack.c.l.b16 %v4444
    %v5826 = vunpack.c.h.b16 %v4444
    %v5827 = vunpack.c.l.b16 %v4445
    %v5828 = vunpack.c.h.b16 %v4445
    %v5829 = vunpack.c.l.b16 %v4446
    %v5830 = vunpack.c.h.b16 %v4446
    %v5831 = vunpack.c.l.b16 %v4447
    %v5832 = vunpack.c.h.b16 %v4447
    %v5833 = vunpack.c.l.b16 %v4448
    %v5834 = vunpack.c.h.b16 %v4448
    %v5835 = vunpack.c.l.b16 %v4449
    %v5836 = vunpack.c.h.b16 %v4449
    %v5837 = vunpack.c.l.b16 %v4450
    %v5838 = vunpack.c.h.b16 %v4450
    %v5839 = vunpack.c.l.b16 %v4451
    %v5840 = vunpack.c.h.b16 %v4451
    %v5841 = vunpack.c.l.b16 %v4452
    %v5842 = vunpack.c.h.b16 %v4452
    %v5843 = vunpack.c.l.b16 %v4453
    %v5844 = vunpack.c.h.b16 %v4453
    %v5845 = vunpack.c.l.b16 %v4454
    %v5846 = vunpack.c.h.b16 %v4454
    %v5847 = vunpack.c.l.b16 %v4455
    %v5848 = vunpack.c.h.b16 %v4455
    %v5849 = vunpack.c.l.b16 %v4456
    %v5850 = vunpack.c.h.b16 %v4456
    %v5851 = vunpack.c.l.b16 %v4457
    %v5852 = vunpack.c.h.b16 %v4457
    %v5853 = vunpack.c.l.b16 %v4458
    %v5854 = vunpack.c.h.b16 %v4458
    %v5855 = vunpack.c.l.b16 %v4459
    %v5856 = vunpack.c.h.b16 %v4459
    %v5857 = vunpack.c.l.b16 %v4460
    %v5858 = vunpack.c.h.b16 %v4460
    %v5859 = vunpack.c.l.b16 %v4461
    %v5860 = vunpack.c.h.b16 %v4461
    %v5861 = vunpack.c.l.b16 %v4462
    %v5862 = vunpack.c.h.b16 %v4462
    %v5863 = vunpack.c.l.b16 %v4463
    %v5864 = vunpack.c.h.b16 %v4463
    %v5865 = vunpack.c.l.b16 %v4464
    %v5866 = vunpack.c.h.b16 %v4464
    %v5867 = vunpack.c.l.b16 %v4465
    %v5868 = vunpack.c.h.b16 %v4465
    %v5869 = vunpack.c.l.b16 %v4466
    %v5870 = vunpack.c.h.b16 %v4466
    %v5871 = vunpack.c.l.b16 %v4467
    %v5872 = vunpack.c.h.b16 %v4467
    %v5873 = vunpack.c.l.b16 %v4468
    %v5874 = vunpack.c.h.b16 %v4468
    %v5875 = vunpack.c.l.b16 %v4469
    %v5876 = vunpack.c.h.b16 %v4469
    %v5877 = vunpack.c.l.b16 %v4470
    %v5878 = vunpack.c.h.b16 %v4470
    %v5879 = vunpack.c.l.b16 %v4471
    %v5880 = vunpack.c.h.b16 %v4471
    %v5881 = vunpack.c.l.b16 %v4472
    %v5882 = vunpack.c.h.b16 %v4472
    %v5883 = vunpack.c.l.b16 %v4473
    %v5884 = vunpack.c.h.b16 %v4473
    %v5885 = vunpack.c.l.b16 %v4474
    %v5886 = vunpack.c.h.b16 %v4474
    %v5887 = vunpack.c.l.b16 %v4475
    %v5888 = vunpack.c.h.b16 %v4475
    %v5889 = vunpack.c.l.b16 %v4476
    %v5890 = vunpack.c.h.b16 %v4476
    %v5891 = vunpack.c.l.b16 %v4477
    %v5892 = vunpack.c.h.b16 %v4477
    %v5893 = vunpack.c.l.b16 %v4478
    %v5894 = vunpack.c.h.b16 %v4478
    %v5895 = vunpack.c.l.b16 %v4479
    %v5896 = vunpack.c.h.b16 %v4479
    %v5897 = vunpack.c.l.b16 %v4480
    %v5898 = vunpack.c.h.b16 %v4480
    %v5899 = vunpack.c.l.b16 %v4481
    %v5900 = vunpack.c.h.b16 %v4481
    %v5901 = vunpack.c.l.b16 %v4482
    %v5902 = vunpack.c.h.b16 %v4482
    %v5903 = vunpack.c.l.b16 %v4483
    %v5904 = vunpack.c.h.b16 %v4483
    %v5905 = vunpack.c.l.b16 %v4484
    %v5906 = vunpack.c.h.b16 %v4484
    %v5907 = vunpack.c.l.b16 %v4485
    %v5908 = vunpack.c.h.b16 %v4485
    %v5909 = vunpack.c.l.b16 %v4486
    %v5910 = vunpack.c.h.b16 %v4486
    %v5911 = vunpack.c.l.b16 %v4487
    %v5912 = vunpack.c.h.b16 %v4487
    %v5913 = vunpack.c.l.b16 %v4488
    %v5914 = vunpack.c.h.b16 %v4488
    %v5915 = vunpack.c.l.b16 %v4489
    %v5916 = vunpack.c.h.b16 %v4489
    %v5917 = vunpack.c.l.b16 %v4490
    %v5918 = vunpack.c.h.b16 %v4490
    %v5919 = vunpack.c.l.b16 %v4491
    %v5920 = vunpack.c.h.b16 %v4491
    %v5921 = vunpack.c.l.b16 %v4492
    %v5922 = vunpack.c.h.b16 %v4492
    %v5923 = vunpack.c.l.b16 %v4493
    %v5924 = vunpack.c.h.b16 %v4493
    %v5925 = vunpack.c.l.b16 %v4494
    %v5926 = vunpack.c.h.b16 %v4494
    %v5927 = vunpack.c.l.b16 %v4495
    %v5928 = vunpack.c.h.b16 %v4495
    %v5929 = vunpack.c.l.b16 %v4496
    %v5930 = vunpack.c.h.b16 %v4496
    %v5931 = vunpack.c.l.b16 %v4497
    %v5932 = vunpack.c.h.b16 %v4497
    %v5933 = vunpack.c.l.b16 %v4498
    %v5934 = vunpack.c.h.b16 %v4498
    %v5935 = vunpack.c.l.b16 %v4499
    %v5936 = vunpack.c.h.b16 %v4499
    %v5937 = vunpack.c.l.b16 %v4500
    %v5938 = vunpack.c.h.b16 %v4500
    %v5939 = vunpack.c.l.b16 %v4501
    %v5940 = vunpack.c.h.b16 %v4501
    %v5941 = vunpack.c.l.b16 %v4502
    %v5942 = vunpack.c.h.b16 %v4502
    %v5943 = vunpack.c.l.b16 %v4503
    %v5944 = vunpack.c.h.b16 %v4503
    %v5945 = vunpack.c.l.b16 %v4504
    %v5946 = vunpack.c.h.b16 %v4504
    %v5947 = vunpack.c.l.b16 %v4505
    %v5948 = vunpack.c.h.b16 %v4505
    %v5949 = vunpack.c.l.b16 %v4506
    %v5950 = vunpack.c.h.b16 %v4506
    %v5951 = vunpack.c.l.b16 %v4507
    %v5952 = vunpack.c.h.b16 %v4507
    %v5953 = vunpack.c.l.b16 %v4508
    %v5954 = vunpack.c.h.b16 %v4508
    %v5955 = vunpack.c.l.b16 %v4509
    %v5956 = vunpack.c.h.b16 %v4509
    %v5957 = vunpack.c.l.b16 %v4510
    %v5958 = vunpack.c.h.b16 %v4510
    %v5959 = vunpack.c.l.b16 %v4511
    %v5960 = vunpack.c.h.b16 %v4511
    %v5961 = vunpack.c.l.b16 %v4512
    %v5962 = vunpack.c.h.b16 %v4512
    %v5963 = vunpack.c.l.b16 %v4513
    %v5964 = vunpack.c.h.b16 %v4513
    %v5965 = vunpack.c.l.b16 %v4514
    %v5966 = vunpack.c.h.b16 %v4514
    %v5967 = vunpack.c.l.b16 %v4515
    %v5968 = vunpack.c.h.b16 %v4515
    %v5969 = vunpack.c.l.b16 %v4516
    %v5970 = vunpack.c.h.b16 %v4516
    %v5971 = vunpack.c.l.b16 %v4517
    %v5972 = vunpack.c.h.b16 %v4517
    %v5973 = vunpack.c.l.b16 %v4518
    %v5974 = vunpack.c.h.b16 %v4518
    %v5975 = vunpack.c.l.b16 %v4519
    %v5976 = vunpack.c.h.b16 %v4519
    %v5977 = vunpack.c.l.b16 %v4520
    %v5978 = vunpack.c.h.b16 %v4520
    %v5979 = vunpack.c.l.b16 %v4521
    %v5980 = vunpack.c.h.b16 %v4521
    %v5981 = vunpack.c.l.b16 %v4522
    %v5982 = vunpack.c.h.b16 %v4522
    %v5983 = vunpack.c.l.b16 %v4523
    %v5984 = vunpack.c.h.b16 %v4523
    %v5985 = vunpack.c.l.b16 %v4524
    %v5986 = vunpack.c.h.b16 %v4524
    %v5987 = vunpack.c.l.b16 %v4525
    %v5988 = vunpack.c.h.b16 %v4525
    %v5989 = vunpack.c.l.b16 %v4526
    %v5990 = vunpack.c.h.b16 %v4526
    %v5991 = vunpack.c.l.b16 %v4527
    %v5992 = vunpack.c.h.b16 %v4527
    %v5993 = vunpack.c.l.b16 %v4528
    %v5994 = vunpack.c.h.b16 %v4528
    %v5995 = vunpack.c.l.b16 %v4529
    %v5996 = vunpack.c.h.b16 %v4529
    %v5997 = vunpack.c.l.b16 %v4530
    %v5998 = vunpack.c.h.b16 %v4530
    %v5999 = vunpack.c.l.b16 %v4531
    %v6000 = vunpack.c.h.b16 %v4531
    %v6001 = vunpack.c.l.b16 %v4532
    %v6002 = vunpack.c.h.b16 %v4532
    %v6003 = vunpack.c.l.b16 %v4533
    %v6004 = vunpack.c.h.b16 %v4533
    %v6005 = vunpack.c.l.b16 %v4534
    %v6006 = vunpack.c.h.b16 %v4534
    %v6007 = vunpack.c.l.b16 %v4535
    %v6008 = vunpack.c.h.b16 %v4535
    %v6009 = vunpack.c.l.b16 %v4536
    %v6010 = vunpack.c.h.b16 %v4536
    %v6011 = vunpack.c.l.b16 %v4537
    %v6012 = vunpack.c.h.b16 %v4537
    %v6013 = vunpack.c.l.b16 %v4538
    %v6014 = vunpack.c.h.b16 %v4538
    %v6015 = vunpack.c.l.b16 %v4539
    %v6016 = vunpack.c.h.b16 %v4539
    %v6017 = vunpack.c.l.b16 %v4540
    %v6018 = vunpack.c.h.b16 %v4540
    %v6019 = vunpack.c.l.b16 %v4541
    %v6020 = vunpack.c.h.b16 %v4541
    %v6021 = vunpack.c.l.b16 %v4542
    %v6022 = vunpack.c.h.b16 %v4542
    %v6023 = vunpack.c.l.b16 %v4543
    %v6024 = vunpack.c.h.b16 %v4543
    %v6025 = vunpack.c.l.b16 %v4544
    %v6026 = vunpack.c.h.b16 %v4544
    %v6027 = vunpack.c.l.b16 %v4545
    %v6028 = vunpack.c.h.b16 %v4545
    %v6029 = vunpack.c.l.b16 %v4546
    %v6030 = vunpack.c.h.b16 %v4546
    %v6031 = vunpack.c.l.b16 %v4547
    %v6032 = vunpack.c.h.b16 %v4547
    %v6033 = vunpack.c.l.b16 %v4548
    %v6034 = vunpack.c.h.b16 %v4548
    %v6035 = vunpack.c.l.b16 %v4549
    %v6036 = vunpack.c.h.b16 %v4549
    %v6037 = vunpack.c.l.b16 %v4550
    %v6038 = vunpack.c.h.b16 %v4550
    %v6039 = vunpack.c.l.b16 %v4551
    %v6040 = vunpack.c.h.b16 %v4551
    %v6041 = vunpack.c.l.b16 %v4552
    %v6042 = vunpack.c.h.b16 %v4552
    %v6043 = vunpack.c.l.b16 %v4553
    %v6044 = vunpack.c.h.b16 %v4553
    %v6045 = vunpack.c.l.b16 %v4554
    %v6046 = vunpack.c.h.b16 %v4554
    %v6047 = vunpack.c.l.b16 %v4555
    %v6048 = vunpack.c.h.b16 %v4555
    %v6049 = vunpack.c.l.b16 %v4556
    %v6050 = vunpack.c.h.b16 %v4556
    %v6051 = vunpack.c.l.b16 %v4557
    %v6052 = vunpack.c.h.b16 %v4557
    %v6053 = vunpack.c.l.b16 %v4558
    %v6054 = vunpack.c.h.b16 %v4558
    %v6055 = vunpack.c.l.b16 %v4559
    %v6056 = vunpack.c.h.b16 %v4559
    %v6057 = vunpack.c.l.b16 %v4560
    %v6058 = vunpack.c.h.b16 %v4560
    %v6059 = vunpack.c.l.b16 %v4561
    %v6060 = vunpack.c.h.b16 %v4561
    %v6061 = vunpack.c.l.b16 %v4562
    %v6062 = vunpack.c.h.b16 %v4562
    %v6063 = vunpack.c.l.b16 %v4563
    %v6064 = vunpack.c.h.b16 %v4563
    %v6065 = vunpack.c.l.b16 %v4564
    %v6066 = vunpack.c.h.b16 %v4564
    %v6067 = vunpack.c.l.b16 %v4565
    %v6068 = vunpack.c.h.b16 %v4565
    %v6069 = vunpack.c.l.b16 %v4566
    %v6070 = vunpack.c.h.b16 %v4566
    %v6071 = vunpack.c.l.b16 %v4567
    %v6072 = vunpack.c.h.b16 %v4567
    %v6073 = vunpack.c.l.b16 %v4568
    %v6074 = vunpack.c.h.b16 %v4568
    %v6075 = vunpack.c.l.b16 %v4569
    %v6076 = vunpack.c.h.b16 %v4569
    %v6077 = vunpack.c.l.b16 %v4570
    %v6078 = vunpack.c.h.b16 %v4570
    %v6079 = vunpack.c.l.b16 %v4571
    %v6080 = vunpack.c.h.b16 %v4571
    %v6081 = vunpack.c.l.b16 %v4572
    %v6082 = vunpack.c.h.b16 %v4572
    %v6083 = vunpack.c.l.b16 %v4573
    %v6084 = vunpack.c.h.b16 %v4573
    %v6085 = vunpack.c.l.b16 %v4574
    %v6086 = vunpack.c.h.b16 %v4574
    %v6087 = vunpack.c.l.b16 %v4575
    %v6088 = vunpack.c.h.b16 %v4575
    %v6089 = vunpack.c.l.b16 %v4576
    %v6090 = vunpack.c.h.b16 %v4576
    %v6091 = vunpack.c.l.b16 %v4577
    %v6092 = vunpack.c.h.b16 %v4577
    %v6093 = vunpack.c.l.b16 %v4578
    %v6094 = vunpack.c.h.b16 %v4578
    %v6095 = vunpack.c.l.b16 %v4579
    %v6096 = vunpack.c.h.b16 %v4579
    %v6097 = vunpack.c.l.b16 %v4580
    %v6098 = vunpack.c.h.b16 %v4580
    %v6099 = vunpack.c.l.b16 %v4581
    %v6100 = vunpack.c.h.b16 %v4581
    %v6101 = vunpack.c.l.b16 %v4582
    %v6102 = vunpack.c.h.b16 %v4582
    %v6103 = vunpack.c.l.b16 %v4583
    %v6104 = vunpack.c.h.b16 %v4583
    %v6105 = vunpack.c.l.b16 %v4584
    %v6106 = vunpack.c.h.b16 %v4584
    %v6107 = vunpack.c.l.b16 %v4585
    %v6108 = vunpack.c.h.b16 %v4585
    %v6109 = vunpack.c.l.b16 %v4586
    %v6110 = vunpack.c.h.b16 %v4586
    %v6111 = vunpack.c.l.b16 %v4587
    %v6112 = vunpack.c.h.b16 %v4587
    %v6113 = vunpack.c.l.b16 %v4588
    %v6114 = vunpack.c.h.b16 %v4588
    %v6115 = vunpack.c.l.b16 %v4589
    %v6116 = vunpack.c.h.b16 %v4589
    %v6117 = vunpack.c.l.b16 %v4590
    %v6118 = vunpack.c.h.b16 %v4590
    %v6119 = vunpack.c.l.b16 %v4591
    %v6120 = vunpack.c.h.b16 %v4591
    %v6121 = vunpack.c.l.b16 %v4592
    %v6122 = vunpack.c.h.b16 %v4592
    %v6123 = vunpack.c.l.b16 %v4593
    %v6124 = vunpack.c.h.b16 %v4593
    %v6125 = vunpack.c.l.b16 %v4594
    %v6126 = vunpack.c.h.b16 %v4594
    %v6127 = vunpack.c.l.b16 %v4595
    %v6128 = vunpack.c.h.b16 %v4595
    %v6129 = vunpack.c.l.b16 %v4596
    %v6130 = vunpack.c.h.b16 %v4596
    %v6131 = vunpack.c.l.b16 %v4597
    %v6132 = vunpack.c.h.b16 %v4597
    %v6133 = vunpack.c.l.b16 %v4598
    %v6134 = vunpack.c.h.b16 %v4598
    %v6135 = vunpack.c.l.b16 %v4599
    %v6136 = vunpack.c.h.b16 %v4599
    %v6137 = vunpack.c.l.b16 %v4600
    %v6138 = vunpack.c.h.b16 %v4600
    %v6139 = vunpack.c.l.b16 %v4601
    %v6140 = vunpack.c.h.b16 %v4601
    %v6141 = vunpack.c.l.b16 %v4602
    %v6142 = vunpack.c.h.b16 %v4602
    %v6143 = vunpack.c.l.b16 %v4603
    %v6144 = vunpack.c.h.b16 %v4603
    %v6145 = vunpack.c.l.b16 %v4604
    %v6146 = vunpack.c.h.b16 %v4604
    %v6147 = vunpack.c.l.b16 %v4605
    %v6148 = vunpack.c.h.b16 %v4605
    %v6149 = vunpack.c.l.b16 %v4606
    %v6150 = vunpack.c.h.b16 %v4606
    %v6151 = vunpack.c.l.b16 %v4607
    %v6152 = vunpack.c.h.b16 %v4607
    %v6153 = vunpack.c.l.b16 %v4608
    %v6154 = vunpack.c.h.b16 %v4608
    %v6155 = vpack.c.b16 %v5135, %v5131
    %v6156 = vpack.c.b16 %v5136, %v5132
    %v6157 = vpack.c.b16 %v5137, %v5133
    %v6158 = vpack.c.b16 %v5138, %v5134
    %v6159 = vpack.c.b16 %v5143, %v5139
    %v6160 = vpack.c.b16 %v5144, %v5140
    %v6161 = vpack.c.b16 %v5145, %v5141
    %v6162 = vpack.c.b16 %v5146, %v5142
    %v6163 = vpack.c.b16 %v5151, %v5147
    %v6164 = vpack.c.b16 %v5152, %v5148
    %v6165 = vpack.c.b16 %v5153, %v5149
    %v6166 = vpack.c.b16 %v5154, %v5150
    %v6167 = vpack.c.b16 %v5159, %v5155
    %v6168 = vpack.c.b16 %v5160, %v5156
    %v6169 = vpack.c.b16 %v5161, %v5157
    %v6170 = vpack.c.b16 %v5162, %v5158
    %v6171 = vpack.c.b16 %v5167, %v5163
    %v6172 = vpack.c.b16 %v5168, %v5164
    %v6173 = vpack.c.b16 %v5169, %v5165
    %v6174 = vpack.c.b16 %v5170, %v5166
    %v6175 = vpack.c.b16 %v5175, %v5171
    %v6176 = vpack.c.b16 %v5176, %v5172
    %v6177 = vpack.c.b16 %v5177, %v5173
    %v6178 = vpack.c.b16 %v5178, %v5174
    %v6179 = vpack.c.b16 %v5183, %v5179
    %v6180 = vpack.c.b16 %v5184, %v5180
    %v6181 = vpack.c.b16 %v5185, %v5181
    %v6182 = vpack.c.b16 %v5186, %v5182
    %v6183 = vpack.c.b16 %v5191, %v5187
    %v6184 = vpack.c.b16 %v5192, %v5188
    %v6185 = vpack.c.b16 %v5193, %v5189
    %v6186 = vpack.c.b16 %v5194, %v5190
    %v6187 = vpack.c.b16 %v5199, %v5195
    %v6188 = vpack.c.b16 %v5200, %v5196
    %v6189 = vpack.c.b16 %v5201, %v5197
    %v6190 = vpack.c.b16 %v5202, %v5198
    %v6191 = vpack.c.b16 %v5207, %v5203
    %v6192 = vpack.c.b16 %v5208, %v5204
    %v6193 = vpack.c.b16 %v5209, %v5205
    %v6194 = vpack.c.b16 %v5210, %v5206
    %v6195 = vpack.c.b16 %v5215, %v5211
    %v6196 = vpack.c.b16 %v5216, %v5212
    %v6197 = vpack.c.b16 %v5217, %v5213
    %v6198 = vpack.c.b16 %v5218, %v5214
    %v6199 = vpack.c.b16 %v5223, %v5219
    %v6200 = vpack.c.b16 %v5224, %v5220
    %v6201 = vpack.c.b16 %v5225, %v5221
    %v6202 = vpack.c.b16 %v5226, %v5222
    %v6203 = vpack.c.b16 %v5231, %v5227
    %v6204 = vpack.c.b16 %v5232, %v5228
    %v6205 = vpack.c.b16 %v5233, %v5229
    %v6206 = vpack.c.b16 %v5234, %v5230
    %v6207 = vpack.c.b16 %v5239, %v5235
    %v6208 = vpack.c.b16 %v5240, %v5236
    %v6209 = vpack.c.b16 %v5241, %v5237
    %v6210 = vpack.c.b16 %v5242, %v5238
    %v6211 = vpack.c.b16 %v5247, %v5243
    %v6212 = vpack.c.b16 %v5248, %v5244
    %v6213 = vpack.c.b16 %v5249, %v5245
    %v6214 = vpack.c.b16 %v5250, %v5246
    %v6215 = vpack.c.b16 %v5255, %v5251
    %v6216 = vpack.c.b16 %v5256, %v5252
    %v6217 = vpack.c.b16 %v5257, %v5253
    %v6218 = vpack.c.b16 %v5258, %v5254
    %v6219 = vpack.c.b16 %v5263, %v5259
    %v6220 = vpack.c.b16 %v5264, %v5260
    %v6221 = vpack.c.b16 %v5265, %v5261
    %v6222 = vpack.c.b16 %v5266, %v5262
    %v6223 = vpack.c.b16 %v5271, %v5267
    %v6224 = vpack.c.b16 %v5272, %v5268
    %v6225 = vpack.c.b16 %v5273, %v5269
    %v6226 = vpack.c.b16 %v5274, %v5270
    %v6227 = vpack.c.b16 %v5279, %v5275
    %v6228 = vpack.c.b16 %v5280, %v5276
    %v6229 = vpack.c.b16 %v5281, %v5277
    %v6230 = vpack.c.b16 %v5282, %v5278
    %v6231 = vpack.c.b16 %v5287, %v5283
    %v6232 = vpack.c.b16 %v5288, %v5284
    %v6233 = vpack.c.b16 %v5289, %v5285
    %v6234 = vpack.c.b16 %v5290, %v5286
    %v6235 = vpack.c.b16 %v5295, %v5291
    %v6236 = vpack.c.b16 %v5296, %v5292
    %v6237 = vpack.c.b16 %v5297, %v5293
    %v6238 = vpack.c.b16 %v5298, %v5294
    %v6239 = vpack.c.b16 %v5303, %v5299
    %v6240 = vpack.c.b16 %v5304, %v5300
    %v6241 = vpack.c.b16 %v5305, %v5301
    %v6242 = vpack.c.b16 %v5306, %v5302
    %v6243 = vpack.c.b16 %v5311, %v5307
    %v6244 = vpack.c.b16 %v5312, %v5308
    %v6245 = vpack.c.b16 %v5313, %v5309
    %v6246 = vpack.c.b16 %v5314, %v5310
    %v6247 = vpack.c.b16 %v5319, %v5315
    %v6248 = vpack.c.b16 %v5320, %v5316
    %v6249 = vpack.c.b16 %v5321, %v5317
    %v6250 = vpack.c.b16 %v5322, %v5318
    %v6251 = vpack.c.b16 %v5327, %v5323
    %v6252 = vpack.c.b16 %v5328, %v5324
    %v6253 = vpack.c.b16 %v5329, %v5325
    %v6254 = vpack.c.b16 %v5330, %v5326
    %v6255 = vpack.c.b16 %v5335, %v5331
    %v6256 = vpack.c.b16 %v5336, %v5332
    %v6257 = vpack.c.b16 %v5337, %v5333
    %v6258 = vpack.c.b16 %v5338, %v5334
    %v6259 = vpack.c.b16 %v5343, %v5339
    %v6260 = vpack.c.b16 %v5344, %v5340
    %v6261 = vpack.c.b16 %v5345, %v5341
    %v6262 = vpack.c.b16 %v5346, %v5342
    %v6263 = vpack.c.b16 %v5351, %v5347
    %v6264 = vpack.c.b16 %v5352, %v5348
    %v6265 = vpack.c.b16 %v5353, %v5349
    %v6266 = vpack.c.b16 %v5354, %v5350
    %v6267 = vpack.c.b16 %v5359, %v5355
    %v6268 = vpack.c.b16 %v5360, %v5356
    %v6269 = vpack.c.b16 %v5361, %v5357
    %v6270 = vpack.c.b16 %v5362, %v5358
    %v6271 = vpack.c.b16 %v5367, %v5363
    %v6272 = vpack.c.b16 %v5368, %v5364
    %v6273 = vpack.c.b16 %v5369, %v5365
    %v6274 = vpack.c.b16 %v5370, %v5366
    %v6275 = vpack.c.b16 %v5375, %v5371
    %v6276 = vpack.c.b16 %v5376, %v5372
    %v6277 = vpack.c.b16 %v5377, %v5373
    %v6278 = vpack.c.b16 %v5378, %v5374
    %v6279 = vpack.c.b16 %v5383, %v5379
    %v6280 = vpack.c.b16 %v5384, %v5380
    %v6281 = vpack.c.b16 %v5385, %v5381
    %v6282 = vpack.c.b16 %v5386, %v5382
    %v6283 = vpack.c.b16 %v5391, %v5387
    %v6284 = vpack.c.b16 %v5392, %v5388
    %v6285 = vpack.c.b16 %v5393, %v5389
    %v6286 = vpack.c.b16 %v5394, %v5390
    %v6287 = vpack.c.b16 %v5399, %v5395
    %v6288 = vpack.c.b16 %v5400, %v5396
    %v6289 = vpack.c.b16 %v5401, %v5397
    %v6290 = vpack.c.b16 %v5402, %v5398
    %v6291 = vpack.c.b16 %v5407, %v5403
    %v6292 = vpack.c.b16 %v5408, %v5404
    %v6293 = vpack.c.b16 %v5409, %v5405
    %v6294 = vpack.c.b16 %v5410, %v5406
    %v6295 = vpack.c.b16 %v5415, %v5411
    %v6296 = vpack.c.b16 %v5416, %v5412
    %v6297 = vpack.c.b16 %v5417, %v5413
    %v6298 = vpack.c.b16 %v5418, %v5414
    %v6299 = vpack.c.b16 %v5423, %v5419
    %v6300 = vpack.c.b16 %v5424, %v5420
    %v6301 = vpack.c.b16 %v5425, %v5421
    %v6302 = vpack.c.b16 %v5426, %v5422
    %v6303 = vpack.c.b16 %v5431, %v5427
    %v6304 = vpack.c.b16 %v5432, %v5428
    %v6305 = vpack.c.b16 %v5433, %v5429
    %v6306 = vpack.c.b16 %v5434, %v5430
    %v6307 = vpack.c.b16 %v5439, %v5435
    %v6308 = vpack.c.b16 %v5440, %v5436
    %v6309 = vpack.c.b16 %v5441, %v5437
    %v6310 = vpack.c.b16 %v5442, %v5438
    %v6311 = vpack.c.b16 %v5447, %v5443
    %v6312 = vpack.c.b16 %v5448, %v5444
    %v6313 = vpack.c.b16 %v5449, %v5445
    %v6314 = vpack.c.b16 %v5450, %v5446
    %v6315 = vpack.c.b16 %v5455, %v5451
    %v6316 = vpack.c.b16 %v5456, %v5452
    %v6317 = vpack.c.b16 %v5457, %v5453
    %v6318 = vpack.c.b16 %v5458, %v5454
    %v6319 = vpack.c.b16 %v5463, %v5459
    %v6320 = vpack.c.b16 %v5464, %v5460
    %v6321 = vpack.c.b16 %v5465, %v5461
    %v6322 = vpack.c.b16 %v5466, %v5462
    %v6323 = vpack.c.b16 %v5471, %v5467
    %v6324 = vpack.c.b16 %v5472, %v5468
    %v6325 = vpack.c.b16 %v5473, %v5469
    %v6326 = vpack.c.b16 %v5474, %v5470
    %v6327 = vpack.c.b16 %v5479, %v5475
    %v6328 = vpack.c.b16 %v5480, %v5476
    %v6329 = vpack.c.b16 %v5481, %v5477
    %v6330 = vpack.c.b16 %v5482, %v5478
    %v6331 = vpack.c.b16 %v5487, %v5483
    %v6332 = vpack.c.b16 %v5488, %v5484
    %v6333 = vpack.c.b16 %v5489, %v5485
    %v6334 = vpack.c.b16 %v5490, %v5486
    %v6335 = vpack.c.b16 %v5495, %v5491
    %v6336 = vpack.c.b16 %v5496, %v5492
    %v6337 = vpack.c.b16 %v5497, %v5493
    %v6338 = vpack.c.b16 %v5498, %v5494
    %v6339 = vpack.c.b16 %v5503, %v5499
    %v6340 = vpack.c.b16 %v5504, %v5500
    %v6341 = vpack.c.b16 %v5505, %v5501
    %v6342 = vpack.c.b16 %v5506, %v5502
    %v6343 = vpack.c.b16 %v5511, %v5507
    %v6344 = vpack.c.b16 %v5512, %v5508
    %v6345 = vpack.c.b16 %v5513, %v5509
    %v6346 = vpack.c.b16 %v5514, %v5510
    %v6347 = vpack.c.b16 %v5519, %v5515
    %v6348 = vpack.c.b16 %v5520, %v5516
    %v6349 = vpack.c.b16 %v5521, %v5517
    %v6350 = vpack.c.b16 %v5522, %v5518
    %v6351 = vpack.c.b16 %v5527, %v5523
    %v6352 = vpack.c.b16 %v5528, %v5524
    %v6353 = vpack.c.b16 %v5529, %v5525
    %v6354 = vpack.c.b16 %v5530, %v5526
    %v6355 = vpack.c.b16 %v5535, %v5531
    %v6356 = vpack.c.b16 %v5536, %v5532
    %v6357 = vpack.c.b16 %v5537, %v5533
    %v6358 = vpack.c.b16 %v5538, %v5534
    %v6359 = vpack.c.b16 %v5543, %v5539
    %v6360 = vpack.c.b16 %v5544, %v5540
    %v6361 = vpack.c.b16 %v5545, %v5541
    %v6362 = vpack.c.b16 %v5546, %v5542
    %v6363 = vpack.c.b16 %v5551, %v5547
    %v6364 = vpack.c.b16 %v5552, %v5548
    %v6365 = vpack.c.b16 %v5553, %v5549
    %v6366 = vpack.c.b16 %v5554, %v5550
    %v6367 = vpack.c.b16 %v5559, %v5555
    %v6368 = vpack.c.b16 %v5560, %v5556
    %v6369 = vpack.c.b16 %v5561, %v5557
    %v6370 = vpack.c.b16 %v5562, %v5558
    %v6371 = vpack.c.b16 %v5567, %v5563
    %v6372 = vpack.c.b16 %v5568, %v5564
    %v6373 = vpack.c.b16 %v5569, %v5565
    %v6374 = vpack.c.b16 %v5570, %v5566
    %v6375 = vpack.c.b16 %v5575, %v5571
    %v6376 = vpack.c.b16 %v5576, %v5572
    %v6377 = vpack.c.b16 %v5577, %v5573
    %v6378 = vpack.c.b16 %v5578, %v5574
    %v6379 = vpack.c.b16 %v5583, %v5579
    %v6380 = vpack.c.b16 %v5584, %v5580
    %v6381 = vpack.c.b16 %v5585, %v5581
    %v6382 = vpack.c.b16 %v5586, %v5582
    %v6383 = vpack.c.b16 %v5591, %v5587
    %v6384 = vpack.c.b16 %v5592, %v5588
    %v6385 = vpack.c.b16 %v5593, %v5589
    %v6386 = vpack.c.b16 %v5594, %v5590
    %v6387 = vpack.c.b16 %v5599, %v5595
    %v6388 = vpack.c.b16 %v5600, %v5596
    %v6389 = vpack.c.b16 %v5601, %v5597
    %v6390 = vpack.c.b16 %v5602, %v5598
    %v6391 = vpack.c.b16 %v5607, %v5603
    %v6392 = vpack.c.b16 %v5608, %v5604
    %v6393 = vpack.c.b16 %v5609, %v5605
    %v6394 = vpack.c.b16 %v5610, %v5606
    %v6395 = vpack.c.b16 %v5615, %v5611
    %v6396 = vpack.c.b16 %v5616, %v5612
    %v6397 = vpack.c.b16 %v5617, %v5613
    %v6398 = vpack.c.b16 %v5618, %v5614
    %v6399 = vpack.c.b16 %v5623, %v5619
    %v6400 = vpack.c.b16 %v5624, %v5620
    %v6401 = vpack.c.b16 %v5625, %v5621
    %v6402 = vpack.c.b16 %v5626, %v5622
    %v6403 = vpack.c.b16 %v5631, %v5627
    %v6404 = vpack.c.b16 %v5632, %v5628
    %v6405 = vpack.c.b16 %v5633, %v5629
    %v6406 = vpack.c.b16 %v5634, %v5630
    %v6407 = vpack.c.b16 %v5639, %v5635
    %v6408 = vpack.c.b16 %v5640, %v5636
    %v6409 = vpack.c.b16 %v5641, %v5637
    %v6410 = vpack.c.b16 %v5642, %v5638
    %v6411 = vpack.c.b16 %v5647, %v5643
    %v6412 = vpack.c.b16 %v5648, %v5644
    %v6413 = vpack.c.b16 %v5649, %v5645
    %v6414 = vpack.c.b16 %v5650, %v5646
    %v6415 = vpack.c.b16 %v5655, %v5651
    %v6416 = vpack.c.b16 %v5656, %v5652
    %v6417 = vpack.c.b16 %v5657, %v5653
    %v6418 = vpack.c.b16 %v5658, %v5654
    %v6419 = vpack.c.b16 %v5663, %v5659
    %v6420 = vpack.c.b16 %v5664, %v5660
    %v6421 = vpack.c.b16 %v5665, %v5661
    %v6422 = vpack.c.b16 %v5666, %v5662
    %v6423 = vpack.c.b16 %v5671, %v5667
    %v6424 = vpack.c.b16 %v5672, %v5668
    %v6425 = vpack.c.b16 %v5673, %v5669
    %v6426 = vpack.c.b16 %v5674, %v5670
    %v6427 = vpack.c.b16 %v5679, %v5675
    %v6428 = vpack.c.b16 %v5680, %v5676
    %v6429 = vpack.c.b16 %v5681, %v5677
    %v6430 = vpack.c.b16 %v5682, %v5678
    %v6431 = vpack.c.b16 %v5687, %v5683
    %v6432 = vpack.c.b16 %v5688, %v5684
    %v6433 = vpack.c.b16 %v5689, %v5685
    %v6434 = vpack.c.b16 %v5690, %v5686
    %v6435 = vpack.c.b16 %v5695, %v5691
    %v6436 = vpack.c.b16 %v5696, %v5692
    %v6437 = vpack.c.b16 %v5697, %v5693
    %v6438 = vpack.c.b16 %v5698, %v5694
    %v6439 = vpack.c.b16 %v5703, %v5699
    %v6440 = vpack.c.b16 %v5704, %v5700
    %v6441 = vpack.c.b16 %v5705, %v5701
    %v6442 = vpack.c.b16 %v5706, %v5702
    %v6443 = vpack.c.b16 %v5711, %v5707
    %v6444 = vpack.c.b16 %v5712, %v5708
    %v6445 = vpack.c.b16 %v5713, %v5709
    %v6446 = vpack.c.b16 %v5714, %v5710
    %v6447 = vpack.c.b16 %v5719, %v5715
    %v6448 = vpack.c.b16 %v5720, %v5716
    %v6449 = vpack.c.b16 %v5721, %v5717
    %v6450 = vpack.c.b16 %v5722, %v5718
    %v6451 = vpack.c.b16 %v5727, %v5723
    %v6452 = vpack.c.b16 %v5728, %v5724
    %v6453 = vpack.c.b16 %v5729, %v5725
    %v6454 = vpack.c.b16 %v5730, %v5726
    %v6455 = vpack.c.b16 %v5735, %v5731
    %v6456 = vpack.c.b16 %v5736, %v5732
    %v6457 = vpack.c.b16 %v5737, %v5733
    %v6458 = vpack.c.b16 %v5738, %v5734
    %v6459 = vpack.c.b16 %v5743, %v5739
    %v6460 = vpack.c.b16 %v5744, %v5740
    %v6461 = vpack.c.b16 %v5745, %v5741
    %v6462 = vpack.c.b16 %v5746, %v5742
    %v6463 = vpack.c.b16 %v5751, %v5747
    %v6464 = vpack.c.b16 %v5752, %v5748
    %v6465 = vpack.c.b16 %v5753, %v5749
    %v6466 = vpack.c.b16 %v5754, %v5750
    %v6467 = vpack.c.b16 %v5759, %v5755
    %v6468 = vpack.c.b16 %v5760, %v5756
    %v6469 = vpack.c.b16 %v5761, %v5757
    %v6470 = vpack.c.b16 %v5762, %v5758
    %v6471 = vpack.c.b16 %v5767, %v5763
    %v6472 = vpack.c.b16 %v5768, %v5764
    %v6473 = vpack.c.b16 %v5769, %v5765
    %v6474 = vpack.c.b16 %v5770, %v5766
    %v6475 = vpack.c.b16 %v5775, %v5771
    %v6476 = vpack.c.b16 %v5776, %v5772
    %v6477 = vpack.c.b16 %v5777, %v5773
    %v6478 = vpack.c.b16 %v5778, %v5774
    %v6479 = vpack.c.b16 %v5783, %v5779
    %v6480 = vpack.c.b16 %v5784, %v5780
    %v6481 = vpack.c.b16 %v5785, %v5781
    %v6482 = vpack.c.b16 %v5786, %v5782
    %v6483 = vpack.c.b16 %v5791, %v5787
    %v6484 = vpack.c.b16 %v5792, %v5788
    %v6485 = vpack.c.b16 %v5793, %v5789
    %v6486 = vpack.c.b16 %v5794, %v5790
    %v6487 = vpack.c.b16 %v5799, %v5795
    %v6488 = vpack.c.b16 %v5800, %v5796
    %v6489 = vpack.c.b16 %v5801, %v5797
    %v6490 = vpack.c.b16 %v5802, %v5798
    %v6491 = vpack.c.b16 %v5807, %v5803
    %v6492 = vpack.c.b16 %v5808, %v5804
    %v6493 = vpack.c.b16 %v5809, %v5805
    %v6494 = vpack.c.b16 %v5810, %v5806
    %v6495 = vpack.c.b16 %v5815, %v5811
    %v6496 = vpack.c.b16 %v5816, %v5812
    %v6497 = vpack.c.b16 %v5817, %v5813
    %v6498 = vpack.c.b16 %v5818, %v5814
    %v6499 = vpack.c.b16 %v5823, %v5819
    %v6500 = vpack.c.b16 %v5824, %v5820
    %v6501 = vpack.c.b16 %v5825, %v5821
    %v6502 = vpack.c.b16 %v5826, %v5822
    %v6503 = vpack.c.b16 %v5831, %v5827
    %v6504 = vpack.c.b16 %v5832, %v5828
    %v6505 = vpack.c.b16 %v5833, %v5829
    %v6506 = vpack.c.b16 %v5834, %v5830
    %v6507 = vpack.c.b16 %v5839, %v5835
    %v6508 = vpack.c.b16 %v5840, %v5836
    %v6509 = vpack.c.b16 %v5841, %v5837
    %v6510 = vpack.c.b16 %v5842, %v5838
    %v6511 = vpack.c.b16 %v5847, %v5843
    %v6512 = vpack.c.b16 %v5848, %v5844
    %v6513 = vpack.c.b16 %v5849, %v5845
    %v6514 = vpack.c.b16 %v5850, %v5846
    %v6515 = vpack.c.b16 %v5855, %v5851
    %v6516 = vpack.c.b16 %v5856, %v5852
    %v6517 = vpack.c.b16 %v5857, %v5853
    %v6518 = vpack.c.b16 %v5858, %v5854
    %v6519 = vpack.c.b16 %v5863, %v5859
    %v6520 = vpack.c.b16 %v5864, %v5860
    %v6521 = vpack.c.b16 %v5865, %v5861
    %v6522 = vpack.c.b16 %v5866, %v5862
    %v6523 = vpack.c.b16 %v5871, %v5867
    %v6524 = vpack.c.b16 %v5872, %v5868
    %v6525 = vpack.c.b16 %v5873, %v5869
    %v6526 = vpack.c.b16 %v5874, %v5870
    %v6527 = vpack.c.b16 %v5879, %v5875
    %v6528 = vpack.c.b16 %v5880, %v5876
    %v6529 = vpack.c.b16 %v5881, %v5877
    %v6530 = vpack.c.b16 %v5882, %v5878
    %v6531 = vpack.c.b16 %v5887, %v5883
    %v6532 = vpack.c.b16 %v5888, %v5884
    %v6533 = vpack.c.b16 %v5889, %v5885
    %v6534 = vpack.c.b16 %v5890, %v5886
    %v6535 = vpack.c.b16 %v5895, %v5891
    %v6536 = vpack.c.b16 %v5896, %v5892
    %v6537 = vpack.c.b16 %v5897, %v5893
    %v6538 = vpack.c.b16 %v5898, %v5894
    %v6539 = vpack.c.b16 %v5903, %v5899
    %v6540 = vpack.c.b16 %v5904, %v5900
    %v6541 = vpack.c.b16 %v5905, %v5901
    %v6542 = vpack.c.b16 %v5906, %v5902
    %v6543 = vpack.c.b16 %v5911, %v5907
    %v6544 = vpack.c.b16 %v5912, %v5908
    %v6545 = vpack.c.b16 %v5913, %v5909
    %v6546 = vpack.c.b16 %v5914, %v5910
    %v6547 = vpack.c.b16 %v5919, %v5915
    %v6548 = vpack.c.b16 %v5920, %v5916
    %v6549 = vpack.c.b16 %v5921, %v5917
    %v6550 = vpack.c.b16 %v5922, %v5918
    %v6551 = vpack.c.b16 %v5927, %v5923
    %v6552 = vpack.c.b16 %v5928, %v5924
    %v6553 = vpack.c.b16 %v5929, %v5925
    %v6554 = vpack.c.b16 %v5930, %v5926
    %v6555 = vpack.c.b16 %v5935, %v5931
    %v6556 = vpack.c.b16 %v5936, %v5932
    %v6557 = vpack.c.b16 %v5937, %v5933
    %v6558 = vpack.c.b16 %v5938, %v5934
    %v6559 = vpack.c.b16 %v5943, %v5939
    %v6560 = vpack.c.b16 %v5944, %v5940
    %v6561 = vpack.c.b16 %v5945, %v5941
    %v6562 = vpack.c.b16 %v5946, %v5942
    %v6563 = vpack.c.b16 %v5951, %v5947
    %v6564 = vpack.c.b16 %v5952, %v5948
    %v6565 = vpack.c.b16 %v5953, %v5949
    %v6566 = vpack.c.b16 %v5954, %v5950
    %v6567 = vpack.c.b16 %v5959, %v5955
    %v6568 = vpack.c.b16 %v5960, %v5956
    %v6569 = vpack.c.b16 %v5961, %v5957
    %v6570 = vpack.c.b16 %v5962, %v5958
    %v6571 = vpack.c.b16 %v5967, %v5963
    %v6572 = vpack.c.b16 %v5968, %v5964
    %v6573 = vpack.c.b16 %v5969, %v5965
    %v6574 = vpack.c.b16 %v5970, %v5966
    %v6575 = vpack.c.b16 %v5975, %v5971
    %v6576 = vpack.c.b16 %v5976, %v5972
    %v6577 = vpack.c.b16 %v5977, %v5973
    %v6578 = vpack.c.b16 %v5978, %v5974
    %v6579 = vpack.c.b16 %v5983, %v5979
    %v6580 = vpack.c.b16 %v5984, %v5980
    %v6581 = vpack.c.b16 %v5985, %v5981
    %v6582 = vpack.c.b16 %v5986, %v5982
    %v6583 = vpack.c.b16 %v5991, %v5987
    %v6584 = vpack.c.b16 %v5992, %v5988
    %v6585 = vpack.c.b16 %v5993, %v5989
    %v6586 = vpack.c.b16 %v5994, %v5990
    %v6587 = vpack.c.b16 %v5999, %v5995
    %v6588 = vpack.c.b16 %v6000, %v5996
    %v6589 = vpack.c.b16 %v6001, %v5997
    %v6590 = vpack.c.b16 %v6002, %v5998
    %v6591 = vpack.c.b16 %v6007, %v6003
    %v6592 = vpack.c.b16 %v6008, %v6004
    %v6593 = vpack.c.b16 %v6009, %v6005
    %v6594 = vpack.c.b16 %v6010, %v6006
    %v6595 = vpack.c.b16 %v6015, %v6011
    %v6596 = vpack.c.b16 %v6016, %v6012
    %v6597 = vpack.c.b16 %v6017, %v6013
    %v6598 = vpack.c.b16 %v6018, %v6014
    %v6599 = vpack.c.b16 %v6023, %v6019
    %v6600 = vpack.c.b16 %v6024, %v6020
    %v6601 = vpack.c.b16 %v6025, %v6021
    %v6602 = vpack.c.b16 %v6026, %v6022
    %v6603 = vpack.c.b16 %v6031, %v6027
    %v6604 = vpack.c.b16 %v6032, %v6028
    %v6605 = vpack.c.b16 %v6033, %v6029
    %v6606 = vpack.c.b16 %v6034, %v6030
    %v6607 = vpack.c.b16 %v6039, %v6035
    %v6608 = vpack.c.b16 %v6040, %v6036
    %v6609 = vpack.c.b16 %v6041, %v6037
    %v6610 = vpack.c.b16 %v6042, %v6038
    %v6611 = vpack.c.b16 %v6047, %v6043
    %v6612 = vpack.c.b16 %v6048, %v6044
    %v6613 = vpack.c.b16 %v6049, %v6045
    %v6614 = vpack.c.b16 %v6050, %v6046
    %v6615 = vpack.c.b16 %v6055, %v6051
    %v6616 = vpack.c.b16 %v6056, %v6052
    %v6617 = vpack.c.b16 %v6057, %v6053
    %v6618 = vpack.c.b16 %v6058, %v6054
    %v6619 = vpack.c.b16 %v6063, %v6059
    %v6620 = vpack.c.b16 %v6064, %v6060
    %v6621 = vpack.c.b16 %v6065, %v6061
    %v6622 = vpack.c.b16 %v6066, %v6062
    %v6623 = vpack.c.b16 %v6071, %v6067
    %v6624 = vpack.c.b16 %v6072, %v6068
    %v6625 = vpack.c.b16 %v6073, %v6069
    %v6626 = vpack.c.b16 %v6074, %v6070
    %v6627 = vpack.c.b16 %v6079, %v6075
    %v6628 = vpack.c.b16 %v6080, %v6076
    %v6629 = vpack.c.b16 %v6081, %v6077
    %v6630 = vpack.c.b16 %v6082, %v6078
    %v6631 = vpack.c.b16 %v6087, %v6083
    %v6632 = vpack.c.b16 %v6088, %v6084
    %v6633 = vpack.c.b16 %v6089, %v6085
    %v6634 = vpack.c.b16 %v6090, %v6086
    %v6635 = vpack.c.b16 %v6095, %v6091
    %v6636 = vpack.c.b16 %v6096, %v6092
    %v6637 = vpack.c.b16 %v6097, %v6093
    %v6638 = vpack.c.b16 %v6098, %v6094
    %v6639 = vpack.c.b16 %v6103, %v6099
    %v6640 = vpack.c.b16 %v6104, %v6100
    %v6641 = vpack.c.b16 %v6105, %v6101
    %v6642 = vpack.c.b16 %v6106, %v6102
    %v6643 = vpack.c.b16 %v6111, %v6107
    %v6644 = vpack.c.b16 %v6112, %v6108
    %v6645 = vpack.c.b16 %v6113, %v6109
    %v6646 = vpack.c.b16 %v6114, %v6110
    %v6647 = vpack.c.b16 %v6119, %v6115
    %v6648 = vpack.c.b16 %v6120, %v6116
    %v6649 = vpack.c.b16 %v6121, %v6117
    %v6650 = vpack.c.b16 %v6122, %v6118
    %v6651 = vpack.c.b16 %v6127, %v6123
    %v6652 = vpack.c.b16 %v6128, %v6124
    %v6653 = vpack.c.b16 %v6129, %v6125
    %v6654 = vpack.c.b16 %v6130, %v6126
    %v6655 = vpack.c.b16 %v6135, %v6131
    %v6656 = vpack.c.b16 %v6136, %v6132
    %v6657 = vpack.c.b16 %v6137, %v6133
    %v6658 = vpack.c.b16 %v6138, %v6134
    %v6659 = vpack.c.b16 %v6143, %v6139
    %v6660 = vpack.c.b16 %v6144, %v6140
    %v6661 = vpack.c.b16 %v6145, %v6141
    %v6662 = vpack.c.b16 %v6146, %v6142
    %v6663 = vpack.c.b16 %v6151, %v6147
    %v6664 = vpack.c.b16 %v6152, %v6148
    %v6665 = vpack.c.b16 %v6153, %v6149
    %v6666 = vpack.c.b16 %v6154, %v6150
    %7179 = vmatpush.bf16.msra.mxu0 %v6183
    %7180 = vmatpush.bf16.msra.mxu0 %v6179
    %7181 = vmatpush.bf16.msra.mxu0 %v6175
    %7182 = vmatpush.bf16.msra.mxu0 %v6171
    %7183 = vmatpush.bf16.msra.mxu0 %v6167
    %7184 = vmatpush.bf16.msra.mxu0 %v6163
    %7185 = vmatpush.bf16.msra.mxu0 %v6159
    %7186 = vmatpush.bf16.msra.mxu0 %v6155
    %7187 = vmatmul.bf16.gmra.mxu0 %v4081
    %v7188 = vpop.f32.mrf.mxu0
    %v7189 = vadd.f32 %v4611, %v7188
    %v7190 = vpop.f32.mrf.mxu0
    %v7191 = vadd.f32 %v4611, %v7190
    %7192 = vdwg.mxu0
    %7193 = vmatpush.bf16.msra.mxu0 %v6215
    %7194 = vmatpush.bf16.msra.mxu0 %v6211
    %7195 = vmatpush.bf16.msra.mxu0 %v6207
    %7196 = vmatpush.bf16.msra.mxu0 %v6203
    %7197 = vmatpush.bf16.msra.mxu0 %v6199
    %7198 = vmatpush.bf16.msra.mxu0 %v6195
    %7199 = vmatpush.bf16.msra.mxu0 %v6191
    %7200 = vmatpush.bf16.msra.mxu0 %v6187
    %7201 = vmatmul.bf16.gmra.mxu0 %v4082
    %v7202 = vpop.f32.mrf.mxu0
    %v7203 = vadd.f32 %v7189, %v7202
    %v7204 = vpop.f32.mrf.mxu0
    %v7205 = vadd.f32 %v7191, %v7204
    %7206 = vdwg.mxu0
    %7207 = vmatpush.bf16.msra.mxu0 %v6247
    %7208 = vmatpush.bf16.msra.mxu0 %v6243
    %7209 = vmatpush.bf16.msra.mxu0 %v6239
    %7210 = vmatpush.bf16.msra.mxu0 %v6235
    %7211 = vmatpush.bf16.msra.mxu0 %v6231
    %7212 = vmatpush.bf16.msra.mxu0 %v6227
    %7213 = vmatpush.bf16.msra.mxu0 %v6223
    %7214 = vmatpush.bf16.msra.mxu0 %v6219
    %7215 = vmatmul.bf16.gmra.mxu0 %v4083
    %v7216 = vpop.f32.mrf.mxu0
    %v7217 = vadd.f32 %v7203, %v7216
    %v7218 = vpop.f32.mrf.mxu0
    %v7219 = vadd.f32 %v7205, %v7218
    %7220 = vdwg.mxu0
    %7221 = vmatpush.bf16.msra.mxu0 %v6279
    %7222 = vmatpush.bf16.msra.mxu0 %v6275
    %7223 = vmatpush.bf16.msra.mxu0 %v6271
    %7224 = vmatpush.bf16.msra.mxu0 %v6267
    %7225 = vmatpush.bf16.msra.mxu0 %v6263
    %7226 = vmatpush.bf16.msra.mxu0 %v6259
    %7227 = vmatpush.bf16.msra.mxu0 %v6255
    %7228 = vmatpush.bf16.msra.mxu0 %v6251
    %7229 = vmatmul.bf16.gmra.mxu0 %v4084
    %v7230 = vpop.f32.mrf.mxu0
    %v7231 = vadd.f32 %v7217, %v7230
    %v7232 = vpop.f32.mrf.mxu0
    %v7233 = vadd.f32 %v7219, %v7232
    %7234 = vdwg.mxu0
    %7235 = vmatpush.bf16.msra.mxu0 %v6311
    %7236 = vmatpush.bf16.msra.mxu0 %v6307
    %7237 = vmatpush.bf16.msra.mxu0 %v6303
    %7238 = vmatpush.bf16.msra.mxu0 %v6299
    %7239 = vmatpush.bf16.msra.mxu0 %v6295
    %7240 = vmatpush.bf16.msra.mxu0 %v6291
    %7241 = vmatpush.bf16.msra.mxu0 %v6287
    %7242 = vmatpush.bf16.msra.mxu0 %v6283
    %7243 = vmatmul.bf16.gmra.mxu0 %v4085
    %v7244 = vpop.f32.mrf.mxu0
    %v7245 = vadd.f32 %v7231, %v7244
    %v7246 = vpop.f32.mrf.mxu0
    %v7247 = vadd.f32 %v7233, %v7246
    %7248 = vdwg.mxu0
    %7249 = vmatpush.bf16.msra.mxu0 %v6343
    %7250 = vmatpush.bf16.msra.mxu0 %v6339
    %7251 = vmatpush.bf16.msra.mxu0 %v6335
    %7252 = vmatpush.bf16.msra.mxu0 %v6331
    %7253 = vmatpush.bf16.msra.mxu0 %v6327
    %7254 = vmatpush.bf16.msra.mxu0 %v6323
    %7255 = vmatpush.bf16.msra.mxu0 %v6319
    %7256 = vmatpush.bf16.msra.mxu0 %v6315
    %7257 = vmatmul.bf16.gmra.mxu0 %v4086
    %v7258 = vpop.f32.mrf.mxu0
    %v7259 = vadd.f32 %v7245, %v7258
    %v7260 = vpop.f32.mrf.mxu0
    %v7261 = vadd.f32 %v7247, %v7260
    %7262 = vdwg.mxu0
    %7263 = vmatpush.bf16.msra.mxu0 %v6375
    %7264 = vmatpush.bf16.msra.mxu0 %v6371
    %7265 = vmatpush.bf16.msra.mxu0 %v6367
    %7266 = vmatpush.bf16.msra.mxu0 %v6363
    %7267 = vmatpush.bf16.msra.mxu0 %v6359
    %7268 = vmatpush.bf16.msra.mxu0 %v6355
    %7269 = vmatpush.bf16.msra.mxu0 %v6351
    %7270 = vmatpush.bf16.msra.mxu0 %v6347
    %7271 = vmatmul.bf16.gmra.mxu0 %v4087
    %v7272 = vpop.f32.mrf.mxu0
    %v7273 = vadd.f32 %v7259, %v7272
    %v7274 = vpop.f32.mrf.mxu0
    %v7275 = vadd.f32 %v7261, %v7274
    %7276 = vdwg.mxu0
    %7277 = vmatpush.bf16.msra.mxu0 %v6407
    %7278 = vmatpush.bf16.msra.mxu0 %v6403
    %7279 = vmatpush.bf16.msra.mxu0 %v6399
    %7280 = vmatpush.bf16.msra.mxu0 %v6395
    %7281 = vmatpush.bf16.msra.mxu0 %v6391
    %7282 = vmatpush.bf16.msra.mxu0 %v6387
    %7283 = vmatpush.bf16.msra.mxu0 %v6383
    %7284 = vmatpush.bf16.msra.mxu0 %v6379
    %7285 = vmatmul.bf16.gmra.mxu0 %v4088
    %v7286 = vpop.f32.mrf.mxu0
    %v7287 = vadd.f32 %v7273, %v7286
    %v7288 = vpop.f32.mrf.mxu0
    %v7289 = vadd.f32 %v7275, %v7288
    %7290 = vdwg.mxu0
    %7291 = vmatpush.bf16.msra.mxu0 %v6439
    %7292 = vmatpush.bf16.msra.mxu0 %v6435
    %7293 = vmatpush.bf16.msra.mxu0 %v6431
    %7294 = vmatpush.bf16.msra.mxu0 %v6427
    %7295 = vmatpush.bf16.msra.mxu0 %v6423
    %7296 = vmatpush.bf16.msra.mxu0 %v6419
    %7297 = vmatpush.bf16.msra.mxu0 %v6415
    %7298 = vmatpush.bf16.msra.mxu0 %v6411
    %7299 = vmatmul.bf16.gmra.mxu0 %v4089
    %v7300 = vpop.f32.mrf.mxu0
    %v7301 = vadd.f32 %v7287, %v7300
    %v7302 = vpop.f32.mrf.mxu0
    %v7303 = vadd.f32 %v7289, %v7302
    %7304 = vdwg.mxu0
    %7305 = vmatpush.bf16.msra.mxu0 %v6471
    %7306 = vmatpush.bf16.msra.mxu0 %v6467
    %7307 = vmatpush.bf16.msra.mxu0 %v6463
    %7308 = vmatpush.bf16.msra.mxu0 %v6459
    %7309 = vmatpush.bf16.msra.mxu0 %v6455
    %7310 = vmatpush.bf16.msra.mxu0 %v6451
    %7311 = vmatpush.bf16.msra.mxu0 %v6447
    %7312 = vmatpush.bf16.msra.mxu0 %v6443
    %7313 = vmatmul.bf16.gmra.mxu0 %v4090
    %v7314 = vpop.f32.mrf.mxu0
    %v7315 = vadd.f32 %v7301, %v7314
    %v7316 = vpop.f32.mrf.mxu0
    %v7317 = vadd.f32 %v7303, %v7316
    %7318 = vdwg.mxu0
    %7319 = vmatpush.bf16.msra.mxu0 %v6503
    %7320 = vmatpush.bf16.msra.mxu0 %v6499
    %7321 = vmatpush.bf16.msra.mxu0 %v6495
    %7322 = vmatpush.bf16.msra.mxu0 %v6491
    %7323 = vmatpush.bf16.msra.mxu0 %v6487
    %7324 = vmatpush.bf16.msra.mxu0 %v6483
    %7325 = vmatpush.bf16.msra.mxu0 %v6479
    %7326 = vmatpush.bf16.msra.mxu0 %v6475
    %7327 = vmatmul.bf16.gmra.mxu0 %v4091
    %v7328 = vpop.f32.mrf.mxu0
    %v7329 = vadd.f32 %v7315, %v7328
    %v7330 = vpop.f32.mrf.mxu0
    %v7331 = vadd.f32 %v7317, %v7330
    %7332 = vdwg.mxu0
    %7333 = vmatpush.bf16.msra.mxu0 %v6535
    %7334 = vmatpush.bf16.msra.mxu0 %v6531
    %7335 = vmatpush.bf16.msra.mxu0 %v6527
    %7336 = vmatpush.bf16.msra.mxu0 %v6523
    %7337 = vmatpush.bf16.msra.mxu0 %v6519
    %7338 = vmatpush.bf16.msra.mxu0 %v6515
    %7339 = vmatpush.bf16.msra.mxu0 %v6511
    %7340 = vmatpush.bf16.msra.mxu0 %v6507
    %7341 = vmatmul.bf16.gmra.mxu0 %v4092
    %v7342 = vpop.f32.mrf.mxu0
    %v7343 = vadd.f32 %v7329, %v7342
    %v7344 = vpop.f32.mrf.mxu0
    %v7345 = vadd.f32 %v7331, %v7344
    %7346 = vdwg.mxu0
    %7347 = vmatpush.bf16.msra.mxu0 %v6567
    %7348 = vmatpush.bf16.msra.mxu0 %v6563
    %7349 = vmatpush.bf16.msra.mxu0 %v6559
    %7350 = vmatpush.bf16.msra.mxu0 %v6555
    %7351 = vmatpush.bf16.msra.mxu0 %v6551
    %7352 = vmatpush.bf16.msra.mxu0 %v6547
    %7353 = vmatpush.bf16.msra.mxu0 %v6543
    %7354 = vmatpush.bf16.msra.mxu0 %v6539
    %7355 = vmatmul.bf16.gmra.mxu0 %v4093
    %v7356 = vpop.f32.mrf.mxu0
    %v7357 = vadd.f32 %v7343, %v7356
    %v7358 = vpop.f32.mrf.mxu0
    %v7359 = vadd.f32 %v7345, %v7358
    %7360 = vdwg.mxu0
    %7361 = vmatpush.bf16.msra.mxu0 %v6599
    %7362 = vmatpush.bf16.msra.mxu0 %v6595
    %7363 = vmatpush.bf16.msra.mxu0 %v6591
    %7364 = vmatpush.bf16.msra.mxu0 %v6587
    %7365 = vmatpush.bf16.msra.mxu0 %v6583
    %7366 = vmatpush.bf16.msra.mxu0 %v6579
    %7367 = vmatpush.bf16.msra.mxu0 %v6575
    %7368 = vmatpush.bf16.msra.mxu0 %v6571
    %7369 = vmatmul.bf16.gmra.mxu0 %v4094
    %v7370 = vpop.f32.mrf.mxu0
    %v7371 = vadd.f32 %v7357, %v7370
    %v7372 = vpop.f32.mrf.mxu0
    %v7373 = vadd.f32 %v7359, %v7372
    %7374 = vdwg.mxu0
    %7375 = vmatpush.bf16.msra.mxu0 %v6631
    %7376 = vmatpush.bf16.msra.mxu0 %v6627
    %7377 = vmatpush.bf16.msra.mxu0 %v6623
    %7378 = vmatpush.bf16.msra.mxu0 %v6619
    %7379 = vmatpush.bf16.msra.mxu0 %v6615
    %7380 = vmatpush.bf16.msra.mxu0 %v6611
    %7381 = vmatpush.bf16.msra.mxu0 %v6607
    %7382 = vmatpush.bf16.msra.mxu0 %v6603
    %7383 = vmatmul.bf16.gmra.mxu0 %v4095
    %v7384 = vpop.f32.mrf.mxu0
    %v7385 = vadd.f32 %v7371, %v7384
    %v7386 = vpop.f32.mrf.mxu0
    %v7387 = vadd.f32 %v7373, %v7386
    %7388 = vdwg.mxu0
    %7389 = vmatpush.bf16.msra.mxu0 %v6663
    %7390 = vmatpush.bf16.msra.mxu0 %v6659
    %7391 = vmatpush.bf16.msra.mxu0 %v6655
    %7392 = vmatpush.bf16.msra.mxu0 %v6651
    %7393 = vmatpush.bf16.msra.mxu0 %v6647
    %7394 = vmatpush.bf16.msra.mxu0 %v6643
    %7395 = vmatpush.bf16.msra.mxu0 %v6639
    %7396 = vmatpush.bf16.msra.mxu0 %v6635
    %7397 = vmatmul.bf16.gmra.mxu0 %v4096
    %v7398 = vpop.f32.mrf.mxu0
    %v7399 = vadd.f32 %v7385, %v7398
    %v7400 = vpop.f32.mrf.mxu0
    %v7401 = vadd.f32 %v7387, %v7400
    %7402 = vdwg.mxu0
    %7403 = vmatpush.bf16.msra.mxu0 %v6184
    %7404 = vmatpush.bf16.msra.mxu0 %v6180
    %7405 = vmatpush.bf16.msra.mxu0 %v6176
    %7406 = vmatpush.bf16.msra.mxu0 %v6172
    %7407 = vmatpush.bf16.msra.mxu0 %v6168
    %7408 = vmatpush.bf16.msra.mxu0 %v6164
    %7409 = vmatpush.bf16.msra.mxu0 %v6160
    %7410 = vmatpush.bf16.msra.mxu0 %v6156
    %7411 = vmatmul.bf16.gmra.mxu0 %v4081
    %v7412 = vpop.f32.mrf.mxu0
    %v7413 = vadd.f32 %v4612, %v7412
    %v7414 = vpop.f32.mrf.mxu0
    %v7415 = vadd.f32 %v4612, %v7414
    %7416 = vdwg.mxu0
    %7417 = vmatpush.bf16.msra.mxu0 %v6216
    %7418 = vmatpush.bf16.msra.mxu0 %v6212
    %7419 = vmatpush.bf16.msra.mxu0 %v6208
    %7420 = vmatpush.bf16.msra.mxu0 %v6204
    %7421 = vmatpush.bf16.msra.mxu0 %v6200
    %7422 = vmatpush.bf16.msra.mxu0 %v6196
    %7423 = vmatpush.bf16.msra.mxu0 %v6192
    %7424 = vmatpush.bf16.msra.mxu0 %v6188
    %7425 = vmatmul.bf16.gmra.mxu0 %v4082
    %v7426 = vpop.f32.mrf.mxu0
    %v7427 = vadd.f32 %v7413, %v7426
    %v7428 = vpop.f32.mrf.mxu0
    %v7429 = vadd.f32 %v7415, %v7428
    %7430 = vdwg.mxu0
    %7431 = vmatpush.bf16.msra.mxu0 %v6248
    %7432 = vmatpush.bf16.msra.mxu0 %v6244
    %7433 = vmatpush.bf16.msra.mxu0 %v6240
    %7434 = vmatpush.bf16.msra.mxu0 %v6236
    %7435 = vmatpush.bf16.msra.mxu0 %v6232
    %7436 = vmatpush.bf16.msra.mxu0 %v6228
    %7437 = vmatpush.bf16.msra.mxu0 %v6224
    %7438 = vmatpush.bf16.msra.mxu0 %v6220
    %7439 = vmatmul.bf16.gmra.mxu0 %v4083
    %v7440 = vpop.f32.mrf.mxu0
    %v7441 = vadd.f32 %v7427, %v7440
    %v7442 = vpop.f32.mrf.mxu0
    %v7443 = vadd.f32 %v7429, %v7442
    %7444 = vdwg.mxu0
    %7445 = vmatpush.bf16.msra.mxu0 %v6280
    %7446 = vmatpush.bf16.msra.mxu0 %v6276
    %7447 = vmatpush.bf16.msra.mxu0 %v6272
    %7448 = vmatpush.bf16.msra.mxu0 %v6268
    %7449 = vmatpush.bf16.msra.mxu0 %v6264
    %7450 = vmatpush.bf16.msra.mxu0 %v6260
    %7451 = vmatpush.bf16.msra.mxu0 %v6256
    %7452 = vmatpush.bf16.msra.mxu0 %v6252
    %7453 = vmatmul.bf16.gmra.mxu0 %v4084
    %v7454 = vpop.f32.mrf.mxu0
    %v7455 = vadd.f32 %v7441, %v7454
    %v7456 = vpop.f32.mrf.mxu0
    %v7457 = vadd.f32 %v7443, %v7456
    %7458 = vdwg.mxu0
    %7459 = vmatpush.bf16.msra.mxu0 %v6312
    %7460 = vmatpush.bf16.msra.mxu0 %v6308
    %7461 = vmatpush.bf16.msra.mxu0 %v6304
    %7462 = vmatpush.bf16.msra.mxu0 %v6300
    %7463 = vmatpush.bf16.msra.mxu0 %v6296
    %7464 = vmatpush.bf16.msra.mxu0 %v6292
    %7465 = vmatpush.bf16.msra.mxu0 %v6288
    %7466 = vmatpush.bf16.msra.mxu0 %v6284
    %7467 = vmatmul.bf16.gmra.mxu0 %v4085
    %v7468 = vpop.f32.mrf.mxu0
    %v7469 = vadd.f32 %v7455, %v7468
    %v7470 = vpop.f32.mrf.mxu0
    %v7471 = vadd.f32 %v7457, %v7470
    %7472 = vdwg.mxu0
    %7473 = vmatpush.bf16.msra.mxu0 %v6344
    %7474 = vmatpush.bf16.msra.mxu0 %v6340
    %7475 = vmatpush.bf16.msra.mxu0 %v6336
    %7476 = vmatpush.bf16.msra.mxu0 %v6332
    %7477 = vmatpush.bf16.msra.mxu0 %v6328
    %7478 = vmatpush.bf16.msra.mxu0 %v6324
    %7479 = vmatpush.bf16.msra.mxu0 %v6320
    %7480 = vmatpush.bf16.msra.mxu0 %v6316
    %7481 = vmatmul.bf16.gmra.mxu0 %v4086
    %v7482 = vpop.f32.mrf.mxu0
    %v7483 = vadd.f32 %v7469, %v7482
    %v7484 = vpop.f32.mrf.mxu0
    %v7485 = vadd.f32 %v7471, %v7484
    %7486 = vdwg.mxu0
    %7487 = vmatpush.bf16.msra.mxu0 %v6376
    %7488 = vmatpush.bf16.msra.mxu0 %v6372
    %7489 = vmatpush.bf16.msra.mxu0 %v6368
    %7490 = vmatpush.bf16.msra.mxu0 %v6364
    %7491 = vmatpush.bf16.msra.mxu0 %v6360
    %7492 = vmatpush.bf16.msra.mxu0 %v6356
    %7493 = vmatpush.bf16.msra.mxu0 %v6352
    %7494 = vmatpush.bf16.msra.mxu0 %v6348
    %7495 = vmatmul.bf16.gmra.mxu0 %v4087
    %v7496 = vpop.f32.mrf.mxu0
    %v7497 = vadd.f32 %v7483, %v7496
    %v7498 = vpop.f32.mrf.mxu0
    %v7499 = vadd.f32 %v7485, %v7498
    %7500 = vdwg.mxu0
    %7501 = vmatpush.bf16.msra.mxu0 %v6408
    %7502 = vmatpush.bf16.msra.mxu0 %v6404
    %7503 = vmatpush.bf16.msra.mxu0 %v6400
    %7504 = vmatpush.bf16.msra.mxu0 %v6396
    %7505 = vmatpush.bf16.msra.mxu0 %v6392
    %7506 = vmatpush.bf16.msra.mxu0 %v6388
    %7507 = vmatpush.bf16.msra.mxu0 %v6384
    %7508 = vmatpush.bf16.msra.mxu0 %v6380
    %7509 = vmatmul.bf16.gmra.mxu0 %v4088
    %v7510 = vpop.f32.mrf.mxu0
    %v7511 = vadd.f32 %v7497, %v7510
    %v7512 = vpop.f32.mrf.mxu0
    %v7513 = vadd.f32 %v7499, %v7512
    %7514 = vdwg.mxu0
    %7515 = vmatpush.bf16.msra.mxu0 %v6440
    %7516 = vmatpush.bf16.msra.mxu0 %v6436
    %7517 = vmatpush.bf16.msra.mxu0 %v6432
    %7518 = vmatpush.bf16.msra.mxu0 %v6428
    %7519 = vmatpush.bf16.msra.mxu0 %v6424
    %7520 = vmatpush.bf16.msra.mxu0 %v6420
    %7521 = vmatpush.bf16.msra.mxu0 %v6416
    %7522 = vmatpush.bf16.msra.mxu0 %v6412
    %7523 = vmatmul.bf16.gmra.mxu0 %v4089
    %v7524 = vpop.f32.mrf.mxu0
    %v7525 = vadd.f32 %v7511, %v7524
    %v7526 = vpop.f32.mrf.mxu0
    %v7527 = vadd.f32 %v7513, %v7526
    %7528 = vdwg.mxu0
    %7529 = vmatpush.bf16.msra.mxu0 %v6472
    %7530 = vmatpush.bf16.msra.mxu0 %v6468
    %7531 = vmatpush.bf16.msra.mxu0 %v6464
    %7532 = vmatpush.bf16.msra.mxu0 %v6460
    %7533 = vmatpush.bf16.msra.mxu0 %v6456
    %7534 = vmatpush.bf16.msra.mxu0 %v6452
    %7535 = vmatpush.bf16.msra.mxu0 %v6448
    %7536 = vmatpush.bf16.msra.mxu0 %v6444
    %7537 = vmatmul.bf16.gmra.mxu0 %v4090
    %v7538 = vpop.f32.mrf.mxu0
    %v7539 = vadd.f32 %v7525, %v7538
    %v7540 = vpop.f32.mrf.mxu0
    %v7541 = vadd.f32 %v7527, %v7540
    %7542 = vdwg.mxu0
    %7543 = vmatpush.bf16.msra.mxu0 %v6504
    %7544 = vmatpush.bf16.msra.mxu0 %v6500
    %7545 = vmatpush.bf16.msra.mxu0 %v6496
    %7546 = vmatpush.bf16.msra.mxu0 %v6492
    %7547 = vmatpush.bf16.msra.mxu0 %v6488
    %7548 = vmatpush.bf16.msra.mxu0 %v6484
    %7549 = vmatpush.bf16.msra.mxu0 %v6480
    %7550 = vmatpush.bf16.msra.mxu0 %v6476
    %7551 = vmatmul.bf16.gmra.mxu0 %v4091
    %v7552 = vpop.f32.mrf.mxu0
    %v7553 = vadd.f32 %v7539, %v7552
    %v7554 = vpop.f32.mrf.mxu0
    %v7555 = vadd.f32 %v7541, %v7554
    %7556 = vdwg.mxu0
    %7557 = vmatpush.bf16.msra.mxu0 %v6536
    %7558 = vmatpush.bf16.msra.mxu0 %v6532
    %7559 = vmatpush.bf16.msra.mxu0 %v6528
    %7560 = vmatpush.bf16.msra.mxu0 %v6524
    %7561 = vmatpush.bf16.msra.mxu0 %v6520
    %7562 = vmatpush.bf16.msra.mxu0 %v6516
    %7563 = vmatpush.bf16.msra.mxu0 %v6512
    %7564 = vmatpush.bf16.msra.mxu0 %v6508
    %7565 = vmatmul.bf16.gmra.mxu0 %v4092
    %v7566 = vpop.f32.mrf.mxu0
    %v7567 = vadd.f32 %v7553, %v7566
    %v7568 = vpop.f32.mrf.mxu0
    %v7569 = vadd.f32 %v7555, %v7568
    %7570 = vdwg.mxu0
    %7571 = vmatpush.bf16.msra.mxu0 %v6568
    %7572 = vmatpush.bf16.msra.mxu0 %v6564
    %7573 = vmatpush.bf16.msra.mxu0 %v6560
    %7574 = vmatpush.bf16.msra.mxu0 %v6556
    %7575 = vmatpush.bf16.msra.mxu0 %v6552
    %7576 = vmatpush.bf16.msra.mxu0 %v6548
    %7577 = vmatpush.bf16.msra.mxu0 %v6544
    %7578 = vmatpush.bf16.msra.mxu0 %v6540
    %7579 = vmatmul.bf16.gmra.mxu0 %v4093
    %v7580 = vpop.f32.mrf.mxu0
    %v7581 = vadd.f32 %v7567, %v7580
    %v7582 = vpop.f32.mrf.mxu0
    %v7583 = vadd.f32 %v7569, %v7582
    %7584 = vdwg.mxu0
    %7585 = vmatpush.bf16.msra.mxu0 %v6600
    %7586 = vmatpush.bf16.msra.mxu0 %v6596
    %7587 = vmatpush.bf16.msra.mxu0 %v6592
    %7588 = vmatpush.bf16.msra.mxu0 %v6588
    %7589 = vmatpush.bf16.msra.mxu0 %v6584
    %7590 = vmatpush.bf16.msra.mxu0 %v6580
    %7591 = vmatpush.bf16.msra.mxu0 %v6576
    %7592 = vmatpush.bf16.msra.mxu0 %v6572
    %7593 = vmatmul.bf16.gmra.mxu0 %v4094
    %v7594 = vpop.f32.mrf.mxu0
    %v7595 = vadd.f32 %v7581, %v7594
    %v7596 = vpop.f32.mrf.mxu0
    %v7597 = vadd.f32 %v7583, %v7596
    %7598 = vdwg.mxu0
    %7599 = vmatpush.bf16.msra.mxu0 %v6632
    %7600 = vmatpush.bf16.msra.mxu0 %v6628
    %7601 = vmatpush.bf16.msra.mxu0 %v6624
    %7602 = vmatpush.bf16.msra.mxu0 %v6620
    %7603 = vmatpush.bf16.msra.mxu0 %v6616
    %7604 = vmatpush.bf16.msra.mxu0 %v6612
    %7605 = vmatpush.bf16.msra.mxu0 %v6608
    %7606 = vmatpush.bf16.msra.mxu0 %v6604
    %7607 = vmatmul.bf16.gmra.mxu0 %v4095
    %v7608 = vpop.f32.mrf.mxu0
    %v7609 = vadd.f32 %v7595, %v7608
    %v7610 = vpop.f32.mrf.mxu0
    %v7611 = vadd.f32 %v7597, %v7610
    %7612 = vdwg.mxu0
    %7613 = vmatpush.bf16.msra.mxu0 %v6664
    %7614 = vmatpush.bf16.msra.mxu0 %v6660
    %7615 = vmatpush.bf16.msra.mxu0 %v6656
    %7616 = vmatpush.bf16.msra.mxu0 %v6652
    %7617 = vmatpush.bf16.msra.mxu0 %v6648
    %7618 = vmatpush.bf16.msra.mxu0 %v6644
    %7619 = vmatpush.bf16.msra.mxu0 %v6640
    %7620 = vmatpush.bf16.msra.mxu0 %v6636
    %7621 = vmatmul.bf16.gmra.mxu0 %v4096
    %v7622 = vpop.f32.mrf.mxu0
    %v7623 = vadd.f32 %v7609, %v7622
    %v7624 = vpop.f32.mrf.mxu0
    %v7625 = vadd.f32 %v7611, %v7624
    %7626 = vdwg.mxu0
    %7627 = vmatpush.bf16.msra.mxu0 %v6185
    %7628 = vmatpush.bf16.msra.mxu0 %v6181
    %7629 = vmatpush.bf16.msra.mxu0 %v6177
    %7630 = vmatpush.bf16.msra.mxu0 %v6173
    %7631 = vmatpush.bf16.msra.mxu0 %v6169
    %7632 = vmatpush.bf16.msra.mxu0 %v6165
    %7633 = vmatpush.bf16.msra.mxu0 %v6161
    %7634 = vmatpush.bf16.msra.mxu0 %v6157
    %7635 = vmatmul.bf16.gmra.mxu0 %v4081
    %v7636 = vpop.f32.mrf.mxu0
    %v7637 = vadd.f32 %v4613, %v7636
    %v7638 = vpop.f32.mrf.mxu0
    %v7639 = vadd.f32 %v4613, %v7638
    %7640 = vdwg.mxu0
    %7641 = vmatpush.bf16.msra.mxu0 %v6217
    %7642 = vmatpush.bf16.msra.mxu0 %v6213
    %7643 = vmatpush.bf16.msra.mxu0 %v6209
    %7644 = vmatpush.bf16.msra.mxu0 %v6205
    %7645 = vmatpush.bf16.msra.mxu0 %v6201
    %7646 = vmatpush.bf16.msra.mxu0 %v6197
    %7647 = vmatpush.bf16.msra.mxu0 %v6193
    %7648 = vmatpush.bf16.msra.mxu0 %v6189
    %7649 = vmatmul.bf16.gmra.mxu0 %v4082
    %v7650 = vpop.f32.mrf.mxu0
    %v7651 = vadd.f32 %v7637, %v7650
    %v7652 = vpop.f32.mrf.mxu0
    %v7653 = vadd.f32 %v7639, %v7652
    %7654 = vdwg.mxu0
    %7655 = vmatpush.bf16.msra.mxu0 %v6249
    %7656 = vmatpush.bf16.msra.mxu0 %v6245
    %7657 = vmatpush.bf16.msra.mxu0 %v6241
    %7658 = vmatpush.bf16.msra.mxu0 %v6237
    %7659 = vmatpush.bf16.msra.mxu0 %v6233
    %7660 = vmatpush.bf16.msra.mxu0 %v6229
    %7661 = vmatpush.bf16.msra.mxu0 %v6225
    %7662 = vmatpush.bf16.msra.mxu0 %v6221
    %7663 = vmatmul.bf16.gmra.mxu0 %v4083
    %v7664 = vpop.f32.mrf.mxu0
    %v7665 = vadd.f32 %v7651, %v7664
    %v7666 = vpop.f32.mrf.mxu0
    %v7667 = vadd.f32 %v7653, %v7666
    %7668 = vdwg.mxu0
    %7669 = vmatpush.bf16.msra.mxu0 %v6281
    %7670 = vmatpush.bf16.msra.mxu0 %v6277
    %7671 = vmatpush.bf16.msra.mxu0 %v6273
    %7672 = vmatpush.bf16.msra.mxu0 %v6269
    %7673 = vmatpush.bf16.msra.mxu0 %v6265
    %7674 = vmatpush.bf16.msra.mxu0 %v6261
    %7675 = vmatpush.bf16.msra.mxu0 %v6257
    %7676 = vmatpush.bf16.msra.mxu0 %v6253
    %7677 = vmatmul.bf16.gmra.mxu0 %v4084
    %v7678 = vpop.f32.mrf.mxu0
    %v7679 = vadd.f32 %v7665, %v7678
    %v7680 = vpop.f32.mrf.mxu0
    %v7681 = vadd.f32 %v7667, %v7680
    %7682 = vdwg.mxu0
    %7683 = vmatpush.bf16.msra.mxu0 %v6313
    %7684 = vmatpush.bf16.msra.mxu0 %v6309
    %7685 = vmatpush.bf16.msra.mxu0 %v6305
    %7686 = vmatpush.bf16.msra.mxu0 %v6301
    %7687 = vmatpush.bf16.msra.mxu0 %v6297
    %7688 = vmatpush.bf16.msra.mxu0 %v6293
    %7689 = vmatpush.bf16.msra.mxu0 %v6289
    %7690 = vmatpush.bf16.msra.mxu0 %v6285
    %7691 = vmatmul.bf16.gmra.mxu0 %v4085
    %v7692 = vpop.f32.mrf.mxu0
    %v7693 = vadd.f32 %v7679, %v7692
    %v7694 = vpop.f32.mrf.mxu0
    %v7695 = vadd.f32 %v7681, %v7694
    %7696 = vdwg.mxu0
    %7697 = vmatpush.bf16.msra.mxu0 %v6345
    %7698 = vmatpush.bf16.msra.mxu0 %v6341
    %7699 = vmatpush.bf16.msra.mxu0 %v6337
    %7700 = vmatpush.bf16.msra.mxu0 %v6333
    %7701 = vmatpush.bf16.msra.mxu0 %v6329
    %7702 = vmatpush.bf16.msra.mxu0 %v6325
    %7703 = vmatpush.bf16.msra.mxu0 %v6321
    %7704 = vmatpush.bf16.msra.mxu0 %v6317
    %7705 = vmatmul.bf16.gmra.mxu0 %v4086
    %v7706 = vpop.f32.mrf.mxu0
    %v7707 = vadd.f32 %v7693, %v7706
    %v7708 = vpop.f32.mrf.mxu0
    %v7709 = vadd.f32 %v7695, %v7708
    %7710 = vdwg.mxu0
    %7711 = vmatpush.bf16.msra.mxu0 %v6377
    %7712 = vmatpush.bf16.msra.mxu0 %v6373
    %7713 = vmatpush.bf16.msra.mxu0 %v6369
    %7714 = vmatpush.bf16.msra.mxu0 %v6365
    %7715 = vmatpush.bf16.msra.mxu0 %v6361
    %7716 = vmatpush.bf16.msra.mxu0 %v6357
    %7717 = vmatpush.bf16.msra.mxu0 %v6353
    %7718 = vmatpush.bf16.msra.mxu0 %v6349
    %7719 = vmatmul.bf16.gmra.mxu0 %v4087
    %v7720 = vpop.f32.mrf.mxu0
    %v7721 = vadd.f32 %v7707, %v7720
    %v7722 = vpop.f32.mrf.mxu0
    %v7723 = vadd.f32 %v7709, %v7722
    %7724 = vdwg.mxu0
    %7725 = vmatpush.bf16.msra.mxu0 %v6409
    %7726 = vmatpush.bf16.msra.mxu0 %v6405
    %7727 = vmatpush.bf16.msra.mxu0 %v6401
    %7728 = vmatpush.bf16.msra.mxu0 %v6397
    %7729 = vmatpush.bf16.msra.mxu0 %v6393
    %7730 = vmatpush.bf16.msra.mxu0 %v6389
    %7731 = vmatpush.bf16.msra.mxu0 %v6385
    %7732 = vmatpush.bf16.msra.mxu0 %v6381
    %7733 = vmatmul.bf16.gmra.mxu0 %v4088
    %v7734 = vpop.f32.mrf.mxu0
    %v7735 = vadd.f32 %v7721, %v7734
    %v7736 = vpop.f32.mrf.mxu0
    %v7737 = vadd.f32 %v7723, %v7736
    %7738 = vdwg.mxu0
    %7739 = vmatpush.bf16.msra.mxu0 %v6441
    %7740 = vmatpush.bf16.msra.mxu0 %v6437
    %7741 = vmatpush.bf16.msra.mxu0 %v6433
    %7742 = vmatpush.bf16.msra.mxu0 %v6429
    %7743 = vmatpush.bf16.msra.mxu0 %v6425
    %7744 = vmatpush.bf16.msra.mxu0 %v6421
    %7745 = vmatpush.bf16.msra.mxu0 %v6417
    %7746 = vmatpush.bf16.msra.mxu0 %v6413
    %7747 = vmatmul.bf16.gmra.mxu0 %v4089
    %v7748 = vpop.f32.mrf.mxu0
    %v7749 = vadd.f32 %v7735, %v7748
    %v7750 = vpop.f32.mrf.mxu0
    %v7751 = vadd.f32 %v7737, %v7750
    %7752 = vdwg.mxu0
    %7753 = vmatpush.bf16.msra.mxu0 %v6473
    %7754 = vmatpush.bf16.msra.mxu0 %v6469
    %7755 = vmatpush.bf16.msra.mxu0 %v6465
    %7756 = vmatpush.bf16.msra.mxu0 %v6461
    %7757 = vmatpush.bf16.msra.mxu0 %v6457
    %7758 = vmatpush.bf16.msra.mxu0 %v6453
    %7759 = vmatpush.bf16.msra.mxu0 %v6449
    %7760 = vmatpush.bf16.msra.mxu0 %v6445
    %7761 = vmatmul.bf16.gmra.mxu0 %v4090
    %v7762 = vpop.f32.mrf.mxu0
    %v7763 = vadd.f32 %v7749, %v7762
    %v7764 = vpop.f32.mrf.mxu0
    %v7765 = vadd.f32 %v7751, %v7764
    %7766 = vdwg.mxu0
    %7767 = vmatpush.bf16.msra.mxu0 %v6505
    %7768 = vmatpush.bf16.msra.mxu0 %v6501
    %7769 = vmatpush.bf16.msra.mxu0 %v6497
    %7770 = vmatpush.bf16.msra.mxu0 %v6493
    %7771 = vmatpush.bf16.msra.mxu0 %v6489
    %7772 = vmatpush.bf16.msra.mxu0 %v6485
    %7773 = vmatpush.bf16.msra.mxu0 %v6481
    %7774 = vmatpush.bf16.msra.mxu0 %v6477
    %7775 = vmatmul.bf16.gmra.mxu0 %v4091
    %v7776 = vpop.f32.mrf.mxu0
    %v7777 = vadd.f32 %v7763, %v7776
    %v7778 = vpop.f32.mrf.mxu0
    %v7779 = vadd.f32 %v7765, %v7778
    %7780 = vdwg.mxu0
    %7781 = vmatpush.bf16.msra.mxu0 %v6537
    %7782 = vmatpush.bf16.msra.mxu0 %v6533
    %7783 = vmatpush.bf16.msra.mxu0 %v6529
    %7784 = vmatpush.bf16.msra.mxu0 %v6525
    %7785 = vmatpush.bf16.msra.mxu0 %v6521
    %7786 = vmatpush.bf16.msra.mxu0 %v6517
    %7787 = vmatpush.bf16.msra.mxu0 %v6513
    %7788 = vmatpush.bf16.msra.mxu0 %v6509
    %7789 = vmatmul.bf16.gmra.mxu0 %v4092
    %v7790 = vpop.f32.mrf.mxu0
    %v7791 = vadd.f32 %v7777, %v7790
    %v7792 = vpop.f32.mrf.mxu0
    %v7793 = vadd.f32 %v7779, %v7792
    %7794 = vdwg.mxu0
    %7795 = vmatpush.bf16.msra.mxu0 %v6569
    %7796 = vmatpush.bf16.msra.mxu0 %v6565
    %7797 = vmatpush.bf16.msra.mxu0 %v6561
    %7798 = vmatpush.bf16.msra.mxu0 %v6557
    %7799 = vmatpush.bf16.msra.mxu0 %v6553
    %7800 = vmatpush.bf16.msra.mxu0 %v6549
    %7801 = vmatpush.bf16.msra.mxu0 %v6545
    %7802 = vmatpush.bf16.msra.mxu0 %v6541
    %7803 = vmatmul.bf16.gmra.mxu0 %v4093
    %v7804 = vpop.f32.mrf.mxu0
    %v7805 = vadd.f32 %v7791, %v7804
    %v7806 = vpop.f32.mrf.mxu0
    %v7807 = vadd.f32 %v7793, %v7806
    %7808 = vdwg.mxu0
    %7809 = vmatpush.bf16.msra.mxu0 %v6601
    %7810 = vmatpush.bf16.msra.mxu0 %v6597
    %7811 = vmatpush.bf16.msra.mxu0 %v6593
    %7812 = vmatpush.bf16.msra.mxu0 %v6589
    %7813 = vmatpush.bf16.msra.mxu0 %v6585
    %7814 = vmatpush.bf16.msra.mxu0 %v6581
    %7815 = vmatpush.bf16.msra.mxu0 %v6577
    %7816 = vmatpush.bf16.msra.mxu0 %v6573
    %7817 = vmatmul.bf16.gmra.mxu0 %v4094
    %v7818 = vpop.f32.mrf.mxu0
    %v7819 = vadd.f32 %v7805, %v7818
    %v7820 = vpop.f32.mrf.mxu0
    %v7821 = vadd.f32 %v7807, %v7820
    %7822 = vdwg.mxu0
    %7823 = vmatpush.bf16.msra.mxu0 %v6633
    %7824 = vmatpush.bf16.msra.mxu0 %v6629
    %7825 = vmatpush.bf16.msra.mxu0 %v6625
    %7826 = vmatpush.bf16.msra.mxu0 %v6621
    %7827 = vmatpush.bf16.msra.mxu0 %v6617
    %7828 = vmatpush.bf16.msra.mxu0 %v6613
    %7829 = vmatpush.bf16.msra.mxu0 %v6609
    %7830 = vmatpush.bf16.msra.mxu0 %v6605
    %7831 = vmatmul.bf16.gmra.mxu0 %v4095
    %v7832 = vpop.f32.mrf.mxu0
    %v7833 = vadd.f32 %v7819, %v7832
    %v7834 = vpop.f32.mrf.mxu0
    %v7835 = vadd.f32 %v7821, %v7834
    %7836 = vdwg.mxu0
    %7837 = vmatpush.bf16.msra.mxu0 %v6665
    %7838 = vmatpush.bf16.msra.mxu0 %v6661
    %7839 = vmatpush.bf16.msra.mxu0 %v6657
    %7840 = vmatpush.bf16.msra.mxu0 %v6653
    %7841 = vmatpush.bf16.msra.mxu0 %v6649
    %7842 = vmatpush.bf16.msra.mxu0 %v6645
    %7843 = vmatpush.bf16.msra.mxu0 %v6641
    %7844 = vmatpush.bf16.msra.mxu0 %v6637
    %7845 = vmatmul.bf16.gmra.mxu0 %v4096
    %v7846 = vpop.f32.mrf.mxu0
    %v7847 = vadd.f32 %v7833, %v7846
    %v7848 = vpop.f32.mrf.mxu0
    %v7849 = vadd.f32 %v7835, %v7848
    %7850 = vdwg.mxu0
    %7851 = vmatpush.bf16.msra.mxu0 %v6186
    %7852 = vmatpush.bf16.msra.mxu0 %v6182
    %7853 = vmatpush.bf16.msra.mxu0 %v6178
    %7854 = vmatpush.bf16.msra.mxu0 %v6174
    %7855 = vmatpush.bf16.msra.mxu0 %v6170
    %7856 = vmatpush.bf16.msra.mxu0 %v6166
    %7857 = vmatpush.bf16.msra.mxu0 %v6162
    %7858 = vmatpush.bf16.msra.mxu0 %v6158
    %7859 = vmatmul.bf16.gmra.mxu0 %v4081
    %v7860 = vpop.f32.mrf.mxu0
    %v7861 = vadd.f32 %v4614, %v7860
    %v7862 = vpop.f32.mrf.mxu0
    %v7863 = vadd.f32 %v4614, %v7862
    %7864 = vdwg.mxu0
    %7865 = vmatpush.bf16.msra.mxu0 %v6218
    %7866 = vmatpush.bf16.msra.mxu0 %v6214
    %7867 = vmatpush.bf16.msra.mxu0 %v6210
    %7868 = vmatpush.bf16.msra.mxu0 %v6206
    %7869 = vmatpush.bf16.msra.mxu0 %v6202
    %7870 = vmatpush.bf16.msra.mxu0 %v6198
    %7871 = vmatpush.bf16.msra.mxu0 %v6194
    %7872 = vmatpush.bf16.msra.mxu0 %v6190
    %7873 = vmatmul.bf16.gmra.mxu0 %v4082
    %v7874 = vpop.f32.mrf.mxu0
    %v7875 = vadd.f32 %v7861, %v7874
    %v7876 = vpop.f32.mrf.mxu0
    %v7877 = vadd.f32 %v7863, %v7876
    %7878 = vdwg.mxu0
    %7879 = vmatpush.bf16.msra.mxu0 %v6250
    %7880 = vmatpush.bf16.msra.mxu0 %v6246
    %7881 = vmatpush.bf16.msra.mxu0 %v6242
    %7882 = vmatpush.bf16.msra.mxu0 %v6238
    %7883 = vmatpush.bf16.msra.mxu0 %v6234
    %7884 = vmatpush.bf16.msra.mxu0 %v6230
    %7885 = vmatpush.bf16.msra.mxu0 %v6226
    %7886 = vmatpush.bf16.msra.mxu0 %v6222
    %7887 = vmatmul.bf16.gmra.mxu0 %v4083
    %v7888 = vpop.f32.mrf.mxu0
    %v7889 = vadd.f32 %v7875, %v7888
    %v7890 = vpop.f32.mrf.mxu0
    %v7891 = vadd.f32 %v7877, %v7890
    %7892 = vdwg.mxu0
    %7893 = vmatpush.bf16.msra.mxu0 %v6282
    %7894 = vmatpush.bf16.msra.mxu0 %v6278
    %7895 = vmatpush.bf16.msra.mxu0 %v6274
    %7896 = vmatpush.bf16.msra.mxu0 %v6270
    %7897 = vmatpush.bf16.msra.mxu0 %v6266
    %7898 = vmatpush.bf16.msra.mxu0 %v6262
    %7899 = vmatpush.bf16.msra.mxu0 %v6258
    %7900 = vmatpush.bf16.msra.mxu0 %v6254
    %7901 = vmatmul.bf16.gmra.mxu0 %v4084
    %v7902 = vpop.f32.mrf.mxu0
    %v7903 = vadd.f32 %v7889, %v7902
    %v7904 = vpop.f32.mrf.mxu0
    %v7905 = vadd.f32 %v7891, %v7904
    %7906 = vdwg.mxu0
    %7907 = vmatpush.bf16.msra.mxu0 %v6314
    %7908 = vmatpush.bf16.msra.mxu0 %v6310
    %7909 = vmatpush.bf16.msra.mxu0 %v6306
    %7910 = vmatpush.bf16.msra.mxu0 %v6302
    %7911 = vmatpush.bf16.msra.mxu0 %v6298
    %7912 = vmatpush.bf16.msra.mxu0 %v6294
    %7913 = vmatpush.bf16.msra.mxu0 %v6290
    %7914 = vmatpush.bf16.msra.mxu0 %v6286
    %7915 = vmatmul.bf16.gmra.mxu0 %v4085
    %v7916 = vpop.f32.mrf.mxu0
    %v7917 = vadd.f32 %v7903, %v7916
    %v7918 = vpop.f32.mrf.mxu0
    %v7919 = vadd.f32 %v7905, %v7918
    %7920 = vdwg.mxu0
    %7921 = vmatpush.bf16.msra.mxu0 %v6346
    %7922 = vmatpush.bf16.msra.mxu0 %v6342
    %7923 = vmatpush.bf16.msra.mxu0 %v6338
    %7924 = vmatpush.bf16.msra.mxu0 %v6334
    %7925 = vmatpush.bf16.msra.mxu0 %v6330
    %7926 = vmatpush.bf16.msra.mxu0 %v6326
    %7927 = vmatpush.bf16.msra.mxu0 %v6322
    %7928 = vmatpush.bf16.msra.mxu0 %v6318
    %7929 = vmatmul.bf16.gmra.mxu0 %v4086
    %v7930 = vpop.f32.mrf.mxu0
    %v7931 = vadd.f32 %v7917, %v7930
    %v7932 = vpop.f32.mrf.mxu0
    %v7933 = vadd.f32 %v7919, %v7932
    %7934 = vdwg.mxu0
    %7935 = vmatpush.bf16.msra.mxu0 %v6378
    %7936 = vmatpush.bf16.msra.mxu0 %v6374
    %7937 = vmatpush.bf16.msra.mxu0 %v6370
    %7938 = vmatpush.bf16.msra.mxu0 %v6366
    %7939 = vmatpush.bf16.msra.mxu0 %v6362
    %7940 = vmatpush.bf16.msra.mxu0 %v6358
    %7941 = vmatpush.bf16.msra.mxu0 %v6354
    %7942 = vmatpush.bf16.msra.mxu0 %v6350
    %7943 = vmatmul.bf16.gmra.mxu0 %v4087
    %v7944 = vpop.f32.mrf.mxu0
    %v7945 = vadd.f32 %v7931, %v7944
    %v7946 = vpop.f32.mrf.mxu0
    %v7947 = vadd.f32 %v7933, %v7946
    %7948 = vdwg.mxu0
    %7949 = vmatpush.bf16.msra.mxu0 %v6410
    %7950 = vmatpush.bf16.msra.mxu0 %v6406
    %7951 = vmatpush.bf16.msra.mxu0 %v6402
    %7952 = vmatpush.bf16.msra.mxu0 %v6398
    %7953 = vmatpush.bf16.msra.mxu0 %v6394
    %7954 = vmatpush.bf16.msra.mxu0 %v6390
    %7955 = vmatpush.bf16.msra.mxu0 %v6386
    %7956 = vmatpush.bf16.msra.mxu0 %v6382
    %7957 = vmatmul.bf16.gmra.mxu0 %v4088
    %v7958 = vpop.f32.mrf.mxu0
    %v7959 = vadd.f32 %v7945, %v7958
    %v7960 = vpop.f32.mrf.mxu0
    %v7961 = vadd.f32 %v7947, %v7960
    %7962 = vdwg.mxu0
    %7963 = vmatpush.bf16.msra.mxu0 %v6442
    %7964 = vmatpush.bf16.msra.mxu0 %v6438
    %7965 = vmatpush.bf16.msra.mxu0 %v6434
    %7966 = vmatpush.bf16.msra.mxu0 %v6430
    %7967 = vmatpush.bf16.msra.mxu0 %v6426
    %7968 = vmatpush.bf16.msra.mxu0 %v6422
    %7969 = vmatpush.bf16.msra.mxu0 %v6418
    %7970 = vmatpush.bf16.msra.mxu0 %v6414
    %7971 = vmatmul.bf16.gmra.mxu0 %v4089
    %v7972 = vpop.f32.mrf.mxu0
    %v7973 = vadd.f32 %v7959, %v7972
    %v7974 = vpop.f32.mrf.mxu0
    %v7975 = vadd.f32 %v7961, %v7974
    %7976 = vdwg.mxu0
    %7977 = vmatpush.bf16.msra.mxu0 %v6474
    %7978 = vmatpush.bf16.msra.mxu0 %v6470
    %7979 = vmatpush.bf16.msra.mxu0 %v6466
    %7980 = vmatpush.bf16.msra.mxu0 %v6462
    %7981 = vmatpush.bf16.msra.mxu0 %v6458
    %7982 = vmatpush.bf16.msra.mxu0 %v6454
    %7983 = vmatpush.bf16.msra.mxu0 %v6450
    %7984 = vmatpush.bf16.msra.mxu0 %v6446
    %7985 = vmatmul.bf16.gmra.mxu0 %v4090
    %v7986 = vpop.f32.mrf.mxu0
    %v7987 = vadd.f32 %v7973, %v7986
    %v7988 = vpop.f32.mrf.mxu0
    %v7989 = vadd.f32 %v7975, %v7988
    %7990 = vdwg.mxu0
    %7991 = vmatpush.bf16.msra.mxu0 %v6506
    %7992 = vmatpush.bf16.msra.mxu0 %v6502
    %7993 = vmatpush.bf16.msra.mxu0 %v6498
    %7994 = vmatpush.bf16.msra.mxu0 %v6494
    %7995 = vmatpush.bf16.msra.mxu0 %v6490
    %7996 = vmatpush.bf16.msra.mxu0 %v6486
    %7997 = vmatpush.bf16.msra.mxu0 %v6482
    %7998 = vmatpush.bf16.msra.mxu0 %v6478
    %7999 = vmatmul.bf16.gmra.mxu0 %v4091
    %v8000 = vpop.f32.mrf.mxu0
    %v8001 = vadd.f32 %v7987, %v8000
    %v8002 = vpop.f32.mrf.mxu0
    %v8003 = vadd.f32 %v7989, %v8002
    %8004 = vdwg.mxu0
    %8005 = vmatpush.bf16.msra.mxu0 %v6538
    %8006 = vmatpush.bf16.msra.mxu0 %v6534
    %8007 = vmatpush.bf16.msra.mxu0 %v6530
    %8008 = vmatpush.bf16.msra.mxu0 %v6526
    %8009 = vmatpush.bf16.msra.mxu0 %v6522
    %8010 = vmatpush.bf16.msra.mxu0 %v6518
    %8011 = vmatpush.bf16.msra.mxu0 %v6514
    %8012 = vmatpush.bf16.msra.mxu0 %v6510
    %8013 = vmatmul.bf16.gmra.mxu0 %v4092
    %v8014 = vpop.f32.mrf.mxu0
    %v8015 = vadd.f32 %v8001, %v8014
    %v8016 = vpop.f32.mrf.mxu0
    %v8017 = vadd.f32 %v8003, %v8016
    %8018 = vdwg.mxu0
    %8019 = vmatpush.bf16.msra.mxu0 %v6570
    %8020 = vmatpush.bf16.msra.mxu0 %v6566
    %8021 = vmatpush.bf16.msra.mxu0 %v6562
    %8022 = vmatpush.bf16.msra.mxu0 %v6558
    %8023 = vmatpush.bf16.msra.mxu0 %v6554
    %8024 = vmatpush.bf16.msra.mxu0 %v6550
    %8025 = vmatpush.bf16.msra.mxu0 %v6546
    %8026 = vmatpush.bf16.msra.mxu0 %v6542
    %8027 = vmatmul.bf16.gmra.mxu0 %v4093
    %v8028 = vpop.f32.mrf.mxu0
    %v8029 = vadd.f32 %v8015, %v8028
    %v8030 = vpop.f32.mrf.mxu0
    %v8031 = vadd.f32 %v8017, %v8030
    %8032 = vdwg.mxu0
    %8033 = vmatpush.bf16.msra.mxu0 %v6602
    %8034 = vmatpush.bf16.msra.mxu0 %v6598
    %8035 = vmatpush.bf16.msra.mxu0 %v6594
    %8036 = vmatpush.bf16.msra.mxu0 %v6590
    %8037 = vmatpush.bf16.msra.mxu0 %v6586
    %8038 = vmatpush.bf16.msra.mxu0 %v6582
    %8039 = vmatpush.bf16.msra.mxu0 %v6578
    %8040 = vmatpush.bf16.msra.mxu0 %v6574
    %8041 = vmatmul.bf16.gmra.mxu0 %v4094
    %v8042 = vpop.f32.mrf.mxu0
    %v8043 = vadd.f32 %v8029, %v8042
    %v8044 = vpop.f32.mrf.mxu0
    %v8045 = vadd.f32 %v8031, %v8044
    %8046 = vdwg.mxu0
    %8047 = vmatpush.bf16.msra.mxu0 %v6634
    %8048 = vmatpush.bf16.msra.mxu0 %v6630
    %8049 = vmatpush.bf16.msra.mxu0 %v6626
    %8050 = vmatpush.bf16.msra.mxu0 %v6622
    %8051 = vmatpush.bf16.msra.mxu0 %v6618
    %8052 = vmatpush.bf16.msra.mxu0 %v6614
    %8053 = vmatpush.bf16.msra.mxu0 %v6610
    %8054 = vmatpush.bf16.msra.mxu0 %v6606
    %8055 = vmatmul.bf16.gmra.mxu0 %v4095
    %v8056 = vpop.f32.mrf.mxu0
    %v8057 = vadd.f32 %v8043, %v8056
    %v8058 = vpop.f32.mrf.mxu0
    %v8059 = vadd.f32 %v8045, %v8058
    %8060 = vdwg.mxu0
    %8061 = vmatpush.bf16.msra.mxu0 %v6666
    %8062 = vmatpush.bf16.msra.mxu0 %v6662
    %8063 = vmatpush.bf16.msra.mxu0 %v6658
    %8064 = vmatpush.bf16.msra.mxu0 %v6654
    %8065 = vmatpush.bf16.msra.mxu0 %v6650
    %8066 = vmatpush.bf16.msra.mxu0 %v6646
    %8067 = vmatpush.bf16.msra.mxu0 %v6642
    %8068 = vmatpush.bf16.msra.mxu0 %v6638
    %8069 = vmatmul.bf16.gmra.mxu0 %v4096
    %v8070 = vpop.f32.mrf.mxu0
    %v8071 = vadd.f32 %v8057, %v8070
    %v8072 = vpop.f32.mrf.mxu0
    %v8073 = vadd.f32 %v8059, %v8072
    %8074 = vdwg.mxu0
    %8075 = vst [vmem:[#allocation2] sm:$0xff] %v7399
    %8076 = vst [vmem:[#allocation2 + $0x8] sm:$0xff] %v7623
    %8077 = vst [vmem:[#allocation2 + $0x10] sm:$0xff] %v7847
    %8078 = vst [vmem:[#allocation2 + $0x18] sm:$0xff] %v8071
    %8079 = vst [vmem:[#allocation2 + $0x20] sm:$0xff] %v7401
    %8080 = vst [vmem:[#allocation2 + $0x28] sm:$0xff] %v7625
    %8081 = vst [vmem:[#allocation2 + $0x30] sm:$0xff] %v7849
    %8082 = vst [vmem:[#allocation2 + $0x38] sm:$0xff] %v8073
    // Predicated region
    $region22: #{feed_forward.1} parent=1 // pred_check
      _
    $region23: #{feed_forward.1} parent=1 // pred_check_branch
      %8084 = sbr.rel (0) target = $region25
    $region24: #{feed_forward.1} parent=1 // pred_region
      %8086 = vsyncadd [#allocation3], 0
      %s8087 = sshll.u32 [#allocation2], 4
      %s8088 = int_to_ptr.vmem [resolvable:$true] %s8087
      %s8089 = sshll.u32 %s5, 4
      %s8090 = int_to_ptr.hbm [resolvable:$true] %s8089
      %8095 = dma.vmem_to_hbm [thread:$0]  %s8088, 1024, %s8090, [#allocation3], 512, 512, 32
    $region25: #{feed_forward.1} parent=1 // pred_fallthru
      _
    // Predicated region
    $region26: #{feed_forward.1} parent=1 // pred_check
      _
    $region27: #{feed_forward.1} parent=1 // pred_check_branch
      %8097 = sbr.rel (0) target = $region29
    $region28: #{feed_forward.1} parent=1 // pred_region
      %8099 = dma.done [#allocation3], 1024
    $region29: #{feed_forward.1} parent=1 // pred_fallthru
      _
    %8100 = vsyncpa [#allocation3], 1

</llo_original>
